<compile_context>
chip_gen: v7x
topology: tpu7x:2x2x1
jax: 0.10.0
libtpu: 0.0.40
codegen_flags: <defaults>
</compile_context>

<pallas_src>
import functools

import jax
import jax.numpy as jnp
from jax.experimental import pallas as pl
from jax.experimental.pallas import tpu as pltpu


def _round_up(x, m):
    return ((x + m - 1) // m) * m


def _fasttext_kernel(x1_ref, x2_ref, x3_ref, w1_ref, b1_ref, w2_ref, b2_ref,
                     o_ref, *, inv_s, embed_size):
    # x*_ref : (TB, S, E) f32      w1_ref: (3E, H)   b1_ref: (1, H)
    # w2_ref : (H, Cpad)           b2_ref: (1, Cpad) o_ref : (TB, Cpad)
    E = embed_size

    # Sum over sequence (XLU reduce over sublane axis of each (S, E) slice).
    s1 = jnp.sum(x1_ref[...], axis=1)                    # (TB, E)
    s2 = jnp.sum(x2_ref[...], axis=1)                    # (TB, E)
    s3 = jnp.sum(x3_ref[...], axis=1)                    # (TB, E)

    # dropout (eval mode) == identity

    # fc1 without materializing the concat: three matmuls against static
    # slices of the VMEM-resident W1 tile; fold the 1/S mean into a single
    # (TB, H) multiply afterwards.
    acc = (jnp.dot(s1, w1_ref[0:E, :], preferred_element_type=jnp.float32)
           + jnp.dot(s2, w1_ref[E:2 * E, :], preferred_element_type=jnp.float32)
           + jnp.dot(s3, w1_ref[2 * E:3 * E, :], preferred_element_type=jnp.float32))
    h = acc * inv_s + b1_ref[...]                         # (TB, H)
    h = jnp.maximum(h, 0.0)                               # ReLU

    # dropout (eval mode) == identity

    out = jnp.dot(h, w2_ref[...],
                  preferred_element_type=jnp.float32) + b2_ref[...]  # (TB, Cpad)
    o_ref[...] = out.astype(o_ref.dtype)


def fasttext_forward(bos, bigram, trigram, params, *, block_b=128):
    """Embedding gathers in JAX (glue); mean + fc1 + ReLU + fc2 in Pallas."""
    # TODO(synk): data-dependent embedding gather stays in XLA for now.
    x1 = jnp.take(params["emb_u"], bos, axis=0).astype(jnp.float32)   # (B, S, E)
    x2 = jnp.take(params["emb_b"], bigram, axis=0).astype(jnp.float32)
    x3 = jnp.take(params["emb_t"], trigram, axis=0).astype(jnp.float32)

    B, S, E = x1.shape
    H = params["w1"].shape[1]
    C = params["w2"].shape[1]

    # Batch tile: multiple of 8 (sublane), capped at block_b (MXU-friendly).
    TB = min(_round_up(B, 8), block_b)
    B_pad = _round_up(B, TB)
    if B_pad != B:
        pad = ((0, B_pad - B), (0, 0), (0, 0))
        x1 = jnp.pad(x1, pad)
        x2 = jnp.pad(x2, pad)
        x3 = jnp.pad(x3, pad)

    # Pad classifier width to a full 128-lane register -> dense output stores.
    Cp = _round_up(C, 128)
    w1 = params["w1"].astype(jnp.float32)                       # (3E, H)
    b1 = params["b1"].astype(jnp.float32).reshape(1, H)         # (1, H)
    w2 = jnp.pad(params["w2"].astype(jnp.float32),
                 ((0, 0), (0, Cp - C)))                         # (H, Cp)
    b2 = jnp.pad(params["b2"].astype(jnp.float32),
                 ((0, Cp - C),)).reshape(1, Cp)                 # (1, Cp)

    grid = (B_pad // TB,)

    # VMEM budget: double-buffered x tiles + resident weights + output tiles.
    block_bytes = 4 * (2 * 3 * TB * S * E        # x1/x2/x3, double-buffered
                       + 3 * E * H + H           # W1, b1 (resident)
                       + H * Cp + Cp             # W2, b2 (resident)
                       + 2 * TB * Cp)            # output, double-buffered
    vmem_limit = int(min(max(2 * block_bytes, 16 * 1024 * 1024),
                         64 * 1024 * 1024))      # safe on v7x (64 MiB physical)

    cost = pl.CostEstimate(
        flops=2 * B_pad * (3 * E) * H + 2 * B_pad * H * Cp + 3 * B_pad * S * E,
        transcendentals=0,
        bytes_accessed=4 * (3 * B_pad * S * E + 3 * E * H + H
                            + H * Cp + Cp + B_pad * Cp),
    )

    out = pl.pallas_call(
        functools.partial(_fasttext_kernel, inv_s=1.0 / S, embed_size=E),
        out_shape=jax.ShapeDtypeStruct((B_pad, Cp), jnp.float32),
        grid_spec=pltpu.PrefetchScalarGridSpec(
            num_scalar_prefetch=0,
            grid=grid,
            in_specs=[
                pl.BlockSpec((TB, S, E), lambda i: (i, 0, 0)),   # x1
                pl.BlockSpec((TB, S, E), lambda i: (i, 0, 0)),   # x2
                pl.BlockSpec((TB, S, E), lambda i: (i, 0, 0)),   # x3
                pl.BlockSpec((3 * E, H), lambda i: (0, 0)),      # W1 (resident)
                pl.BlockSpec((1, H), lambda i: (0, 0)),          # b1 (resident)
                pl.BlockSpec((H, Cp), lambda i: (0, 0)),         # W2 (resident)
                pl.BlockSpec((1, Cp), lambda i: (0, 0)),         # b2 (resident)
            ],
            out_specs=pl.BlockSpec((TB, Cp), lambda i: (i, 0)),
        ),
        compiler_params=pltpu.CompilerParams(
            dimension_semantics=("parallel",),
            vmem_limit_bytes=vmem_limit),
        cost_estimate=cost,
    )(x1, x2, x3, w1, b1, w2, b2)

    return out[:B, :C]


def fasttext_reference(bos, bigram, trigram, params):
    """Pure-JAX reference matching the PyTorch forward (eval mode)."""
    x1 = jnp.take(params["emb_u"], bos, axis=0)
    x2 = jnp.take(params["emb_b"], bigram, axis=0)
    x3 = jnp.take(params["emb_t"], trigram, axis=0)
    x = jnp.concatenate((x1, x2, x3), axis=-1).astype(jnp.float32)
    x = jnp.mean(x, axis=1)
    h = jnp.maximum(x @ params["w1"] + params["b1"], 0.0)
    return h @ params["w2"] + params["b2"]


def init_params(key, embed_size, hidden_size, unigram_num, bigram_num,
                trigram_num, num_class):
    ks = jax.random.split(key, 7)
    scale = 0.02
    return {
        "emb_u": scale * jax.random.normal(ks[0], (unigram_num, embed_size), jnp.float32),
        "emb_b": scale * jax.random.normal(ks[1], (bigram_num, embed_size), jnp.float32),
        "emb_t": scale * jax.random.normal(ks[2], (trigram_num, embed_size), jnp.float32),
        # stored as (in, out), i.e. transposed relative to nn.Linear.weight
        "w1": scale * jax.random.normal(ks[3], (3 * embed_size, hidden_size), jnp.float32),
        "b1": scale * jax.random.normal(ks[4], (hidden_size,), jnp.float32),
        "w2": scale * jax.random.normal(ks[5], (hidden_size, num_class), jnp.float32),
        "b2": scale * jax.random.normal(ks[6], (num_class,), jnp.float32),
    }


if __name__ == "__main__":
    # Small shapes consistent with the module; B=256 exercises batch tiling
    # (TB=128, grid=(2,)) while remaining tiny in absolute size.
    embed_size, hidden_size = 32, 64
    unigram_num, bigram_num, trigram_num = 50, 60, 70
    num_class = 8
    B, S = 256, 8

    key = jax.random.PRNGKey(0)
    kp, k1, k2, k3 = jax.random.split(key, 4)
    params = init_params(kp, embed_size, hidden_size, unigram_num,
                         bigram_num, trigram_num, num_class)

    bos = jax.random.randint(k1, (B, S), 0, unigram_num, dtype=jnp.int32)
    bigram = jax.random.randint(k2, (B, S), 0, bigram_num, dtype=jnp.int32)
    trigram = jax.random.randint(k3, (B, S), 0, trigram_num, dtype=jnp.int32)

    out = fasttext_forward(bos, bigram, trigram, params)
    out = jax.block_until_ready(out)

    ref = fasttext_reference(bos, bigram, trigram, params)
    assert out.shape == (B, num_class)
    assert jnp.allclose(out, ref, atol=1e-4, rtol=1e-4), "mismatch vs reference"

    print("KERNEL_OK")
</pallas_src>

<mosaic_0001>
module attributes {stable_mosaic.version = 11 : i64} {
  func.func @_fasttext_kernel(%arg0: i32, %arg1: memref<128x8x32xf32, #tpu.memory_space<vmem>>, %arg2: memref<128x8x32xf32, #tpu.memory_space<vmem>>, %arg3: memref<128x8x32xf32, #tpu.memory_space<vmem>>, %arg4: memref<96x64xf32, #tpu.memory_space<vmem>>, %arg5: memref<1x64xf32, #tpu.memory_space<vmem>>, %arg6: memref<64x128xf32, #tpu.memory_space<vmem>>, %arg7: memref<1x128xf32, #tpu.memory_space<vmem>>, %arg8: memref<128x128xf32, #tpu.memory_space<vmem>>) attributes {dimension_semantics = [#tpu.dimension_semantics<parallel>], iteration_bounds = array<i64: 2>, scalar_prefetch = 0 : i64, scratch_operands = 0 : i64, tpu.core_type = #tpu.core_type<tc>, window_params = [{transform_indices = @transform_0, window_bounds = array<i64: 128, 8, 32>}, {transform_indices = @transform_1, window_bounds = array<i64: 128, 8, 32>}, {transform_indices = @transform_2, window_bounds = array<i64: 128, 8, 32>}, {pipeline_mode = #tpu.pipeline_mode<synchronous>, transform_indices = @transform_3, window_bounds = array<i64: 96, 64>}, {pipeline_mode = #tpu.pipeline_mode<synchronous>, transform_indices = @transform_4, window_bounds = array<i64: 1, 64>}, {pipeline_mode = #tpu.pipeline_mode<synchronous>, transform_indices = @transform_5, window_bounds = array<i64: 64, 128>}, {pipeline_mode = #tpu.pipeline_mode<synchronous>, transform_indices = @transform_6, window_bounds = array<i64: 1, 128>}, {transform_indices = @transform_7, window_bounds = array<i64: 128, 128>}]} {
    %c0 = arith.constant 0 : index
    %c0_0 = arith.constant 0 : index
    %c0_1 = arith.constant 0 : index
    %0 = vector.load %arg1[%c0, %c0_0, %c0_1] : memref<128x8x32xf32, #tpu.memory_space<vmem>>, vector<128x8x32xf32>
    %cst = arith.constant dense<0.000000e+00> : vector<128x32xf32>
    %1 = vector.multi_reduction <add>, %0, %cst [1] : vector<128x8x32xf32> to vector<128x32xf32>
    %c0_2 = arith.constant 0 : index
    %c0_3 = arith.constant 0 : index
    %c0_4 = arith.constant 0 : index
    %2 = vector.load %arg2[%c0_2, %c0_3, %c0_4] : memref<128x8x32xf32, #tpu.memory_space<vmem>>, vector<128x8x32xf32>
    %cst_5 = arith.constant dense<0.000000e+00> : vector<128x32xf32>
    %3 = vector.multi_reduction <add>, %2, %cst_5 [1] : vector<128x8x32xf32> to vector<128x32xf32>
    %c0_6 = arith.constant 0 : index
    %c0_7 = arith.constant 0 : index
    %c0_8 = arith.constant 0 : index
    %4 = vector.load %arg3[%c0_6, %c0_7, %c0_8] : memref<128x8x32xf32, #tpu.memory_space<vmem>>, vector<128x8x32xf32>
    %cst_9 = arith.constant dense<0.000000e+00> : vector<128x32xf32>
    %5 = vector.multi_reduction <add>, %4, %cst_9 [1] : vector<128x8x32xf32> to vector<128x32xf32>
    %c0_10 = arith.constant 0 : index
    %c0_11 = arith.constant 0 : index
    %6 = vector.load %arg4[%c0_10, %c0_11] : memref<96x64xf32, #tpu.memory_space<vmem>>, vector<32x64xf32>
    %cst_12 = arith.constant dense<0.000000e+00> : vector<128x64xf32>
    %7 = tpu.matmul %1, %6, %cst_12 {dimension_numbers = #tpu.dot_dimension_numbers<[1], [0], [0], [1], [0, 0, 1, 1], [], []>} : vector<128x32xf32>, vector<32x64xf32>, vector<128x64xf32> -> vector<128x64xf32>
    %c32 = arith.constant 32 : index
    %c0_13 = arith.constant 0 : index
    %8 = vector.load %arg4[%c32, %c0_13] : memref<96x64xf32, #tpu.memory_space<vmem>>, vector<32x64xf32>
    %cst_14 = arith.constant dense<0.000000e+00> : vector<128x64xf32>
    %9 = tpu.matmul %3, %8, %cst_14 {dimension_numbers = #tpu.dot_dimension_numbers<[1], [0], [0], [1], [0, 0, 1, 1], [], []>} : vector<128x32xf32>, vector<32x64xf32>, vector<128x64xf32> -> vector<128x64xf32>
    %10 = arith.addf %7, %9 : vector<128x64xf32>
    %c64 = arith.constant 64 : index
    %c0_15 = arith.constant 0 : index
    %11 = vector.load %arg4[%c64, %c0_15] : memref<96x64xf32, #tpu.memory_space<vmem>>, vector<32x64xf32>
    %cst_16 = arith.constant dense<0.000000e+00> : vector<128x64xf32>
    %12 = tpu.matmul %5, %11, %cst_16 {dimension_numbers = #tpu.dot_dimension_numbers<[1], [0], [0], [1], [0, 0, 1, 1], [], []>} : vector<128x32xf32>, vector<32x64xf32>, vector<128x64xf32> -> vector<128x64xf32>
    %13 = arith.addf %10, %12 : vector<128x64xf32>
    %cst_17 = arith.constant 1.250000e-01 : f32
    %14 = vector.broadcast %cst_17 : f32 to vector<128x64xf32>
    %15 = arith.mulf %13, %14 : vector<128x64xf32>
    %c0_18 = arith.constant 0 : index
    %c0_19 = arith.constant 0 : index
    %16 = vector.load %arg5[%c0_18, %c0_19] : memref<1x64xf32, #tpu.memory_space<vmem>>, vector<1x64xf32>
    %17 = vector.broadcast %16 : vector<1x64xf32> to vector<128x64xf32>
    %18 = arith.addf %15, %17 : vector<128x64xf32>
    %cst_20 = arith.constant 0.000000e+00 : f32
    %19 = vector.broadcast %cst_20 : f32 to vector<128x64xf32>
    %20 = arith.maximumf %18, %19 : vector<128x64xf32>
    %c0_21 = arith.constant 0 : index
    %c0_22 = arith.constant 0 : index
    %21 = vector.load %arg6[%c0_21, %c0_22] : memref<64x128xf32, #tpu.memory_space<vmem>>, vector<64x128xf32>
    %cst_23 = arith.constant dense<0.000000e+00> : vector<128x128xf32>
    %22 = tpu.matmul %20, %21, %cst_23 {dimension_numbers = #tpu.dot_dimension_numbers<[1], [0], [0], [1], [0, 0, 1, 1], [], []>} : vector<128x64xf32>, vector<64x128xf32>, vector<128x128xf32> -> vector<128x128xf32>
    %c0_24 = arith.constant 0 : index
    %c0_25 = arith.constant 0 : index
    %23 = vector.load %arg7[%c0_24, %c0_25] : memref<1x128xf32, #tpu.memory_space<vmem>>, vector<1x128xf32>
    %24 = vector.broadcast %23 : vector<1x128xf32> to vector<128x128xf32>
    %25 = arith.addf %22, %24 : vector<128x128xf32>
    %c0_26 = arith.constant 0 : index
    %c0_27 = arith.constant 0 : index
    %26 = vector.load %arg8[%c0_26, %c0_27] : memref<128x128xf32, #tpu.memory_space<vmem>>, vector<128x128xf32>
    tpu.vector_store %arg8[%c0_26, %c0_27], %25 {strides = array<i32>} : memref<128x128xf32, #tpu.memory_space<vmem>>, vector<128x128xf32>,
    return
  }
  func.func @transform_0(%arg0: i32) -> (i32, i32, i32) {
    %c0_i32 = arith.constant 0 : i32
    %c0_i32_0 = arith.constant 0 : i32
    %c0_i32_1 = arith.constant 0 : i32
    return %arg0, %c0_i32, %c0_i32_0 : i32, i32, i32
  }
  func.func @transform_1(%arg0: i32) -> (i32, i32, i32) {
    %c0_i32 = arith.constant 0 : i32
    %c0_i32_0 = arith.constant 0 : i32
    %c0_i32_1 = arith.constant 0 : i32
    return %arg0, %c0_i32, %c0_i32_0 : i32, i32, i32
  }
  func.func @transform_2(%arg0: i32) -> (i32, i32, i32) {
    %c0_i32 = arith.constant 0 : i32
    %c0_i32_0 = arith.constant 0 : i32
    %c0_i32_1 = arith.constant 0 : i32
    return %arg0, %c0_i32, %c0_i32_0 : i32, i32, i32
  }
  func.func @transform_3(%arg0: i32) -> (i32, i32) {
    %c0_i32 = arith.constant 0 : i32
    %c0_i32_0 = arith.constant 0 : i32
    %c0_i32_1 = arith.constant 0 : i32
    return %c0_i32, %c0_i32_0 : i32, i32
  }
  func.func @transform_4(%arg0: i32) -> (i32, i32) {
    %c0_i32 = arith.constant 0 : i32
    %c0_i32_0 = arith.constant 0 : i32
    %c0_i32_1 = arith.constant 0 : i32
    return %c0_i32, %c0_i32_0 : i32, i32
  }
  func.func @transform_5(%arg0: i32) -> (i32, i32) {
    %c0_i32 = arith.constant 0 : i32
    %c0_i32_0 = arith.constant 0 : i32
    %c0_i32_1 = arith.constant 0 : i32
    return %c0_i32, %c0_i32_0 : i32, i32
  }
  func.func @transform_6(%arg0: i32) -> (i32, i32) {
    %c0_i32 = arith.constant 0 : i32
    %c0_i32_0 = arith.constant 0 : i32
    %c0_i32_1 = arith.constant 0 : i32
    return %c0_i32, %c0_i32_0 : i32, i32
  }
  func.func @transform_7(%arg0: i32) -> (i32, i32) {
    %c0_i32 = arith.constant 0 : i32
    %c0_i32_0 = arith.constant 0 : i32
    return %arg0, %c0_i32 : i32, i32
  }
}

</mosaic_0001>

<llo_original>
// kernel: tpu_custom_call.1
$region0: #{tpu_custom_call.1}
  #allocation0 [shape = 'u32[]', space=smem, size = 0x4, offset = 0x4, fixed_abs, tag = 'smem constant byte address 0x4 - core index']
  #allocation1 [shape = 'u32[144,128]{1,0:T(1,128)}', space=vmem, size = 0x12000, scoped, tag = 'internal scratch']
  %s0 = inlined_call_operand.vmem [shape: f32[256,8,32], index: 0, kind: input, shape index: {}]
  %s1 = inlined_call_operand.vmem [shape: f32[256,8,32], index: 1, kind: input, shape index: {}]
  %s2 = inlined_call_operand.vmem [shape: f32[256,8,32], index: 2, kind: input, shape index: {}]
  %s3 = inlined_call_operand.vmem [shape: f32[96,64], index: 3, kind: input, shape index: {}]
  %s4 = inlined_call_operand.vmem [shape: f32[1,64], index: 4, kind: input, shape index: {}]
  %s5 = inlined_call_operand.vmem [shape: f32[64,128], index: 5, kind: input, shape index: {}]
  %s6 = inlined_call_operand.vmem [shape: f32[1,128], index: 6, kind: input, shape index: {}]
  %s7 = inlined_call_operand.hbm [shape: f32[256,128], index: 7, kind: output, shape index: {}]
  %s8 = sld [smem:[#allocation0]]
  $region61: #{tpu_custom_call.1} parent=0
    _
  %s10 = ssub.s32 1, %s8
  %s11 = scalar_select 0, %s10, %s8
  $region1: #{tpu_custom_call.1} parent=0
    #allocation2 [shape = 'u8[131072]{0}', space=vmem, size = 0x20000, scoped, tag = 'output window, operand 0']
    #allocation3 [shape = 's32[2]{0}', space=sflag, size = 0x8, scoped, tag = 'scoped memory for tpu_custom_call.1']
    %12 = vsyncpa [#allocation3], 0
    %s13 = scalar_lea.sflag [#allocation3], 1
    %14 = vsyncpa %s13, 0
    loop: start=0, step=1, limit=4
    $region2: #{tpu_custom_call.1} parent=1 // loop_pre_header
      _
    $region3: #{tpu_custom_call.1} parent=1 // loop_header
      %s16 = sphi 0, %s20
      %p17 = scmp.ge.s32.totalorder %s16, 4
      %s26 = sphi 0, %s28
      %s29 = sphi 0, %s26
      %s30 = sphi 0, %s29
      %s46 = sphi 0, %s30
      %s52 = sphi 0, %s54
      %s55 = sphi 0, %s52
      %s56 = sphi 0, %s55
      %s72 = sphi 0, %s56
      %s78 = sphi 0, %s80
      %s81 = sphi 0, %s78
      %s82 = sphi 0, %s81
      %s98 = sphi 0, %s82
      %s102 = sphi 0, %s102
      %s104 = sphi 0, %s102
      %s105 = sphi 0, %s104
      %s119 = sphi 0, %s105
      %s123 = sphi 0, %s123
      %s125 = sphi 0, %s123
      %s126 = sphi 0, %s125
      %s140 = sphi 0, %s126
      %s144 = sphi 0, %s144
      %s146 = sphi 0, %s144
      %s147 = sphi 0, %s146
      %s161 = sphi 0, %s147
      %s165 = sphi 0, %s165
      %s167 = sphi 0, %s165
      %s168 = sphi 0, %s167
      %s182 = sphi 0, %s168
      %s188 = sphi 0, %s190
      %s191 = sphi 0, %s188
      %s192 = sphi 0, %s191
      %s208 = sphi 0, %s192
    $region4: #{tpu_custom_call.1} parent=1 // loop_header_branch
      %19 = sbr.rel (%p17) target = $region8
    $region5: #{tpu_custom_call.1} parent=1 // loop_body
      %s21 = ssub.s32 %s16, 1
      %s22 = ssub.s32 %s16, 2
      %s23 = sadd.s32 %s16, 1
      %s24 = ssub.s32 %s16, %s23
      %p25 = scmp.eq.s32.totalorder %s24, 0
      %s27 = sadd.s32 %s26, 1
      %s28 = scalar_select %p25, %s26, %s27
      %p31 = pneg %p25
      %p32 = scmp.eq.s32.totalorder %s16, 1
      %p33 = por %p31, %p32
      %p34 = scmp.ne.s32.totalorder %s26, %s29
      %p35 = scmp.eq.s32.totalorder %s16, 0
      %p36 = por %p34, %p35
      %p37 = scmp.ne.s32.totalorder %s26, %s29
      %p38 = scmp.eq.s32.totalorder %s21, 1
      %p39 = por %p37, %p38
      %p40 = scmp.ne.s32.totalorder %s29, %s30
      %p41 = scmp.eq.s32.totalorder %s21, 0
      %p42 = por %p40, %p41
      %p43 = scmp.ne.s32.totalorder %s29, %s30
      %p44 = scmp.eq.s32.totalorder %s22, 1
      %p45 = por %p43, %p44
      %p47 = scmp.ne.s32.totalorder %s30, %s46
      %p48 = scmp.eq.s32.totalorder %s22, 0
      %p49 = por %p47, %p48
      %s50 = ssub.s32 %s16, %s23
      %p51 = scmp.eq.s32.totalorder %s50, 0
      %s53 = sadd.s32 %s52, 1
      %s54 = scalar_select %p51, %s52, %s53
      %p57 = pneg %p51
      %p58 = scmp.eq.s32.totalorder %s16, 1
      %p59 = por %p57, %p58
      %p60 = scmp.ne.s32.totalorder %s52, %s55
      %p61 = scmp.eq.s32.totalorder %s16, 0
      %p62 = por %p60, %p61
      %p63 = scmp.ne.s32.totalorder %s52, %s55
      %p64 = scmp.eq.s32.totalorder %s21, 1
      %p65 = por %p63, %p64
      %p66 = scmp.ne.s32.totalorder %s55, %s56
      %p67 = scmp.eq.s32.totalorder %s21, 0
      %p68 = por %p66, %p67
      %p69 = scmp.ne.s32.totalorder %s55, %s56
      %p70 = scmp.eq.s32.totalorder %s22, 1
      %p71 = por %p69, %p70
      %p73 = scmp.ne.s32.totalorder %s56, %s72
      %p74 = scmp.eq.s32.totalorder %s22, 0
      %p75 = por %p73, %p74
      %s76 = ssub.s32 %s16, %s23
      %p77 = scmp.eq.s32.totalorder %s76, 0
      %s79 = sadd.s32 %s78, 1
      %s80 = scalar_select %p77, %s78, %s79
      %p83 = pneg %p77
      %p84 = scmp.eq.s32.totalorder %s16, 1
      %p85 = por %p83, %p84
      %p86 = scmp.ne.s32.totalorder %s78, %s81
      %p87 = scmp.eq.s32.totalorder %s16, 0
      %p88 = por %p86, %p87
      %p89 = scmp.ne.s32.totalorder %s78, %s81
      %p90 = scmp.eq.s32.totalorder %s21, 1
      %p91 = por %p89, %p90
      %p92 = scmp.ne.s32.totalorder %s81, %s82
      %p93 = scmp.eq.s32.totalorder %s21, 0
      %p94 = por %p92, %p93
      %p95 = scmp.ne.s32.totalorder %s81, %s82
      %p96 = scmp.eq.s32.totalorder %s22, 1
      %p97 = por %p95, %p96
      %p99 = scmp.ne.s32.totalorder %s82, %s98
      %p100 = scmp.eq.s32.totalorder %s22, 0
      %p101 = por %p99, %p100
      %s103 = sadd.s32 %s102, 1
      %p106 = scmp.eq.s32.totalorder %s16, 1
      %p107 = scmp.ne.s32.totalorder %s102, %s104
      %p108 = scmp.eq.s32.totalorder %s16, 0
      %p109 = por %p107, %p108
      %p110 = scmp.ne.s32.totalorder %s102, %s104
      %p111 = scmp.eq.s32.totalorder %s21, 1
      %p112 = por %p110, %p111
      %p113 = scmp.ne.s32.totalorder %s104, %s105
      %p114 = scmp.eq.s32.totalorder %s21, 0
      %p115 = por %p113, %p114
      %p116 = scmp.ne.s32.totalorder %s104, %s105
      %p117 = scmp.eq.s32.totalorder %s22, 1
      %p118 = por %p116, %p117
      %p120 = scmp.ne.s32.totalorder %s105, %s119
      %p121 = scmp.eq.s32.totalorder %s22, 0
      %p122 = por %p120, %p121
      %s124 = sadd.s32 %s123, 1
      %p127 = scmp.eq.s32.totalorder %s16, 1
      %p128 = scmp.ne.s32.totalorder %s123, %s125
      %p129 = scmp.eq.s32.totalorder %s16, 0
      %p130 = por %p128, %p129
      %p131 = scmp.ne.s32.totalorder %s123, %s125
      %p132 = scmp.eq.s32.totalorder %s21, 1
      %p133 = por %p131, %p132
      %p134 = scmp.ne.s32.totalorder %s125, %s126
      %p135 = scmp.eq.s32.totalorder %s21, 0
      %p136 = por %p134, %p135
      %p137 = scmp.ne.s32.totalorder %s125, %s126
      %p138 = scmp.eq.s32.totalorder %s22, 1
      %p139 = por %p137, %p138
      %p141 = scmp.ne.s32.totalorder %s126, %s140
      %p142 = scmp.eq.s32.totalorder %s22, 0
      %p143 = por %p141, %p142
      %s145 = sadd.s32 %s144, 1
      %p148 = scmp.eq.s32.totalorder %s16, 1
      %p149 = scmp.ne.s32.totalorder %s144, %s146
      %p150 = scmp.eq.s32.totalorder %s16, 0
      %p151 = por %p149, %p150
      %p152 = scmp.ne.s32.totalorder %s144, %s146
      %p153 = scmp.eq.s32.totalorder %s21, 1
      %p154 = por %p152, %p153
      %p155 = scmp.ne.s32.totalorder %s146, %s147
      %p156 = scmp.eq.s32.totalorder %s21, 0
      %p157 = por %p155, %p156
      %p158 = scmp.ne.s32.totalorder %s146, %s147
      %p159 = scmp.eq.s32.totalorder %s22, 1
      %p160 = por %p158, %p159
      %p162 = scmp.ne.s32.totalorder %s147, %s161
      %p163 = scmp.eq.s32.totalorder %s22, 0
      %p164 = por %p162, %p163
      %s166 = sadd.s32 %s165, 1
      %p169 = scmp.eq.s32.totalorder %s16, 1
      %p170 = scmp.ne.s32.totalorder %s165, %s167
      %p171 = scmp.eq.s32.totalorder %s16, 0
      %p172 = por %p170, %p171
      %p173 = scmp.ne.s32.totalorder %s165, %s167
      %p174 = scmp.eq.s32.totalorder %s21, 1
      %p175 = por %p173, %p174
      %p176 = scmp.ne.s32.totalorder %s167, %s168
      %p177 = scmp.eq.s32.totalorder %s21, 0
      %p178 = por %p176, %p177
      %p179 = scmp.ne.s32.totalorder %s167, %s168
      %p180 = scmp.eq.s32.totalorder %s22, 1
      %p181 = por %p179, %p180
      %p183 = scmp.ne.s32.totalorder %s168, %s182
      %p184 = scmp.eq.s32.totalorder %s22, 0
      %p185 = por %p183, %p184
      %s186 = ssub.s32 %s16, %s23
      %p187 = scmp.eq.s32.totalorder %s186, 0
      %s189 = sadd.s32 %s188, 1
      %s190 = scalar_select %p187, %s188, %s189
      %p193 = pneg %p187
      %p194 = scmp.eq.s32.totalorder %s16, 1
      %p195 = por %p193, %p194
      %p196 = scmp.ne.s32.totalorder %s188, %s191
      %p197 = scmp.eq.s32.totalorder %s16, 0
      %p198 = por %p196, %p197
      %p199 = scmp.ne.s32.totalorder %s188, %s191
      %p200 = scmp.eq.s32.totalorder %s21, 1
      %p201 = por %p199, %p200
      %p202 = scmp.ne.s32.totalorder %s191, %s192
      %p203 = scmp.eq.s32.totalorder %s21, 0
      %p204 = por %p202, %p203
      %p205 = scmp.ne.s32.totalorder %s191, %s192
      %p206 = scmp.eq.s32.totalorder %s22, 1
      %p207 = por %p205, %p206
      %p209 = scmp.ne.s32.totalorder %s192, %s208
      %p210 = scmp.eq.s32.totalorder %s22, 0
      %p211 = por %p209, %p210
      %p212 = scmp.le.s32.totalorder 1, %s16
      %p213 = scmp.lt.s32.totalorder %s16, 3
      %p214 = pnand %p212, %p213
      %p215 = pneg %p214
      // Predicated region
      $region9: #{tpu_custom_call.1} parent=5 // pred_check
        _
      $region10: #{tpu_custom_call.1} parent=5 // pred_check_branch
        %217 = sbr.rel (%p214) target = $region12
      $region11: #{tpu_custom_call.1} parent=5 // pred_region
        %s218 = ssub.s32 %s16, 1
        // Predicated region
        $region13: #{tpu_custom_call.1} parent=11 // pred_check
          %p219 = pneg %p115
        $region14: #{tpu_custom_call.1} parent=11 // pred_check_branch
          %221 = sbr.rel (%p219) target = $region16
        $region15: #{tpu_custom_call.1} parent=11 // pred_region
          _
        $region16: #{tpu_custom_call.1} parent=11 // pred_fallthru
          _
        // Predicated region
        $region17: #{tpu_custom_call.1} parent=11 // pred_check
          %p222 = pneg %p136
        $region18: #{tpu_custom_call.1} parent=11 // pred_check_branch
          %224 = sbr.rel (%p222) target = $region20
        $region19: #{tpu_custom_call.1} parent=11 // pred_region
          _
        $region20: #{tpu_custom_call.1} parent=11 // pred_fallthru
          _
        // Predicated region
        $region21: #{tpu_custom_call.1} parent=11 // pred_check
          %p225 = pneg %p157
        $region22: #{tpu_custom_call.1} parent=11 // pred_check_branch
          %227 = sbr.rel (%p225) target = $region24
        $region23: #{tpu_custom_call.1} parent=11 // pred_region
          _
        $region24: #{tpu_custom_call.1} parent=11 // pred_fallthru
          _
        // Predicated region
        $region25: #{tpu_custom_call.1} parent=11 // pred_check
          %p228 = pneg %p178
        $region26: #{tpu_custom_call.1} parent=11 // pred_check_branch
          %230 = sbr.rel (%p228) target = $region28
        $region27: #{tpu_custom_call.1} parent=11 // pred_region
          _
        $region28: #{tpu_custom_call.1} parent=11 // pred_fallthru
          _
      $region12: #{tpu_custom_call.1} parent=5 // pred_fallthru
        _
      %p231 = scmp.lt.s32.totalorder %s16, 2
      // Predicated region
      $region29: #{tpu_custom_call.1} parent=5 // pred_check
        %p232 = pneg %p231
      $region30: #{tpu_custom_call.1} parent=5 // pred_check_branch
        %234 = sbr.rel (%p232) target = $region32
      $region31: #{tpu_custom_call.1} parent=5 // pred_region
        // Predicated region
        $region33: #{tpu_custom_call.1} parent=31 // pred_check
          %p235 = pneg %p36
        $region34: #{tpu_custom_call.1} parent=31 // pred_check_branch
          %237 = sbr.rel (%p235) target = $region36
        $region35: #{tpu_custom_call.1} parent=31 // pred_region
          %s238 = smul.u32 128, %s16
          %p239 = scmp.lt.s32.totalorder %s238, 255
          %s240 = scalar_select %p239, %s238, 255
          %s241 = smul.addr %s240, 8
          %s242 = scalar_lea.vmem %s0, %s241
          %s243 = smul.u32 128, %s16
        $region36: #{tpu_custom_call.1} parent=31 // pred_fallthru
          _
        // Predicated region
        $region37: #{tpu_custom_call.1} parent=31 // pred_check
          %p244 = pneg %p62
        $region38: #{tpu_custom_call.1} parent=31 // pred_check_branch
          %246 = sbr.rel (%p244) target = $region40
        $region39: #{tpu_custom_call.1} parent=31 // pred_region
          %s247 = smul.u32 128, %s16
          %p248 = scmp.lt.s32.totalorder %s247, 255
          %s249 = scalar_select %p248, %s247, 255
          %s250 = smul.addr %s249, 8
          %s251 = scalar_lea.vmem %s1, %s250
          %s252 = smul.u32 128, %s16
        $region40: #{tpu_custom_call.1} parent=31 // pred_fallthru
          _
        // Predicated region
        $region41: #{tpu_custom_call.1} parent=31 // pred_check
          %p253 = pneg %p88
        $region42: #{tpu_custom_call.1} parent=31 // pred_check_branch
          %255 = sbr.rel (%p253) target = $region44
        $region43: #{tpu_custom_call.1} parent=31 // pred_region
          %s256 = smul.u32 128, %s16
          %p257 = scmp.lt.s32.totalorder %s256, 255
          %s258 = scalar_select %p257, %s256, 255
          %s259 = smul.addr %s258, 8
          %s260 = scalar_lea.vmem %s2, %s259
          %s261 = smul.u32 128, %s16
        $region44: #{tpu_custom_call.1} parent=31 // pred_fallthru
          _
      $region32: #{tpu_custom_call.1} parent=5 // pred_fallthru
        _
      %p262 = scmp.le.s32.totalorder 1, %s16
      %p263 = scmp.lt.s32.totalorder %s16, 3
      %p264 = pnand %p262, %p263
      %p265 = pneg %p264
      // Predicated region
      $region45: #{tpu_custom_call.1} parent=5 // pred_check
        _
      $region46: #{tpu_custom_call.1} parent=5 // pred_check_branch
        %267 = sbr.rel (%p264) target = $region48
      $region47: #{tpu_custom_call.1} parent=5 // pred_region
        %s268 = ssub.s32 %s16, 1
        %s269 = smul.u32 128, %s21
        %p270 = scmp.lt.s32.totalorder %s269, 255
        %s271 = scalar_select %p270, %s269, 255
        %s272 = smul.addr %s271, 8
        %s273 = scalar_lea.vmem %s0, %s272
        %p274 = pneg %p42
        %p275 = pneg %p39
        %s276 = smul.u32 128, %s21
        %p277 = scmp.lt.s32.totalorder %s276, 255
        %s278 = scalar_select %p277, %s276, 255
        %s279 = smul.addr %s278, 8
        %s280 = scalar_lea.vmem %s1, %s279
        %p281 = pneg %p68
        %p282 = pneg %p65
        %s283 = smul.u32 128, %s21
        %p284 = scmp.lt.s32.totalorder %s283, 255
        %s285 = scalar_select %p284, %s283, 255
        %s286 = smul.addr %s285, 8
        %s287 = scalar_lea.vmem %s2, %s286
        %p288 = pneg %p94
        %p289 = pneg %p91
        %p290 = pneg %p115
        %p291 = pneg %p112
        %p292 = pneg %p136
        %p293 = pneg %p133
        %p294 = pneg %p157
        %p295 = pneg %p154
        %p296 = pneg %p178
        %p297 = pneg %p175
        %p298 = pneg %p204
        %p299 = pneg %p201
        %s300 = sand.u32 %s191, 1
        %s301 = scalar_lea.sflag [#allocation3], %s300
        %s302 = sand.u32 %s191, 1
        %s303 = smul.addr %s302, 128
        %s304 = scalar_lea.vmem [#allocation2], %s303
        %s305 = smul.u32 128, %s21
        %p306 = scmp.lt.s32.totalorder %s305, 255
        %s307 = scalar_select %p306, %s305, 255
        %s308 = smul.addr %s307, 8
        %s309 = scalar_lea.vmem %s0, %s308
        %s310 = smul.u32 128, %s21
        %s311 = smul.u32 128, %s21
        %p312 = scmp.lt.s32.totalorder %s311, 255
        %s313 = scalar_select %p312, %s311, 255
        %s314 = smul.addr %s313, 8
        %s315 = scalar_lea.vmem %s1, %s314
        %s316 = smul.u32 128, %s21
        %s317 = smul.u32 128, %s21
        %p318 = scmp.lt.s32.totalorder %s317, 255
        %s319 = scalar_select %p318, %s317, 255
        %s320 = smul.addr %s319, 8
        %s321 = scalar_lea.vmem %s2, %s320
        %s322 = smul.u32 128, %s21
        %s323 = smul.u32 16, %s21
        %v324 = vld [vmem:[%s309] sm:$0xff]
        %v325 = vld [vmem:[%s309 + $0x8] sm:$0xff]
        %v326 = vld [vmem:[%s309 + $0x10] sm:$0xff]
        %v327 = vld [vmem:[%s309 + $0x18] sm:$0xff]
        %v328 = vld [vmem:[%s309 + $0x20] sm:$0xff]
        %v329 = vld [vmem:[%s309 + $0x28] sm:$0xff]
        %v330 = vld [vmem:[%s309 + $0x30] sm:$0xff]
        %v331 = vld [vmem:[%s309 + $0x38] sm:$0xff]
        %v332 = vld [vmem:[%s309 + $0x40] sm:$0xff]
        %v333 = vld [vmem:[%s309 + $0x48] sm:$0xff]
        %v334 = vld [vmem:[%s309 + $0x50] sm:$0xff]
        %v335 = vld [vmem:[%s309 + $0x58] sm:$0xff]
        %v336 = vld [vmem:[%s309 + $0x60] sm:$0xff]
        %v337 = vld [vmem:[%s309 + $0x68] sm:$0xff]
        %v338 = vld [vmem:[%s309 + $0x70] sm:$0xff]
        %v339 = vld [vmem:[%s309 + $0x78] sm:$0xff]
        %v340 = vld [vmem:[%s309 + $0x80] sm:$0xff]
        %v341 = vld [vmem:[%s309 + $0x88] sm:$0xff]
        %v342 = vld [vmem:[%s309 + $0x90] sm:$0xff]
        %v343 = vld [vmem:[%s309 + $0x98] sm:$0xff]
        %v344 = vld [vmem:[%s309 + $0xa0] sm:$0xff]
        %v345 = vld [vmem:[%s309 + $0xa8] sm:$0xff]
        %v346 = vld [vmem:[%s309 + $0xb0] sm:$0xff]
        %v347 = vld [vmem:[%s309 + $0xb8] sm:$0xff]
        %v348 = vld [vmem:[%s309 + $0xc0] sm:$0xff]
        %v349 = vld [vmem:[%s309 + $0xc8] sm:$0xff]
        %v350 = vld [vmem:[%s309 + $0xd0] sm:$0xff]
        %v351 = vld [vmem:[%s309 + $0xd8] sm:$0xff]
        %v352 = vld [vmem:[%s309 + $0xe0] sm:$0xff]
        %v353 = vld [vmem:[%s309 + $0xe8] sm:$0xff]
        %v354 = vld [vmem:[%s309 + $0xf0] sm:$0xff]
        %v355 = vld [vmem:[%s309 + $0xf8] sm:$0xff]
        %v356 = vld [vmem:[%s309 + $0x100] sm:$0xff]
        %v357 = vld [vmem:[%s309 + $0x108] sm:$0xff]
        %v358 = vld [vmem:[%s309 + $0x110] sm:$0xff]
        %v359 = vld [vmem:[%s309 + $0x118] sm:$0xff]
        %v360 = vld [vmem:[%s309 + $0x120] sm:$0xff]
        %v361 = vld [vmem:[%s309 + $0x128] sm:$0xff]
        %v362 = vld [vmem:[%s309 + $0x130] sm:$0xff]
        %v363 = vld [vmem:[%s309 + $0x138] sm:$0xff]
        %v364 = vld [vmem:[%s309 + $0x140] sm:$0xff]
        %v365 = vld [vmem:[%s309 + $0x148] sm:$0xff]
        %v366 = vld [vmem:[%s309 + $0x150] sm:$0xff]
        %v367 = vld [vmem:[%s309 + $0x158] sm:$0xff]
        %v368 = vld [vmem:[%s309 + $0x160] sm:$0xff]
        %v369 = vld [vmem:[%s309 + $0x168] sm:$0xff]
        %v370 = vld [vmem:[%s309 + $0x170] sm:$0xff]
        %v371 = vld [vmem:[%s309 + $0x178] sm:$0xff]
        %v372 = vld [vmem:[%s309 + $0x180] sm:$0xff]
        %v373 = vld [vmem:[%s309 + $0x188] sm:$0xff]
        %v374 = vld [vmem:[%s309 + $0x190] sm:$0xff]
        %v375 = vld [vmem:[%s309 + $0x198] sm:$0xff]
        %v376 = vld [vmem:[%s309 + $0x1a0] sm:$0xff]
        %v377 = vld [vmem:[%s309 + $0x1a8] sm:$0xff]
        %v378 = vld [vmem:[%s309 + $0x1b0] sm:$0xff]
        %v379 = vld [vmem:[%s309 + $0x1b8] sm:$0xff]
        %v380 = vld [vmem:[%s309 + $0x1c0] sm:$0xff]
        %v381 = vld [vmem:[%s309 + $0x1c8] sm:$0xff]
        %v382 = vld [vmem:[%s309 + $0x1d0] sm:$0xff]
        %v383 = vld [vmem:[%s309 + $0x1d8] sm:$0xff]
        %v384 = vld [vmem:[%s309 + $0x1e0] sm:$0xff]
        %v385 = vld [vmem:[%s309 + $0x1e8] sm:$0xff]
        %v386 = vld [vmem:[%s309 + $0x1f0] sm:$0xff]
        %v387 = vld [vmem:[%s309 + $0x1f8] sm:$0xff]
        %v388 = vld [vmem:[%s309 + $0x200] sm:$0xff]
        %v389 = vld [vmem:[%s309 + $0x208] sm:$0xff]
        %v390 = vld [vmem:[%s309 + $0x210] sm:$0xff]
        %v391 = vld [vmem:[%s309 + $0x218] sm:$0xff]
        %v392 = vld [vmem:[%s309 + $0x220] sm:$0xff]
        %v393 = vld [vmem:[%s309 + $0x228] sm:$0xff]
        %v394 = vld [vmem:[%s309 + $0x230] sm:$0xff]
        %v395 = vld [vmem:[%s309 + $0x238] sm:$0xff]
        %v396 = vld [vmem:[%s309 + $0x240] sm:$0xff]
        %v397 = vld [vmem:[%s309 + $0x248] sm:$0xff]
        %v398 = vld [vmem:[%s309 + $0x250] sm:$0xff]
        %v399 = vld [vmem:[%s309 + $0x258] sm:$0xff]
        %v400 = vld [vmem:[%s309 + $0x260] sm:$0xff]
        %v401 = vld [vmem:[%s309 + $0x268] sm:$0xff]
        %v402 = vld [vmem:[%s309 + $0x270] sm:$0xff]
        %v403 = vld [vmem:[%s309 + $0x278] sm:$0xff]
        %v404 = vld [vmem:[%s309 + $0x280] sm:$0xff]
        %v405 = vld [vmem:[%s309 + $0x288] sm:$0xff]
        %v406 = vld [vmem:[%s309 + $0x290] sm:$0xff]
        %v407 = vld [vmem:[%s309 + $0x298] sm:$0xff]
        %v408 = vld [vmem:[%s309 + $0x2a0] sm:$0xff]
        %v409 = vld [vmem:[%s309 + $0x2a8] sm:$0xff]
        %v410 = vld [vmem:[%s309 + $0x2b0] sm:$0xff]
        %v411 = vld [vmem:[%s309 + $0x2b8] sm:$0xff]
        %v412 = vld [vmem:[%s309 + $0x2c0] sm:$0xff]
        %v413 = vld [vmem:[%s309 + $0x2c8] sm:$0xff]
        %v414 = vld [vmem:[%s309 + $0x2d0] sm:$0xff]
        %v415 = vld [vmem:[%s309 + $0x2d8] sm:$0xff]
        %v416 = vld [vmem:[%s309 + $0x2e0] sm:$0xff]
        %v417 = vld [vmem:[%s309 + $0x2e8] sm:$0xff]
        %v418 = vld [vmem:[%s309 + $0x2f0] sm:$0xff]
        %v419 = vld [vmem:[%s309 + $0x2f8] sm:$0xff]
        %v420 = vld [vmem:[%s309 + $0x300] sm:$0xff]
        %v421 = vld [vmem:[%s309 + $0x308] sm:$0xff]
        %v422 = vld [vmem:[%s309 + $0x310] sm:$0xff]
        %v423 = vld [vmem:[%s309 + $0x318] sm:$0xff]
        %v424 = vld [vmem:[%s309 + $0x320] sm:$0xff]
        %v425 = vld [vmem:[%s309 + $0x328] sm:$0xff]
        %v426 = vld [vmem:[%s309 + $0x330] sm:$0xff]
        %v427 = vld [vmem:[%s309 + $0x338] sm:$0xff]
        %v428 = vld [vmem:[%s309 + $0x340] sm:$0xff]
        %v429 = vld [vmem:[%s309 + $0x348] sm:$0xff]
        %v430 = vld [vmem:[%s309 + $0x350] sm:$0xff]
        %v431 = vld [vmem:[%s309 + $0x358] sm:$0xff]
        %v432 = vld [vmem:[%s309 + $0x360] sm:$0xff]
        %v433 = vld [vmem:[%s309 + $0x368] sm:$0xff]
        %v434 = vld [vmem:[%s309 + $0x370] sm:$0xff]
        %v435 = vld [vmem:[%s309 + $0x378] sm:$0xff]
        %v436 = vld [vmem:[%s309 + $0x380] sm:$0xff]
        %v437 = vld [vmem:[%s309 + $0x388] sm:$0xff]
        %v438 = vld [vmem:[%s309 + $0x390] sm:$0xff]
        %v439 = vld [vmem:[%s309 + $0x398] sm:$0xff]
        %v440 = vld [vmem:[%s309 + $0x3a0] sm:$0xff]
        %v441 = vld [vmem:[%s309 + $0x3a8] sm:$0xff]
        %v442 = vld [vmem:[%s309 + $0x3b0] sm:$0xff]
        %v443 = vld [vmem:[%s309 + $0x3b8] sm:$0xff]
        %v444 = vld [vmem:[%s309 + $0x3c0] sm:$0xff]
        %v445 = vld [vmem:[%s309 + $0x3c8] sm:$0xff]
        %v446 = vld [vmem:[%s309 + $0x3d0] sm:$0xff]
        %v447 = vld [vmem:[%s309 + $0x3d8] sm:$0xff]
        %v448 = vld [vmem:[%s309 + $0x3e0] sm:$0xff]
        %v449 = vld [vmem:[%s309 + $0x3e8] sm:$0xff]
        %v450 = vld [vmem:[%s309 + $0x3f0] sm:$0xff]
        %v451 = vld [vmem:[%s309 + $0x3f8] sm:$0xff]
        %vm452 = vcmask 261120
        %v453 = vsel %vm452, %v324, 0.0
        %v454 = vrot.slane %v453, 4
        %v455 = vadd.f32 %v453, %v454
        %v456 = vrot.slane %v455, 2
        %v457 = vadd.f32 %v455, %v456
        %v458 = vrot.slane %v457, 1
        %v459 = vadd.f32 %v457, %v458
        %v460 = vsel %vm452, %v325, 0.0
        %v461 = vrot.slane %v460, 4
        %v462 = vadd.f32 %v460, %v461
        %v463 = vrot.slane %v462, 2
        %v464 = vadd.f32 %v462, %v463
        %v465 = vrot.slane %v464, 1
        %v466 = vadd.f32 %v464, %v465
        %v467 = vsel %vm452, %v326, 0.0
        %v468 = vrot.slane %v467, 4
        %v469 = vadd.f32 %v467, %v468
        %v470 = vrot.slane %v469, 2
        %v471 = vadd.f32 %v469, %v470
        %v472 = vrot.slane %v471, 1
        %v473 = vadd.f32 %v471, %v472
        %v474 = vsel %vm452, %v327, 0.0
        %v475 = vrot.slane %v474, 4
        %v476 = vadd.f32 %v474, %v475
        %v477 = vrot.slane %v476, 2
        %v478 = vadd.f32 %v476, %v477
        %v479 = vrot.slane %v478, 1
        %v480 = vadd.f32 %v478, %v479
        %v481 = vsel %vm452, %v328, 0.0
        %v482 = vrot.slane %v481, 4
        %v483 = vadd.f32 %v481, %v482
        %v484 = vrot.slane %v483, 2
        %v485 = vadd.f32 %v483, %v484
        %v486 = vrot.slane %v485, 1
        %v487 = vadd.f32 %v485, %v486
        %v488 = vsel %vm452, %v329, 0.0
        %v489 = vrot.slane %v488, 4
        %v490 = vadd.f32 %v488, %v489
        %v491 = vrot.slane %v490, 2
        %v492 = vadd.f32 %v490, %v491
        %v493 = vrot.slane %v492, 1
        %v494 = vadd.f32 %v492, %v493
        %v495 = vsel %vm452, %v330, 0.0
        %v496 = vrot.slane %v495, 4
        %v497 = vadd.f32 %v495, %v496
        %v498 = vrot.slane %v497, 2
        %v499 = vadd.f32 %v497, %v498
        %v500 = vrot.slane %v499, 1
        %v501 = vadd.f32 %v499, %v500
        %v502 = vsel %vm452, %v331, 0.0
        %v503 = vrot.slane %v502, 4
        %v504 = vadd.f32 %v502, %v503
        %v505 = vrot.slane %v504, 2
        %v506 = vadd.f32 %v504, %v505
        %v507 = vrot.slane %v506, 1
        %v508 = vadd.f32 %v506, %v507
        %v509 = vsel %vm452, %v332, 0.0
        %v510 = vrot.slane %v509, 4
        %v511 = vadd.f32 %v509, %v510
        %v512 = vrot.slane %v511, 2
        %v513 = vadd.f32 %v511, %v512
        %v514 = vrot.slane %v513, 1
        %v515 = vadd.f32 %v513, %v514
        %v516 = vsel %vm452, %v333, 0.0
        %v517 = vrot.slane %v516, 4
        %v518 = vadd.f32 %v516, %v517
        %v519 = vrot.slane %v518, 2
        %v520 = vadd.f32 %v518, %v519
        %v521 = vrot.slane %v520, 1
        %v522 = vadd.f32 %v520, %v521
        %v523 = vsel %vm452, %v334, 0.0
        %v524 = vrot.slane %v523, 4
        %v525 = vadd.f32 %v523, %v524
        %v526 = vrot.slane %v525, 2
        %v527 = vadd.f32 %v525, %v526
        %v528 = vrot.slane %v527, 1
        %v529 = vadd.f32 %v527, %v528
        %v530 = vsel %vm452, %v335, 0.0
        %v531 = vrot.slane %v530, 4
        %v532 = vadd.f32 %v530, %v531
        %v533 = vrot.slane %v532, 2
        %v534 = vadd.f32 %v532, %v533
        %v535 = vrot.slane %v534, 1
        %v536 = vadd.f32 %v534, %v535
        %v537 = vsel %vm452, %v336, 0.0
        %v538 = vrot.slane %v537, 4
        %v539 = vadd.f32 %v537, %v538
        %v540 = vrot.slane %v539, 2
        %v541 = vadd.f32 %v539, %v540
        %v542 = vrot.slane %v541, 1
        %v543 = vadd.f32 %v541, %v542
        %v544 = vsel %vm452, %v337, 0.0
        %v545 = vrot.slane %v544, 4
        %v546 = vadd.f32 %v544, %v545
        %v547 = vrot.slane %v546, 2
        %v548 = vadd.f32 %v546, %v547
        %v549 = vrot.slane %v548, 1
        %v550 = vadd.f32 %v548, %v549
        %v551 = vsel %vm452, %v338, 0.0
        %v552 = vrot.slane %v551, 4
        %v553 = vadd.f32 %v551, %v552
        %v554 = vrot.slane %v553, 2
        %v555 = vadd.f32 %v553, %v554
        %v556 = vrot.slane %v555, 1
        %v557 = vadd.f32 %v555, %v556
        %v558 = vsel %vm452, %v339, 0.0
        %v559 = vrot.slane %v558, 4
        %v560 = vadd.f32 %v558, %v559
        %v561 = vrot.slane %v560, 2
        %v562 = vadd.f32 %v560, %v561
        %v563 = vrot.slane %v562, 1
        %v564 = vadd.f32 %v562, %v563
        %v565 = vsel %vm452, %v340, 0.0
        %v566 = vrot.slane %v565, 4
        %v567 = vadd.f32 %v565, %v566
        %v568 = vrot.slane %v567, 2
        %v569 = vadd.f32 %v567, %v568
        %v570 = vrot.slane %v569, 1
        %v571 = vadd.f32 %v569, %v570
        %v572 = vsel %vm452, %v341, 0.0
        %v573 = vrot.slane %v572, 4
        %v574 = vadd.f32 %v572, %v573
        %v575 = vrot.slane %v574, 2
        %v576 = vadd.f32 %v574, %v575
        %v577 = vrot.slane %v576, 1
        %v578 = vadd.f32 %v576, %v577
        %v579 = vsel %vm452, %v342, 0.0
        %v580 = vrot.slane %v579, 4
        %v581 = vadd.f32 %v579, %v580
        %v582 = vrot.slane %v581, 2
        %v583 = vadd.f32 %v581, %v582
        %v584 = vrot.slane %v583, 1
        %v585 = vadd.f32 %v583, %v584
        %v586 = vsel %vm452, %v343, 0.0
        %v587 = vrot.slane %v586, 4
        %v588 = vadd.f32 %v586, %v587
        %v589 = vrot.slane %v588, 2
        %v590 = vadd.f32 %v588, %v589
        %v591 = vrot.slane %v590, 1
        %v592 = vadd.f32 %v590, %v591
        %v593 = vsel %vm452, %v344, 0.0
        %v594 = vrot.slane %v593, 4
        %v595 = vadd.f32 %v593, %v594
        %v596 = vrot.slane %v595, 2
        %v597 = vadd.f32 %v595, %v596
        %v598 = vrot.slane %v597, 1
        %v599 = vadd.f32 %v597, %v598
        %v600 = vsel %vm452, %v345, 0.0
        %v601 = vrot.slane %v600, 4
        %v602 = vadd.f32 %v600, %v601
        %v603 = vrot.slane %v602, 2
        %v604 = vadd.f32 %v602, %v603
        %v605 = vrot.slane %v604, 1
        %v606 = vadd.f32 %v604, %v605
        %v607 = vsel %vm452, %v346, 0.0
        %v608 = vrot.slane %v607, 4
        %v609 = vadd.f32 %v607, %v608
        %v610 = vrot.slane %v609, 2
        %v611 = vadd.f32 %v609, %v610
        %v612 = vrot.slane %v611, 1
        %v613 = vadd.f32 %v611, %v612
        %v614 = vsel %vm452, %v347, 0.0
        %v615 = vrot.slane %v614, 4
        %v616 = vadd.f32 %v614, %v615
        %v617 = vrot.slane %v616, 2
        %v618 = vadd.f32 %v616, %v617
        %v619 = vrot.slane %v618, 1
        %v620 = vadd.f32 %v618, %v619
        %v621 = vsel %vm452, %v348, 0.0
        %v622 = vrot.slane %v621, 4
        %v623 = vadd.f32 %v621, %v622
        %v624 = vrot.slane %v623, 2
        %v625 = vadd.f32 %v623, %v624
        %v626 = vrot.slane %v625, 1
        %v627 = vadd.f32 %v625, %v626
        %v628 = vsel %vm452, %v349, 0.0
        %v629 = vrot.slane %v628, 4
        %v630 = vadd.f32 %v628, %v629
        %v631 = vrot.slane %v630, 2
        %v632 = vadd.f32 %v630, %v631
        %v633 = vrot.slane %v632, 1
        %v634 = vadd.f32 %v632, %v633
        %v635 = vsel %vm452, %v350, 0.0
        %v636 = vrot.slane %v635, 4
        %v637 = vadd.f32 %v635, %v636
        %v638 = vrot.slane %v637, 2
        %v639 = vadd.f32 %v637, %v638
        %v640 = vrot.slane %v639, 1
        %v641 = vadd.f32 %v639, %v640
        %v642 = vsel %vm452, %v351, 0.0
        %v643 = vrot.slane %v642, 4
        %v644 = vadd.f32 %v642, %v643
        %v645 = vrot.slane %v644, 2
        %v646 = vadd.f32 %v644, %v645
        %v647 = vrot.slane %v646, 1
        %v648 = vadd.f32 %v646, %v647
        %v649 = vsel %vm452, %v352, 0.0
        %v650 = vrot.slane %v649, 4
        %v651 = vadd.f32 %v649, %v650
        %v652 = vrot.slane %v651, 2
        %v653 = vadd.f32 %v651, %v652
        %v654 = vrot.slane %v653, 1
        %v655 = vadd.f32 %v653, %v654
        %v656 = vsel %vm452, %v353, 0.0
        %v657 = vrot.slane %v656, 4
        %v658 = vadd.f32 %v656, %v657
        %v659 = vrot.slane %v658, 2
        %v660 = vadd.f32 %v658, %v659
        %v661 = vrot.slane %v660, 1
        %v662 = vadd.f32 %v660, %v661
        %v663 = vsel %vm452, %v354, 0.0
        %v664 = vrot.slane %v663, 4
        %v665 = vadd.f32 %v663, %v664
        %v666 = vrot.slane %v665, 2
        %v667 = vadd.f32 %v665, %v666
        %v668 = vrot.slane %v667, 1
        %v669 = vadd.f32 %v667, %v668
        %v670 = vsel %vm452, %v355, 0.0
        %v671 = vrot.slane %v670, 4
        %v672 = vadd.f32 %v670, %v671
        %v673 = vrot.slane %v672, 2
        %v674 = vadd.f32 %v672, %v673
        %v675 = vrot.slane %v674, 1
        %v676 = vadd.f32 %v674, %v675
        %v677 = vsel %vm452, %v356, 0.0
        %v678 = vrot.slane %v677, 4
        %v679 = vadd.f32 %v677, %v678
        %v680 = vrot.slane %v679, 2
        %v681 = vadd.f32 %v679, %v680
        %v682 = vrot.slane %v681, 1
        %v683 = vadd.f32 %v681, %v682
        %v684 = vsel %vm452, %v357, 0.0
        %v685 = vrot.slane %v684, 4
        %v686 = vadd.f32 %v684, %v685
        %v687 = vrot.slane %v686, 2
        %v688 = vadd.f32 %v686, %v687
        %v689 = vrot.slane %v688, 1
        %v690 = vadd.f32 %v688, %v689
        %v691 = vsel %vm452, %v358, 0.0
        %v692 = vrot.slane %v691, 4
        %v693 = vadd.f32 %v691, %v692
        %v694 = vrot.slane %v693, 2
        %v695 = vadd.f32 %v693, %v694
        %v696 = vrot.slane %v695, 1
        %v697 = vadd.f32 %v695, %v696
        %v698 = vsel %vm452, %v359, 0.0
        %v699 = vrot.slane %v698, 4
        %v700 = vadd.f32 %v698, %v699
        %v701 = vrot.slane %v700, 2
        %v702 = vadd.f32 %v700, %v701
        %v703 = vrot.slane %v702, 1
        %v704 = vadd.f32 %v702, %v703
        %v705 = vsel %vm452, %v360, 0.0
        %v706 = vrot.slane %v705, 4
        %v707 = vadd.f32 %v705, %v706
        %v708 = vrot.slane %v707, 2
        %v709 = vadd.f32 %v707, %v708
        %v710 = vrot.slane %v709, 1
        %v711 = vadd.f32 %v709, %v710
        %v712 = vsel %vm452, %v361, 0.0
        %v713 = vrot.slane %v712, 4
        %v714 = vadd.f32 %v712, %v713
        %v715 = vrot.slane %v714, 2
        %v716 = vadd.f32 %v714, %v715
        %v717 = vrot.slane %v716, 1
        %v718 = vadd.f32 %v716, %v717
        %v719 = vsel %vm452, %v362, 0.0
        %v720 = vrot.slane %v719, 4
        %v721 = vadd.f32 %v719, %v720
        %v722 = vrot.slane %v721, 2
        %v723 = vadd.f32 %v721, %v722
        %v724 = vrot.slane %v723, 1
        %v725 = vadd.f32 %v723, %v724
        %v726 = vsel %vm452, %v363, 0.0
        %v727 = vrot.slane %v726, 4
        %v728 = vadd.f32 %v726, %v727
        %v729 = vrot.slane %v728, 2
        %v730 = vadd.f32 %v728, %v729
        %v731 = vrot.slane %v730, 1
        %v732 = vadd.f32 %v730, %v731
        %v733 = vsel %vm452, %v364, 0.0
        %v734 = vrot.slane %v733, 4
        %v735 = vadd.f32 %v733, %v734
        %v736 = vrot.slane %v735, 2
        %v737 = vadd.f32 %v735, %v736
        %v738 = vrot.slane %v737, 1
        %v739 = vadd.f32 %v737, %v738
        %v740 = vsel %vm452, %v365, 0.0
        %v741 = vrot.slane %v740, 4
        %v742 = vadd.f32 %v740, %v741
        %v743 = vrot.slane %v742, 2
        %v744 = vadd.f32 %v742, %v743
        %v745 = vrot.slane %v744, 1
        %v746 = vadd.f32 %v744, %v745
        %v747 = vsel %vm452, %v366, 0.0
        %v748 = vrot.slane %v747, 4
        %v749 = vadd.f32 %v747, %v748
        %v750 = vrot.slane %v749, 2
        %v751 = vadd.f32 %v749, %v750
        %v752 = vrot.slane %v751, 1
        %v753 = vadd.f32 %v751, %v752
        %v754 = vsel %vm452, %v367, 0.0
        %v755 = vrot.slane %v754, 4
        %v756 = vadd.f32 %v754, %v755
        %v757 = vrot.slane %v756, 2
        %v758 = vadd.f32 %v756, %v757
        %v759 = vrot.slane %v758, 1
        %v760 = vadd.f32 %v758, %v759
        %v761 = vsel %vm452, %v368, 0.0
        %v762 = vrot.slane %v761, 4
        %v763 = vadd.f32 %v761, %v762
        %v764 = vrot.slane %v763, 2
        %v765 = vadd.f32 %v763, %v764
        %v766 = vrot.slane %v765, 1
        %v767 = vadd.f32 %v765, %v766
        %v768 = vsel %vm452, %v369, 0.0
        %v769 = vrot.slane %v768, 4
        %v770 = vadd.f32 %v768, %v769
        %v771 = vrot.slane %v770, 2
        %v772 = vadd.f32 %v770, %v771
        %v773 = vrot.slane %v772, 1
        %v774 = vadd.f32 %v772, %v773
        %v775 = vsel %vm452, %v370, 0.0
        %v776 = vrot.slane %v775, 4
        %v777 = vadd.f32 %v775, %v776
        %v778 = vrot.slane %v777, 2
        %v779 = vadd.f32 %v777, %v778
        %v780 = vrot.slane %v779, 1
        %v781 = vadd.f32 %v779, %v780
        %v782 = vsel %vm452, %v371, 0.0
        %v783 = vrot.slane %v782, 4
        %v784 = vadd.f32 %v782, %v783
        %v785 = vrot.slane %v784, 2
        %v786 = vadd.f32 %v784, %v785
        %v787 = vrot.slane %v786, 1
        %v788 = vadd.f32 %v786, %v787
        %v789 = vsel %vm452, %v372, 0.0
        %v790 = vrot.slane %v789, 4
        %v791 = vadd.f32 %v789, %v790
        %v792 = vrot.slane %v791, 2
        %v793 = vadd.f32 %v791, %v792
        %v794 = vrot.slane %v793, 1
        %v795 = vadd.f32 %v793, %v794
        %v796 = vsel %vm452, %v373, 0.0
        %v797 = vrot.slane %v796, 4
        %v798 = vadd.f32 %v796, %v797
        %v799 = vrot.slane %v798, 2
        %v800 = vadd.f32 %v798, %v799
        %v801 = vrot.slane %v800, 1
        %v802 = vadd.f32 %v800, %v801
        %v803 = vsel %vm452, %v374, 0.0
        %v804 = vrot.slane %v803, 4
        %v805 = vadd.f32 %v803, %v804
        %v806 = vrot.slane %v805, 2
        %v807 = vadd.f32 %v805, %v806
        %v808 = vrot.slane %v807, 1
        %v809 = vadd.f32 %v807, %v808
        %v810 = vsel %vm452, %v375, 0.0
        %v811 = vrot.slane %v810, 4
        %v812 = vadd.f32 %v810, %v811
        %v813 = vrot.slane %v812, 2
        %v814 = vadd.f32 %v812, %v813
        %v815 = vrot.slane %v814, 1
        %v816 = vadd.f32 %v814, %v815
        %v817 = vsel %vm452, %v376, 0.0
        %v818 = vrot.slane %v817, 4
        %v819 = vadd.f32 %v817, %v818
        %v820 = vrot.slane %v819, 2
        %v821 = vadd.f32 %v819, %v820
        %v822 = vrot.slane %v821, 1
        %v823 = vadd.f32 %v821, %v822
        %v824 = vsel %vm452, %v377, 0.0
        %v825 = vrot.slane %v824, 4
        %v826 = vadd.f32 %v824, %v825
        %v827 = vrot.slane %v826, 2
        %v828 = vadd.f32 %v826, %v827
        %v829 = vrot.slane %v828, 1
        %v830 = vadd.f32 %v828, %v829
        %v831 = vsel %vm452, %v378, 0.0
        %v832 = vrot.slane %v831, 4
        %v833 = vadd.f32 %v831, %v832
        %v834 = vrot.slane %v833, 2
        %v835 = vadd.f32 %v833, %v834
        %v836 = vrot.slane %v835, 1
        %v837 = vadd.f32 %v835, %v836
        %v838 = vsel %vm452, %v379, 0.0
        %v839 = vrot.slane %v838, 4
        %v840 = vadd.f32 %v838, %v839
        %v841 = vrot.slane %v840, 2
        %v842 = vadd.f32 %v840, %v841
        %v843 = vrot.slane %v842, 1
        %v844 = vadd.f32 %v842, %v843
        %v845 = vsel %vm452, %v380, 0.0
        %v846 = vrot.slane %v845, 4
        %v847 = vadd.f32 %v845, %v846
        %v848 = vrot.slane %v847, 2
        %v849 = vadd.f32 %v847, %v848
        %v850 = vrot.slane %v849, 1
        %v851 = vadd.f32 %v849, %v850
        %v852 = vsel %vm452, %v381, 0.0
        %v853 = vrot.slane %v852, 4
        %v854 = vadd.f32 %v852, %v853
        %v855 = vrot.slane %v854, 2
        %v856 = vadd.f32 %v854, %v855
        %v857 = vrot.slane %v856, 1
        %v858 = vadd.f32 %v856, %v857
        %v859 = vsel %vm452, %v382, 0.0
        %v860 = vrot.slane %v859, 4
        %v861 = vadd.f32 %v859, %v860
        %v862 = vrot.slane %v861, 2
        %v863 = vadd.f32 %v861, %v862
        %v864 = vrot.slane %v863, 1
        %v865 = vadd.f32 %v863, %v864
        %v866 = vsel %vm452, %v383, 0.0
        %v867 = vrot.slane %v866, 4
        %v868 = vadd.f32 %v866, %v867
        %v869 = vrot.slane %v868, 2
        %v870 = vadd.f32 %v868, %v869
        %v871 = vrot.slane %v870, 1
        %v872 = vadd.f32 %v870, %v871
        %v873 = vsel %vm452, %v384, 0.0
        %v874 = vrot.slane %v873, 4
        %v875 = vadd.f32 %v873, %v874
        %v876 = vrot.slane %v875, 2
        %v877 = vadd.f32 %v875, %v876
        %v878 = vrot.slane %v877, 1
        %v879 = vadd.f32 %v877, %v878
        %v880 = vsel %vm452, %v385, 0.0
        %v881 = vrot.slane %v880, 4
        %v882 = vadd.f32 %v880, %v881
        %v883 = vrot.slane %v882, 2
        %v884 = vadd.f32 %v882, %v883
        %v885 = vrot.slane %v884, 1
        %v886 = vadd.f32 %v884, %v885
        %v887 = vsel %vm452, %v386, 0.0
        %v888 = vrot.slane %v887, 4
        %v889 = vadd.f32 %v887, %v888
        %v890 = vrot.slane %v889, 2
        %v891 = vadd.f32 %v889, %v890
        %v892 = vrot.slane %v891, 1
        %v893 = vadd.f32 %v891, %v892
        %v894 = vsel %vm452, %v387, 0.0
        %v895 = vrot.slane %v894, 4
        %v896 = vadd.f32 %v894, %v895
        %v897 = vrot.slane %v896, 2
        %v898 = vadd.f32 %v896, %v897
        %v899 = vrot.slane %v898, 1
        %v900 = vadd.f32 %v898, %v899
        %v901 = vsel %vm452, %v388, 0.0
        %v902 = vrot.slane %v901, 4
        %v903 = vadd.f32 %v901, %v902
        %v904 = vrot.slane %v903, 2
        %v905 = vadd.f32 %v903, %v904
        %v906 = vrot.slane %v905, 1
        %v907 = vadd.f32 %v905, %v906
        %v908 = vsel %vm452, %v389, 0.0
        %v909 = vrot.slane %v908, 4
        %v910 = vadd.f32 %v908, %v909
        %v911 = vrot.slane %v910, 2
        %v912 = vadd.f32 %v910, %v911
        %v913 = vrot.slane %v912, 1
        %v914 = vadd.f32 %v912, %v913
        %v915 = vsel %vm452, %v390, 0.0
        %v916 = vrot.slane %v915, 4
        %v917 = vadd.f32 %v915, %v916
        %v918 = vrot.slane %v917, 2
        %v919 = vadd.f32 %v917, %v918
        %v920 = vrot.slane %v919, 1
        %v921 = vadd.f32 %v919, %v920
        %v922 = vsel %vm452, %v391, 0.0
        %v923 = vrot.slane %v922, 4
        %v924 = vadd.f32 %v922, %v923
        %v925 = vrot.slane %v924, 2
        %v926 = vadd.f32 %v924, %v925
        %v927 = vrot.slane %v926, 1
        %v928 = vadd.f32 %v926, %v927
        %v929 = vsel %vm452, %v392, 0.0
        %v930 = vrot.slane %v929, 4
        %v931 = vadd.f32 %v929, %v930
        %v932 = vrot.slane %v931, 2
        %v933 = vadd.f32 %v931, %v932
        %v934 = vrot.slane %v933, 1
        %v935 = vadd.f32 %v933, %v934
        %v936 = vsel %vm452, %v393, 0.0
        %v937 = vrot.slane %v936, 4
        %v938 = vadd.f32 %v936, %v937
        %v939 = vrot.slane %v938, 2
        %v940 = vadd.f32 %v938, %v939
        %v941 = vrot.slane %v940, 1
        %v942 = vadd.f32 %v940, %v941
        %v943 = vsel %vm452, %v394, 0.0
        %v944 = vrot.slane %v943, 4
        %v945 = vadd.f32 %v943, %v944
        %v946 = vrot.slane %v945, 2
        %v947 = vadd.f32 %v945, %v946
        %v948 = vrot.slane %v947, 1
        %v949 = vadd.f32 %v947, %v948
        %v950 = vsel %vm452, %v395, 0.0
        %v951 = vrot.slane %v950, 4
        %v952 = vadd.f32 %v950, %v951
        %v953 = vrot.slane %v952, 2
        %v954 = vadd.f32 %v952, %v953
        %v955 = vrot.slane %v954, 1
        %v956 = vadd.f32 %v954, %v955
        %v957 = vsel %vm452, %v396, 0.0
        %v958 = vrot.slane %v957, 4
        %v959 = vadd.f32 %v957, %v958
        %v960 = vrot.slane %v959, 2
        %v961 = vadd.f32 %v959, %v960
        %v962 = vrot.slane %v961, 1
        %v963 = vadd.f32 %v961, %v962
        %v964 = vsel %vm452, %v397, 0.0
        %v965 = vrot.slane %v964, 4
        %v966 = vadd.f32 %v964, %v965
        %v967 = vrot.slane %v966, 2
        %v968 = vadd.f32 %v966, %v967
        %v969 = vrot.slane %v968, 1
        %v970 = vadd.f32 %v968, %v969
        %v971 = vsel %vm452, %v398, 0.0
        %v972 = vrot.slane %v971, 4
        %v973 = vadd.f32 %v971, %v972
        %v974 = vrot.slane %v973, 2
        %v975 = vadd.f32 %v973, %v974
        %v976 = vrot.slane %v975, 1
        %v977 = vadd.f32 %v975, %v976
        %v978 = vsel %vm452, %v399, 0.0
        %v979 = vrot.slane %v978, 4
        %v980 = vadd.f32 %v978, %v979
        %v981 = vrot.slane %v980, 2
        %v982 = vadd.f32 %v980, %v981
        %v983 = vrot.slane %v982, 1
        %v984 = vadd.f32 %v982, %v983
        %v985 = vsel %vm452, %v400, 0.0
        %v986 = vrot.slane %v985, 4
        %v987 = vadd.f32 %v985, %v986
        %v988 = vrot.slane %v987, 2
        %v989 = vadd.f32 %v987, %v988
        %v990 = vrot.slane %v989, 1
        %v991 = vadd.f32 %v989, %v990
        %v992 = vsel %vm452, %v401, 0.0
        %v993 = vrot.slane %v992, 4
        %v994 = vadd.f32 %v992, %v993
        %v995 = vrot.slane %v994, 2
        %v996 = vadd.f32 %v994, %v995
        %v997 = vrot.slane %v996, 1
        %v998 = vadd.f32 %v996, %v997
        %v999 = vsel %vm452, %v402, 0.0
        %v1000 = vrot.slane %v999, 4
        %v1001 = vadd.f32 %v999, %v1000
        %v1002 = vrot.slane %v1001, 2
        %v1003 = vadd.f32 %v1001, %v1002
        %v1004 = vrot.slane %v1003, 1
        %v1005 = vadd.f32 %v1003, %v1004
        %v1006 = vsel %vm452, %v403, 0.0
        %v1007 = vrot.slane %v1006, 4
        %v1008 = vadd.f32 %v1006, %v1007
        %v1009 = vrot.slane %v1008, 2
        %v1010 = vadd.f32 %v1008, %v1009
        %v1011 = vrot.slane %v1010, 1
        %v1012 = vadd.f32 %v1010, %v1011
        %v1013 = vsel %vm452, %v404, 0.0
        %v1014 = vrot.slane %v1013, 4
        %v1015 = vadd.f32 %v1013, %v1014
        %v1016 = vrot.slane %v1015, 2
        %v1017 = vadd.f32 %v1015, %v1016
        %v1018 = vrot.slane %v1017, 1
        %v1019 = vadd.f32 %v1017, %v1018
        %v1020 = vsel %vm452, %v405, 0.0
        %v1021 = vrot.slane %v1020, 4
        %v1022 = vadd.f32 %v1020, %v1021
        %v1023 = vrot.slane %v1022, 2
        %v1024 = vadd.f32 %v1022, %v1023
        %v1025 = vrot.slane %v1024, 1
        %v1026 = vadd.f32 %v1024, %v1025
        %v1027 = vsel %vm452, %v406, 0.0
        %v1028 = vrot.slane %v1027, 4
        %v1029 = vadd.f32 %v1027, %v1028
        %v1030 = vrot.slane %v1029, 2
        %v1031 = vadd.f32 %v1029, %v1030
        %v1032 = vrot.slane %v1031, 1
        %v1033 = vadd.f32 %v1031, %v1032
        %v1034 = vsel %vm452, %v407, 0.0
        %v1035 = vrot.slane %v1034, 4
        %v1036 = vadd.f32 %v1034, %v1035
        %v1037 = vrot.slane %v1036, 2
        %v1038 = vadd.f32 %v1036, %v1037
        %v1039 = vrot.slane %v1038, 1
        %v1040 = vadd.f32 %v1038, %v1039
        %v1041 = vsel %vm452, %v408, 0.0
        %v1042 = vrot.slane %v1041, 4
        %v1043 = vadd.f32 %v1041, %v1042
        %v1044 = vrot.slane %v1043, 2
        %v1045 = vadd.f32 %v1043, %v1044
        %v1046 = vrot.slane %v1045, 1
        %v1047 = vadd.f32 %v1045, %v1046
        %v1048 = vsel %vm452, %v409, 0.0
        %v1049 = vrot.slane %v1048, 4
        %v1050 = vadd.f32 %v1048, %v1049
        %v1051 = vrot.slane %v1050, 2
        %v1052 = vadd.f32 %v1050, %v1051
        %v1053 = vrot.slane %v1052, 1
        %v1054 = vadd.f32 %v1052, %v1053
        %v1055 = vsel %vm452, %v410, 0.0
        %v1056 = vrot.slane %v1055, 4
        %v1057 = vadd.f32 %v1055, %v1056
        %v1058 = vrot.slane %v1057, 2
        %v1059 = vadd.f32 %v1057, %v1058
        %v1060 = vrot.slane %v1059, 1
        %v1061 = vadd.f32 %v1059, %v1060
        %v1062 = vsel %vm452, %v411, 0.0
        %v1063 = vrot.slane %v1062, 4
        %v1064 = vadd.f32 %v1062, %v1063
        %v1065 = vrot.slane %v1064, 2
        %v1066 = vadd.f32 %v1064, %v1065
        %v1067 = vrot.slane %v1066, 1
        %v1068 = vadd.f32 %v1066, %v1067
        %v1069 = vsel %vm452, %v412, 0.0
        %v1070 = vrot.slane %v1069, 4
        %v1071 = vadd.f32 %v1069, %v1070
        %v1072 = vrot.slane %v1071, 2
        %v1073 = vadd.f32 %v1071, %v1072
        %v1074 = vrot.slane %v1073, 1
        %v1075 = vadd.f32 %v1073, %v1074
        %v1076 = vsel %vm452, %v413, 0.0
        %v1077 = vrot.slane %v1076, 4
        %v1078 = vadd.f32 %v1076, %v1077
        %v1079 = vrot.slane %v1078, 2
        %v1080 = vadd.f32 %v1078, %v1079
        %v1081 = vrot.slane %v1080, 1
        %v1082 = vadd.f32 %v1080, %v1081
        %v1083 = vsel %vm452, %v414, 0.0
        %v1084 = vrot.slane %v1083, 4
        %v1085 = vadd.f32 %v1083, %v1084
        %v1086 = vrot.slane %v1085, 2
        %v1087 = vadd.f32 %v1085, %v1086
        %v1088 = vrot.slane %v1087, 1
        %v1089 = vadd.f32 %v1087, %v1088
        %v1090 = vsel %vm452, %v415, 0.0
        %v1091 = vrot.slane %v1090, 4
        %v1092 = vadd.f32 %v1090, %v1091
        %v1093 = vrot.slane %v1092, 2
        %v1094 = vadd.f32 %v1092, %v1093
        %v1095 = vrot.slane %v1094, 1
        %v1096 = vadd.f32 %v1094, %v1095
        %v1097 = vsel %vm452, %v416, 0.0
        %v1098 = vrot.slane %v1097, 4
        %v1099 = vadd.f32 %v1097, %v1098
        %v1100 = vrot.slane %v1099, 2
        %v1101 = vadd.f32 %v1099, %v1100
        %v1102 = vrot.slane %v1101, 1
        %v1103 = vadd.f32 %v1101, %v1102
        %v1104 = vsel %vm452, %v417, 0.0
        %v1105 = vrot.slane %v1104, 4
        %v1106 = vadd.f32 %v1104, %v1105
        %v1107 = vrot.slane %v1106, 2
        %v1108 = vadd.f32 %v1106, %v1107
        %v1109 = vrot.slane %v1108, 1
        %v1110 = vadd.f32 %v1108, %v1109
        %v1111 = vsel %vm452, %v418, 0.0
        %v1112 = vrot.slane %v1111, 4
        %v1113 = vadd.f32 %v1111, %v1112
        %v1114 = vrot.slane %v1113, 2
        %v1115 = vadd.f32 %v1113, %v1114
        %v1116 = vrot.slane %v1115, 1
        %v1117 = vadd.f32 %v1115, %v1116
        %v1118 = vsel %vm452, %v419, 0.0
        %v1119 = vrot.slane %v1118, 4
        %v1120 = vadd.f32 %v1118, %v1119
        %v1121 = vrot.slane %v1120, 2
        %v1122 = vadd.f32 %v1120, %v1121
        %v1123 = vrot.slane %v1122, 1
        %v1124 = vadd.f32 %v1122, %v1123
        %v1125 = vsel %vm452, %v420, 0.0
        %v1126 = vrot.slane %v1125, 4
        %v1127 = vadd.f32 %v1125, %v1126
        %v1128 = vrot.slane %v1127, 2
        %v1129 = vadd.f32 %v1127, %v1128
        %v1130 = vrot.slane %v1129, 1
        %v1131 = vadd.f32 %v1129, %v1130
        %v1132 = vsel %vm452, %v421, 0.0
        %v1133 = vrot.slane %v1132, 4
        %v1134 = vadd.f32 %v1132, %v1133
        %v1135 = vrot.slane %v1134, 2
        %v1136 = vadd.f32 %v1134, %v1135
        %v1137 = vrot.slane %v1136, 1
        %v1138 = vadd.f32 %v1136, %v1137
        %v1139 = vsel %vm452, %v422, 0.0
        %v1140 = vrot.slane %v1139, 4
        %v1141 = vadd.f32 %v1139, %v1140
        %v1142 = vrot.slane %v1141, 2
        %v1143 = vadd.f32 %v1141, %v1142
        %v1144 = vrot.slane %v1143, 1
        %v1145 = vadd.f32 %v1143, %v1144
        %v1146 = vsel %vm452, %v423, 0.0
        %v1147 = vrot.slane %v1146, 4
        %v1148 = vadd.f32 %v1146, %v1147
        %v1149 = vrot.slane %v1148, 2
        %v1150 = vadd.f32 %v1148, %v1149
        %v1151 = vrot.slane %v1150, 1
        %v1152 = vadd.f32 %v1150, %v1151
        %v1153 = vsel %vm452, %v424, 0.0
        %v1154 = vrot.slane %v1153, 4
        %v1155 = vadd.f32 %v1153, %v1154
        %v1156 = vrot.slane %v1155, 2
        %v1157 = vadd.f32 %v1155, %v1156
        %v1158 = vrot.slane %v1157, 1
        %v1159 = vadd.f32 %v1157, %v1158
        %v1160 = vsel %vm452, %v425, 0.0
        %v1161 = vrot.slane %v1160, 4
        %v1162 = vadd.f32 %v1160, %v1161
        %v1163 = vrot.slane %v1162, 2
        %v1164 = vadd.f32 %v1162, %v1163
        %v1165 = vrot.slane %v1164, 1
        %v1166 = vadd.f32 %v1164, %v1165
        %v1167 = vsel %vm452, %v426, 0.0
        %v1168 = vrot.slane %v1167, 4
        %v1169 = vadd.f32 %v1167, %v1168
        %v1170 = vrot.slane %v1169, 2
        %v1171 = vadd.f32 %v1169, %v1170
        %v1172 = vrot.slane %v1171, 1
        %v1173 = vadd.f32 %v1171, %v1172
        %v1174 = vsel %vm452, %v427, 0.0
        %v1175 = vrot.slane %v1174, 4
        %v1176 = vadd.f32 %v1174, %v1175
        %v1177 = vrot.slane %v1176, 2
        %v1178 = vadd.f32 %v1176, %v1177
        %v1179 = vrot.slane %v1178, 1
        %v1180 = vadd.f32 %v1178, %v1179
        %v1181 = vsel %vm452, %v428, 0.0
        %v1182 = vrot.slane %v1181, 4
        %v1183 = vadd.f32 %v1181, %v1182
        %v1184 = vrot.slane %v1183, 2
        %v1185 = vadd.f32 %v1183, %v1184
        %v1186 = vrot.slane %v1185, 1
        %v1187 = vadd.f32 %v1185, %v1186
        %v1188 = vsel %vm452, %v429, 0.0
        %v1189 = vrot.slane %v1188, 4
        %v1190 = vadd.f32 %v1188, %v1189
        %v1191 = vrot.slane %v1190, 2
        %v1192 = vadd.f32 %v1190, %v1191
        %v1193 = vrot.slane %v1192, 1
        %v1194 = vadd.f32 %v1192, %v1193
        %v1195 = vsel %vm452, %v430, 0.0
        %v1196 = vrot.slane %v1195, 4
        %v1197 = vadd.f32 %v1195, %v1196
        %v1198 = vrot.slane %v1197, 2
        %v1199 = vadd.f32 %v1197, %v1198
        %v1200 = vrot.slane %v1199, 1
        %v1201 = vadd.f32 %v1199, %v1200
        %v1202 = vsel %vm452, %v431, 0.0
        %v1203 = vrot.slane %v1202, 4
        %v1204 = vadd.f32 %v1202, %v1203
        %v1205 = vrot.slane %v1204, 2
        %v1206 = vadd.f32 %v1204, %v1205
        %v1207 = vrot.slane %v1206, 1
        %v1208 = vadd.f32 %v1206, %v1207
        %v1209 = vsel %vm452, %v432, 0.0
        %v1210 = vrot.slane %v1209, 4
        %v1211 = vadd.f32 %v1209, %v1210
        %v1212 = vrot.slane %v1211, 2
        %v1213 = vadd.f32 %v1211, %v1212
        %v1214 = vrot.slane %v1213, 1
        %v1215 = vadd.f32 %v1213, %v1214
        %v1216 = vsel %vm452, %v433, 0.0
        %v1217 = vrot.slane %v1216, 4
        %v1218 = vadd.f32 %v1216, %v1217
        %v1219 = vrot.slane %v1218, 2
        %v1220 = vadd.f32 %v1218, %v1219
        %v1221 = vrot.slane %v1220, 1
        %v1222 = vadd.f32 %v1220, %v1221
        %v1223 = vsel %vm452, %v434, 0.0
        %v1224 = vrot.slane %v1223, 4
        %v1225 = vadd.f32 %v1223, %v1224
        %v1226 = vrot.slane %v1225, 2
        %v1227 = vadd.f32 %v1225, %v1226
        %v1228 = vrot.slane %v1227, 1
        %v1229 = vadd.f32 %v1227, %v1228
        %v1230 = vsel %vm452, %v435, 0.0
        %v1231 = vrot.slane %v1230, 4
        %v1232 = vadd.f32 %v1230, %v1231
        %v1233 = vrot.slane %v1232, 2
        %v1234 = vadd.f32 %v1232, %v1233
        %v1235 = vrot.slane %v1234, 1
        %v1236 = vadd.f32 %v1234, %v1235
        %v1237 = vsel %vm452, %v436, 0.0
        %v1238 = vrot.slane %v1237, 4
        %v1239 = vadd.f32 %v1237, %v1238
        %v1240 = vrot.slane %v1239, 2
        %v1241 = vadd.f32 %v1239, %v1240
        %v1242 = vrot.slane %v1241, 1
        %v1243 = vadd.f32 %v1241, %v1242
        %v1244 = vsel %vm452, %v437, 0.0
        %v1245 = vrot.slane %v1244, 4
        %v1246 = vadd.f32 %v1244, %v1245
        %v1247 = vrot.slane %v1246, 2
        %v1248 = vadd.f32 %v1246, %v1247
        %v1249 = vrot.slane %v1248, 1
        %v1250 = vadd.f32 %v1248, %v1249
        %v1251 = vsel %vm452, %v438, 0.0
        %v1252 = vrot.slane %v1251, 4
        %v1253 = vadd.f32 %v1251, %v1252
        %v1254 = vrot.slane %v1253, 2
        %v1255 = vadd.f32 %v1253, %v1254
        %v1256 = vrot.slane %v1255, 1
        %v1257 = vadd.f32 %v1255, %v1256
        %v1258 = vsel %vm452, %v439, 0.0
        %v1259 = vrot.slane %v1258, 4
        %v1260 = vadd.f32 %v1258, %v1259
        %v1261 = vrot.slane %v1260, 2
        %v1262 = vadd.f32 %v1260, %v1261
        %v1263 = vrot.slane %v1262, 1
        %v1264 = vadd.f32 %v1262, %v1263
        %v1265 = vsel %vm452, %v440, 0.0
        %v1266 = vrot.slane %v1265, 4
        %v1267 = vadd.f32 %v1265, %v1266
        %v1268 = vrot.slane %v1267, 2
        %v1269 = vadd.f32 %v1267, %v1268
        %v1270 = vrot.slane %v1269, 1
        %v1271 = vadd.f32 %v1269, %v1270
        %v1272 = vsel %vm452, %v441, 0.0
        %v1273 = vrot.slane %v1272, 4
        %v1274 = vadd.f32 %v1272, %v1273
        %v1275 = vrot.slane %v1274, 2
        %v1276 = vadd.f32 %v1274, %v1275
        %v1277 = vrot.slane %v1276, 1
        %v1278 = vadd.f32 %v1276, %v1277
        %v1279 = vsel %vm452, %v442, 0.0
        %v1280 = vrot.slane %v1279, 4
        %v1281 = vadd.f32 %v1279, %v1280
        %v1282 = vrot.slane %v1281, 2
        %v1283 = vadd.f32 %v1281, %v1282
        %v1284 = vrot.slane %v1283, 1
        %v1285 = vadd.f32 %v1283, %v1284
        %v1286 = vsel %vm452, %v443, 0.0
        %v1287 = vrot.slane %v1286, 4
        %v1288 = vadd.f32 %v1286, %v1287
        %v1289 = vrot.slane %v1288, 2
        %v1290 = vadd.f32 %v1288, %v1289
        %v1291 = vrot.slane %v1290, 1
        %v1292 = vadd.f32 %v1290, %v1291
        %v1293 = vsel %vm452, %v444, 0.0
        %v1294 = vrot.slane %v1293, 4
        %v1295 = vadd.f32 %v1293, %v1294
        %v1296 = vrot.slane %v1295, 2
        %v1297 = vadd.f32 %v1295, %v1296
        %v1298 = vrot.slane %v1297, 1
        %v1299 = vadd.f32 %v1297, %v1298
        %v1300 = vsel %vm452, %v445, 0.0
        %v1301 = vrot.slane %v1300, 4
        %v1302 = vadd.f32 %v1300, %v1301
        %v1303 = vrot.slane %v1302, 2
        %v1304 = vadd.f32 %v1302, %v1303
        %v1305 = vrot.slane %v1304, 1
        %v1306 = vadd.f32 %v1304, %v1305
        %v1307 = vsel %vm452, %v446, 0.0
        %v1308 = vrot.slane %v1307, 4
        %v1309 = vadd.f32 %v1307, %v1308
        %v1310 = vrot.slane %v1309, 2
        %v1311 = vadd.f32 %v1309, %v1310
        %v1312 = vrot.slane %v1311, 1
        %v1313 = vadd.f32 %v1311, %v1312
        %v1314 = vsel %vm452, %v447, 0.0
        %v1315 = vrot.slane %v1314, 4
        %v1316 = vadd.f32 %v1314, %v1315
        %v1317 = vrot.slane %v1316, 2
        %v1318 = vadd.f32 %v1316, %v1317
        %v1319 = vrot.slane %v1318, 1
        %v1320 = vadd.f32 %v1318, %v1319
        %v1321 = vsel %vm452, %v448, 0.0
        %v1322 = vrot.slane %v1321, 4
        %v1323 = vadd.f32 %v1321, %v1322
        %v1324 = vrot.slane %v1323, 2
        %v1325 = vadd.f32 %v1323, %v1324
        %v1326 = vrot.slane %v1325, 1
        %v1327 = vadd.f32 %v1325, %v1326
        %v1328 = vsel %vm452, %v449, 0.0
        %v1329 = vrot.slane %v1328, 4
        %v1330 = vadd.f32 %v1328, %v1329
        %v1331 = vrot.slane %v1330, 2
        %v1332 = vadd.f32 %v1330, %v1331
        %v1333 = vrot.slane %v1332, 1
        %v1334 = vadd.f32 %v1332, %v1333
        %v1335 = vsel %vm452, %v450, 0.0
        %v1336 = vrot.slane %v1335, 4
        %v1337 = vadd.f32 %v1335, %v1336
        %v1338 = vrot.slane %v1337, 2
        %v1339 = vadd.f32 %v1337, %v1338
        %v1340 = vrot.slane %v1339, 1
        %v1341 = vadd.f32 %v1339, %v1340
        %v1342 = vsel %vm452, %v451, 0.0
        %v1343 = vrot.slane %v1342, 4
        %v1344 = vadd.f32 %v1342, %v1343
        %v1345 = vrot.slane %v1344, 2
        %v1346 = vadd.f32 %v1344, %v1345
        %v1347 = vrot.slane %v1346, 1
        %v1348 = vadd.f32 %v1346, %v1347
        %v1349 = vld [vmem:[%s315] sm:$0xff]
        %v1350 = vld [vmem:[%s315 + $0x8] sm:$0xff]
        %v1351 = vld [vmem:[%s315 + $0x10] sm:$0xff]
        %v1352 = vld [vmem:[%s315 + $0x18] sm:$0xff]
        %v1353 = vld [vmem:[%s315 + $0x20] sm:$0xff]
        %v1354 = vld [vmem:[%s315 + $0x28] sm:$0xff]
        %v1355 = vld [vmem:[%s315 + $0x30] sm:$0xff]
        %v1356 = vld [vmem:[%s315 + $0x38] sm:$0xff]
        %v1357 = vld [vmem:[%s315 + $0x40] sm:$0xff]
        %v1358 = vld [vmem:[%s315 + $0x48] sm:$0xff]
        %v1359 = vld [vmem:[%s315 + $0x50] sm:$0xff]
        %v1360 = vld [vmem:[%s315 + $0x58] sm:$0xff]
        %v1361 = vld [vmem:[%s315 + $0x60] sm:$0xff]
        %v1362 = vld [vmem:[%s315 + $0x68] sm:$0xff]
        %v1363 = vld [vmem:[%s315 + $0x70] sm:$0xff]
        %v1364 = vld [vmem:[%s315 + $0x78] sm:$0xff]
        %v1365 = vld [vmem:[%s315 + $0x80] sm:$0xff]
        %v1366 = vld [vmem:[%s315 + $0x88] sm:$0xff]
        %v1367 = vld [vmem:[%s315 + $0x90] sm:$0xff]
        %v1368 = vld [vmem:[%s315 + $0x98] sm:$0xff]
        %v1369 = vld [vmem:[%s315 + $0xa0] sm:$0xff]
        %v1370 = vld [vmem:[%s315 + $0xa8] sm:$0xff]
        %v1371 = vld [vmem:[%s315 + $0xb0] sm:$0xff]
        %v1372 = vld [vmem:[%s315 + $0xb8] sm:$0xff]
        %v1373 = vld [vmem:[%s315 + $0xc0] sm:$0xff]
        %v1374 = vld [vmem:[%s315 + $0xc8] sm:$0xff]
        %v1375 = vld [vmem:[%s315 + $0xd0] sm:$0xff]
        %v1376 = vld [vmem:[%s315 + $0xd8] sm:$0xff]
        %v1377 = vld [vmem:[%s315 + $0xe0] sm:$0xff]
        %v1378 = vld [vmem:[%s315 + $0xe8] sm:$0xff]
        %v1379 = vld [vmem:[%s315 + $0xf0] sm:$0xff]
        %v1380 = vld [vmem:[%s315 + $0xf8] sm:$0xff]
        %v1381 = vld [vmem:[%s315 + $0x100] sm:$0xff]
        %v1382 = vld [vmem:[%s315 + $0x108] sm:$0xff]
        %v1383 = vld [vmem:[%s315 + $0x110] sm:$0xff]
        %v1384 = vld [vmem:[%s315 + $0x118] sm:$0xff]
        %v1385 = vld [vmem:[%s315 + $0x120] sm:$0xff]
        %v1386 = vld [vmem:[%s315 + $0x128] sm:$0xff]
        %v1387 = vld [vmem:[%s315 + $0x130] sm:$0xff]
        %v1388 = vld [vmem:[%s315 + $0x138] sm:$0xff]
        %v1389 = vld [vmem:[%s315 + $0x140] sm:$0xff]
        %v1390 = vld [vmem:[%s315 + $0x148] sm:$0xff]
        %v1391 = vld [vmem:[%s315 + $0x150] sm:$0xff]
        %v1392 = vld [vmem:[%s315 + $0x158] sm:$0xff]
        %v1393 = vld [vmem:[%s315 + $0x160] sm:$0xff]
        %v1394 = vld [vmem:[%s315 + $0x168] sm:$0xff]
        %v1395 = vld [vmem:[%s315 + $0x170] sm:$0xff]
        %v1396 = vld [vmem:[%s315 + $0x178] sm:$0xff]
        %v1397 = vld [vmem:[%s315 + $0x180] sm:$0xff]
        %v1398 = vld [vmem:[%s315 + $0x188] sm:$0xff]
        %v1399 = vld [vmem:[%s315 + $0x190] sm:$0xff]
        %v1400 = vld [vmem:[%s315 + $0x198] sm:$0xff]
        %v1401 = vld [vmem:[%s315 + $0x1a0] sm:$0xff]
        %v1402 = vld [vmem:[%s315 + $0x1a8] sm:$0xff]
        %v1403 = vld [vmem:[%s315 + $0x1b0] sm:$0xff]
        %v1404 = vld [vmem:[%s315 + $0x1b8] sm:$0xff]
        %v1405 = vld [vmem:[%s315 + $0x1c0] sm:$0xff]
        %v1406 = vld [vmem:[%s315 + $0x1c8] sm:$0xff]
        %v1407 = vld [vmem:[%s315 + $0x1d0] sm:$0xff]
        %v1408 = vld [vmem:[%s315 + $0x1d8] sm:$0xff]
        %v1409 = vld [vmem:[%s315 + $0x1e0] sm:$0xff]
        %v1410 = vld [vmem:[%s315 + $0x1e8] sm:$0xff]
        %v1411 = vld [vmem:[%s315 + $0x1f0] sm:$0xff]
        %v1412 = vld [vmem:[%s315 + $0x1f8] sm:$0xff]
        %v1413 = vld [vmem:[%s315 + $0x200] sm:$0xff]
        %v1414 = vld [vmem:[%s315 + $0x208] sm:$0xff]
        %v1415 = vld [vmem:[%s315 + $0x210] sm:$0xff]
        %v1416 = vld [vmem:[%s315 + $0x218] sm:$0xff]
        %v1417 = vld [vmem:[%s315 + $0x220] sm:$0xff]
        %v1418 = vld [vmem:[%s315 + $0x228] sm:$0xff]
        %v1419 = vld [vmem:[%s315 + $0x230] sm:$0xff]
        %v1420 = vld [vmem:[%s315 + $0x238] sm:$0xff]
        %v1421 = vld [vmem:[%s315 + $0x240] sm:$0xff]
        %v1422 = vld [vmem:[%s315 + $0x248] sm:$0xff]
        %v1423 = vld [vmem:[%s315 + $0x250] sm:$0xff]
        %v1424 = vld [vmem:[%s315 + $0x258] sm:$0xff]
        %v1425 = vld [vmem:[%s315 + $0x260] sm:$0xff]
        %v1426 = vld [vmem:[%s315 + $0x268] sm:$0xff]
        %v1427 = vld [vmem:[%s315 + $0x270] sm:$0xff]
        %v1428 = vld [vmem:[%s315 + $0x278] sm:$0xff]
        %v1429 = vld [vmem:[%s315 + $0x280] sm:$0xff]
        %v1430 = vld [vmem:[%s315 + $0x288] sm:$0xff]
        %v1431 = vld [vmem:[%s315 + $0x290] sm:$0xff]
        %v1432 = vld [vmem:[%s315 + $0x298] sm:$0xff]
        %v1433 = vld [vmem:[%s315 + $0x2a0] sm:$0xff]
        %v1434 = vld [vmem:[%s315 + $0x2a8] sm:$0xff]
        %v1435 = vld [vmem:[%s315 + $0x2b0] sm:$0xff]
        %v1436 = vld [vmem:[%s315 + $0x2b8] sm:$0xff]
        %v1437 = vld [vmem:[%s315 + $0x2c0] sm:$0xff]
        %v1438 = vld [vmem:[%s315 + $0x2c8] sm:$0xff]
        %v1439 = vld [vmem:[%s315 + $0x2d0] sm:$0xff]
        %v1440 = vld [vmem:[%s315 + $0x2d8] sm:$0xff]
        %v1441 = vld [vmem:[%s315 + $0x2e0] sm:$0xff]
        %v1442 = vld [vmem:[%s315 + $0x2e8] sm:$0xff]
        %v1443 = vld [vmem:[%s315 + $0x2f0] sm:$0xff]
        %v1444 = vld [vmem:[%s315 + $0x2f8] sm:$0xff]
        %v1445 = vld [vmem:[%s315 + $0x300] sm:$0xff]
        %v1446 = vld [vmem:[%s315 + $0x308] sm:$0xff]
        %v1447 = vld [vmem:[%s315 + $0x310] sm:$0xff]
        %v1448 = vld [vmem:[%s315 + $0x318] sm:$0xff]
        %v1449 = vld [vmem:[%s315 + $0x320] sm:$0xff]
        %v1450 = vld [vmem:[%s315 + $0x328] sm:$0xff]
        %v1451 = vld [vmem:[%s315 + $0x330] sm:$0xff]
        %v1452 = vld [vmem:[%s315 + $0x338] sm:$0xff]
        %v1453 = vld [vmem:[%s315 + $0x340] sm:$0xff]
        %v1454 = vld [vmem:[%s315 + $0x348] sm:$0xff]
        %v1455 = vld [vmem:[%s315 + $0x350] sm:$0xff]
        %v1456 = vld [vmem:[%s315 + $0x358] sm:$0xff]
        %v1457 = vld [vmem:[%s315 + $0x360] sm:$0xff]
        %v1458 = vld [vmem:[%s315 + $0x368] sm:$0xff]
        %v1459 = vld [vmem:[%s315 + $0x370] sm:$0xff]
        %v1460 = vld [vmem:[%s315 + $0x378] sm:$0xff]
        %v1461 = vld [vmem:[%s315 + $0x380] sm:$0xff]
        %v1462 = vld [vmem:[%s315 + $0x388] sm:$0xff]
        %v1463 = vld [vmem:[%s315 + $0x390] sm:$0xff]
        %v1464 = vld [vmem:[%s315 + $0x398] sm:$0xff]
        %v1465 = vld [vmem:[%s315 + $0x3a0] sm:$0xff]
        %v1466 = vld [vmem:[%s315 + $0x3a8] sm:$0xff]
        %v1467 = vld [vmem:[%s315 + $0x3b0] sm:$0xff]
        %v1468 = vld [vmem:[%s315 + $0x3b8] sm:$0xff]
        %v1469 = vld [vmem:[%s315 + $0x3c0] sm:$0xff]
        %v1470 = vld [vmem:[%s315 + $0x3c8] sm:$0xff]
        %v1471 = vld [vmem:[%s315 + $0x3d0] sm:$0xff]
        %v1472 = vld [vmem:[%s315 + $0x3d8] sm:$0xff]
        %v1473 = vld [vmem:[%s315 + $0x3e0] sm:$0xff]
        %v1474 = vld [vmem:[%s315 + $0x3e8] sm:$0xff]
        %v1475 = vld [vmem:[%s315 + $0x3f0] sm:$0xff]
        %v1476 = vld [vmem:[%s315 + $0x3f8] sm:$0xff]
        %v1477 = vsel %vm452, %v1349, 0.0
        %v1478 = vrot.slane %v1477, 4
        %v1479 = vadd.f32 %v1477, %v1478
        %v1480 = vrot.slane %v1479, 2
        %v1481 = vadd.f32 %v1479, %v1480
        %v1482 = vrot.slane %v1481, 1
        %v1483 = vadd.f32 %v1481, %v1482
        %v1484 = vsel %vm452, %v1350, 0.0
        %v1485 = vrot.slane %v1484, 4
        %v1486 = vadd.f32 %v1484, %v1485
        %v1487 = vrot.slane %v1486, 2
        %v1488 = vadd.f32 %v1486, %v1487
        %v1489 = vrot.slane %v1488, 1
        %v1490 = vadd.f32 %v1488, %v1489
        %v1491 = vsel %vm452, %v1351, 0.0
        %v1492 = vrot.slane %v1491, 4
        %v1493 = vadd.f32 %v1491, %v1492
        %v1494 = vrot.slane %v1493, 2
        %v1495 = vadd.f32 %v1493, %v1494
        %v1496 = vrot.slane %v1495, 1
        %v1497 = vadd.f32 %v1495, %v1496
        %v1498 = vsel %vm452, %v1352, 0.0
        %v1499 = vrot.slane %v1498, 4
        %v1500 = vadd.f32 %v1498, %v1499
        %v1501 = vrot.slane %v1500, 2
        %v1502 = vadd.f32 %v1500, %v1501
        %v1503 = vrot.slane %v1502, 1
        %v1504 = vadd.f32 %v1502, %v1503
        %v1505 = vsel %vm452, %v1353, 0.0
        %v1506 = vrot.slane %v1505, 4
        %v1507 = vadd.f32 %v1505, %v1506
        %v1508 = vrot.slane %v1507, 2
        %v1509 = vadd.f32 %v1507, %v1508
        %v1510 = vrot.slane %v1509, 1
        %v1511 = vadd.f32 %v1509, %v1510
        %v1512 = vsel %vm452, %v1354, 0.0
        %v1513 = vrot.slane %v1512, 4
        %v1514 = vadd.f32 %v1512, %v1513
        %v1515 = vrot.slane %v1514, 2
        %v1516 = vadd.f32 %v1514, %v1515
        %v1517 = vrot.slane %v1516, 1
        %v1518 = vadd.f32 %v1516, %v1517
        %v1519 = vsel %vm452, %v1355, 0.0
        %v1520 = vrot.slane %v1519, 4
        %v1521 = vadd.f32 %v1519, %v1520
        %v1522 = vrot.slane %v1521, 2
        %v1523 = vadd.f32 %v1521, %v1522
        %v1524 = vrot.slane %v1523, 1
        %v1525 = vadd.f32 %v1523, %v1524
        %v1526 = vsel %vm452, %v1356, 0.0
        %v1527 = vrot.slane %v1526, 4
        %v1528 = vadd.f32 %v1526, %v1527
        %v1529 = vrot.slane %v1528, 2
        %v1530 = vadd.f32 %v1528, %v1529
        %v1531 = vrot.slane %v1530, 1
        %v1532 = vadd.f32 %v1530, %v1531
        %v1533 = vsel %vm452, %v1357, 0.0
        %v1534 = vrot.slane %v1533, 4
        %v1535 = vadd.f32 %v1533, %v1534
        %v1536 = vrot.slane %v1535, 2
        %v1537 = vadd.f32 %v1535, %v1536
        %v1538 = vrot.slane %v1537, 1
        %v1539 = vadd.f32 %v1537, %v1538
        %v1540 = vsel %vm452, %v1358, 0.0
        %v1541 = vrot.slane %v1540, 4
        %v1542 = vadd.f32 %v1540, %v1541
        %v1543 = vrot.slane %v1542, 2
        %v1544 = vadd.f32 %v1542, %v1543
        %v1545 = vrot.slane %v1544, 1
        %v1546 = vadd.f32 %v1544, %v1545
        %v1547 = vsel %vm452, %v1359, 0.0
        %v1548 = vrot.slane %v1547, 4
        %v1549 = vadd.f32 %v1547, %v1548
        %v1550 = vrot.slane %v1549, 2
        %v1551 = vadd.f32 %v1549, %v1550
        %v1552 = vrot.slane %v1551, 1
        %v1553 = vadd.f32 %v1551, %v1552
        %v1554 = vsel %vm452, %v1360, 0.0
        %v1555 = vrot.slane %v1554, 4
        %v1556 = vadd.f32 %v1554, %v1555
        %v1557 = vrot.slane %v1556, 2
        %v1558 = vadd.f32 %v1556, %v1557
        %v1559 = vrot.slane %v1558, 1
        %v1560 = vadd.f32 %v1558, %v1559
        %v1561 = vsel %vm452, %v1361, 0.0
        %v1562 = vrot.slane %v1561, 4
        %v1563 = vadd.f32 %v1561, %v1562
        %v1564 = vrot.slane %v1563, 2
        %v1565 = vadd.f32 %v1563, %v1564
        %v1566 = vrot.slane %v1565, 1
        %v1567 = vadd.f32 %v1565, %v1566
        %v1568 = vsel %vm452, %v1362, 0.0
        %v1569 = vrot.slane %v1568, 4
        %v1570 = vadd.f32 %v1568, %v1569
        %v1571 = vrot.slane %v1570, 2
        %v1572 = vadd.f32 %v1570, %v1571
        %v1573 = vrot.slane %v1572, 1
        %v1574 = vadd.f32 %v1572, %v1573
        %v1575 = vsel %vm452, %v1363, 0.0
        %v1576 = vrot.slane %v1575, 4
        %v1577 = vadd.f32 %v1575, %v1576
        %v1578 = vrot.slane %v1577, 2
        %v1579 = vadd.f32 %v1577, %v1578
        %v1580 = vrot.slane %v1579, 1
        %v1581 = vadd.f32 %v1579, %v1580
        %v1582 = vsel %vm452, %v1364, 0.0
        %v1583 = vrot.slane %v1582, 4
        %v1584 = vadd.f32 %v1582, %v1583
        %v1585 = vrot.slane %v1584, 2
        %v1586 = vadd.f32 %v1584, %v1585
        %v1587 = vrot.slane %v1586, 1
        %v1588 = vadd.f32 %v1586, %v1587
        %v1589 = vsel %vm452, %v1365, 0.0
        %v1590 = vrot.slane %v1589, 4
        %v1591 = vadd.f32 %v1589, %v1590
        %v1592 = vrot.slane %v1591, 2
        %v1593 = vadd.f32 %v1591, %v1592
        %v1594 = vrot.slane %v1593, 1
        %v1595 = vadd.f32 %v1593, %v1594
        %v1596 = vsel %vm452, %v1366, 0.0
        %v1597 = vrot.slane %v1596, 4
        %v1598 = vadd.f32 %v1596, %v1597
        %v1599 = vrot.slane %v1598, 2
        %v1600 = vadd.f32 %v1598, %v1599
        %v1601 = vrot.slane %v1600, 1
        %v1602 = vadd.f32 %v1600, %v1601
        %v1603 = vsel %vm452, %v1367, 0.0
        %v1604 = vrot.slane %v1603, 4
        %v1605 = vadd.f32 %v1603, %v1604
        %v1606 = vrot.slane %v1605, 2
        %v1607 = vadd.f32 %v1605, %v1606
        %v1608 = vrot.slane %v1607, 1
        %v1609 = vadd.f32 %v1607, %v1608
        %v1610 = vsel %vm452, %v1368, 0.0
        %v1611 = vrot.slane %v1610, 4
        %v1612 = vadd.f32 %v1610, %v1611
        %v1613 = vrot.slane %v1612, 2
        %v1614 = vadd.f32 %v1612, %v1613
        %v1615 = vrot.slane %v1614, 1
        %v1616 = vadd.f32 %v1614, %v1615
        %v1617 = vsel %vm452, %v1369, 0.0
        %v1618 = vrot.slane %v1617, 4
        %v1619 = vadd.f32 %v1617, %v1618
        %v1620 = vrot.slane %v1619, 2
        %v1621 = vadd.f32 %v1619, %v1620
        %v1622 = vrot.slane %v1621, 1
        %v1623 = vadd.f32 %v1621, %v1622
        %v1624 = vsel %vm452, %v1370, 0.0
        %v1625 = vrot.slane %v1624, 4
        %v1626 = vadd.f32 %v1624, %v1625
        %v1627 = vrot.slane %v1626, 2
        %v1628 = vadd.f32 %v1626, %v1627
        %v1629 = vrot.slane %v1628, 1
        %v1630 = vadd.f32 %v1628, %v1629
        %v1631 = vsel %vm452, %v1371, 0.0
        %v1632 = vrot.slane %v1631, 4
        %v1633 = vadd.f32 %v1631, %v1632
        %v1634 = vrot.slane %v1633, 2
        %v1635 = vadd.f32 %v1633, %v1634
        %v1636 = vrot.slane %v1635, 1
        %v1637 = vadd.f32 %v1635, %v1636
        %v1638 = vsel %vm452, %v1372, 0.0
        %v1639 = vrot.slane %v1638, 4
        %v1640 = vadd.f32 %v1638, %v1639
        %v1641 = vrot.slane %v1640, 2
        %v1642 = vadd.f32 %v1640, %v1641
        %v1643 = vrot.slane %v1642, 1
        %v1644 = vadd.f32 %v1642, %v1643
        %v1645 = vsel %vm452, %v1373, 0.0
        %v1646 = vrot.slane %v1645, 4
        %v1647 = vadd.f32 %v1645, %v1646
        %v1648 = vrot.slane %v1647, 2
        %v1649 = vadd.f32 %v1647, %v1648
        %v1650 = vrot.slane %v1649, 1
        %v1651 = vadd.f32 %v1649, %v1650
        %v1652 = vsel %vm452, %v1374, 0.0
        %v1653 = vrot.slane %v1652, 4
        %v1654 = vadd.f32 %v1652, %v1653
        %v1655 = vrot.slane %v1654, 2
        %v1656 = vadd.f32 %v1654, %v1655
        %v1657 = vrot.slane %v1656, 1
        %v1658 = vadd.f32 %v1656, %v1657
        %v1659 = vsel %vm452, %v1375, 0.0
        %v1660 = vrot.slane %v1659, 4
        %v1661 = vadd.f32 %v1659, %v1660
        %v1662 = vrot.slane %v1661, 2
        %v1663 = vadd.f32 %v1661, %v1662
        %v1664 = vrot.slane %v1663, 1
        %v1665 = vadd.f32 %v1663, %v1664
        %v1666 = vsel %vm452, %v1376, 0.0
        %v1667 = vrot.slane %v1666, 4
        %v1668 = vadd.f32 %v1666, %v1667
        %v1669 = vrot.slane %v1668, 2
        %v1670 = vadd.f32 %v1668, %v1669
        %v1671 = vrot.slane %v1670, 1
        %v1672 = vadd.f32 %v1670, %v1671
        %v1673 = vsel %vm452, %v1377, 0.0
        %v1674 = vrot.slane %v1673, 4
        %v1675 = vadd.f32 %v1673, %v1674
        %v1676 = vrot.slane %v1675, 2
        %v1677 = vadd.f32 %v1675, %v1676
        %v1678 = vrot.slane %v1677, 1
        %v1679 = vadd.f32 %v1677, %v1678
        %v1680 = vsel %vm452, %v1378, 0.0
        %v1681 = vrot.slane %v1680, 4
        %v1682 = vadd.f32 %v1680, %v1681
        %v1683 = vrot.slane %v1682, 2
        %v1684 = vadd.f32 %v1682, %v1683
        %v1685 = vrot.slane %v1684, 1
        %v1686 = vadd.f32 %v1684, %v1685
        %v1687 = vsel %vm452, %v1379, 0.0
        %v1688 = vrot.slane %v1687, 4
        %v1689 = vadd.f32 %v1687, %v1688
        %v1690 = vrot.slane %v1689, 2
        %v1691 = vadd.f32 %v1689, %v1690
        %v1692 = vrot.slane %v1691, 1
        %v1693 = vadd.f32 %v1691, %v1692
        %v1694 = vsel %vm452, %v1380, 0.0
        %v1695 = vrot.slane %v1694, 4
        %v1696 = vadd.f32 %v1694, %v1695
        %v1697 = vrot.slane %v1696, 2
        %v1698 = vadd.f32 %v1696, %v1697
        %v1699 = vrot.slane %v1698, 1
        %v1700 = vadd.f32 %v1698, %v1699
        %v1701 = vsel %vm452, %v1381, 0.0
        %v1702 = vrot.slane %v1701, 4
        %v1703 = vadd.f32 %v1701, %v1702
        %v1704 = vrot.slane %v1703, 2
        %v1705 = vadd.f32 %v1703, %v1704
        %v1706 = vrot.slane %v1705, 1
        %v1707 = vadd.f32 %v1705, %v1706
        %v1708 = vsel %vm452, %v1382, 0.0
        %v1709 = vrot.slane %v1708, 4
        %v1710 = vadd.f32 %v1708, %v1709
        %v1711 = vrot.slane %v1710, 2
        %v1712 = vadd.f32 %v1710, %v1711
        %v1713 = vrot.slane %v1712, 1
        %v1714 = vadd.f32 %v1712, %v1713
        %v1715 = vsel %vm452, %v1383, 0.0
        %v1716 = vrot.slane %v1715, 4
        %v1717 = vadd.f32 %v1715, %v1716
        %v1718 = vrot.slane %v1717, 2
        %v1719 = vadd.f32 %v1717, %v1718
        %v1720 = vrot.slane %v1719, 1
        %v1721 = vadd.f32 %v1719, %v1720
        %v1722 = vsel %vm452, %v1384, 0.0
        %v1723 = vrot.slane %v1722, 4
        %v1724 = vadd.f32 %v1722, %v1723
        %v1725 = vrot.slane %v1724, 2
        %v1726 = vadd.f32 %v1724, %v1725
        %v1727 = vrot.slane %v1726, 1
        %v1728 = vadd.f32 %v1726, %v1727
        %v1729 = vsel %vm452, %v1385, 0.0
        %v1730 = vrot.slane %v1729, 4
        %v1731 = vadd.f32 %v1729, %v1730
        %v1732 = vrot.slane %v1731, 2
        %v1733 = vadd.f32 %v1731, %v1732
        %v1734 = vrot.slane %v1733, 1
        %v1735 = vadd.f32 %v1733, %v1734
        %v1736 = vsel %vm452, %v1386, 0.0
        %v1737 = vrot.slane %v1736, 4
        %v1738 = vadd.f32 %v1736, %v1737
        %v1739 = vrot.slane %v1738, 2
        %v1740 = vadd.f32 %v1738, %v1739
        %v1741 = vrot.slane %v1740, 1
        %v1742 = vadd.f32 %v1740, %v1741
        %v1743 = vsel %vm452, %v1387, 0.0
        %v1744 = vrot.slane %v1743, 4
        %v1745 = vadd.f32 %v1743, %v1744
        %v1746 = vrot.slane %v1745, 2
        %v1747 = vadd.f32 %v1745, %v1746
        %v1748 = vrot.slane %v1747, 1
        %v1749 = vadd.f32 %v1747, %v1748
        %v1750 = vsel %vm452, %v1388, 0.0
        %v1751 = vrot.slane %v1750, 4
        %v1752 = vadd.f32 %v1750, %v1751
        %v1753 = vrot.slane %v1752, 2
        %v1754 = vadd.f32 %v1752, %v1753
        %v1755 = vrot.slane %v1754, 1
        %v1756 = vadd.f32 %v1754, %v1755
        %v1757 = vsel %vm452, %v1389, 0.0
        %v1758 = vrot.slane %v1757, 4
        %v1759 = vadd.f32 %v1757, %v1758
        %v1760 = vrot.slane %v1759, 2
        %v1761 = vadd.f32 %v1759, %v1760
        %v1762 = vrot.slane %v1761, 1
        %v1763 = vadd.f32 %v1761, %v1762
        %v1764 = vsel %vm452, %v1390, 0.0
        %v1765 = vrot.slane %v1764, 4
        %v1766 = vadd.f32 %v1764, %v1765
        %v1767 = vrot.slane %v1766, 2
        %v1768 = vadd.f32 %v1766, %v1767
        %v1769 = vrot.slane %v1768, 1
        %v1770 = vadd.f32 %v1768, %v1769
        %v1771 = vsel %vm452, %v1391, 0.0
        %v1772 = vrot.slane %v1771, 4
        %v1773 = vadd.f32 %v1771, %v1772
        %v1774 = vrot.slane %v1773, 2
        %v1775 = vadd.f32 %v1773, %v1774
        %v1776 = vrot.slane %v1775, 1
        %v1777 = vadd.f32 %v1775, %v1776
        %v1778 = vsel %vm452, %v1392, 0.0
        %v1779 = vrot.slane %v1778, 4
        %v1780 = vadd.f32 %v1778, %v1779
        %v1781 = vrot.slane %v1780, 2
        %v1782 = vadd.f32 %v1780, %v1781
        %v1783 = vrot.slane %v1782, 1
        %v1784 = vadd.f32 %v1782, %v1783
        %v1785 = vsel %vm452, %v1393, 0.0
        %v1786 = vrot.slane %v1785, 4
        %v1787 = vadd.f32 %v1785, %v1786
        %v1788 = vrot.slane %v1787, 2
        %v1789 = vadd.f32 %v1787, %v1788
        %v1790 = vrot.slane %v1789, 1
        %v1791 = vadd.f32 %v1789, %v1790
        %v1792 = vsel %vm452, %v1394, 0.0
        %v1793 = vrot.slane %v1792, 4
        %v1794 = vadd.f32 %v1792, %v1793
        %v1795 = vrot.slane %v1794, 2
        %v1796 = vadd.f32 %v1794, %v1795
        %v1797 = vrot.slane %v1796, 1
        %v1798 = vadd.f32 %v1796, %v1797
        %v1799 = vsel %vm452, %v1395, 0.0
        %v1800 = vrot.slane %v1799, 4
        %v1801 = vadd.f32 %v1799, %v1800
        %v1802 = vrot.slane %v1801, 2
        %v1803 = vadd.f32 %v1801, %v1802
        %v1804 = vrot.slane %v1803, 1
        %v1805 = vadd.f32 %v1803, %v1804
        %v1806 = vsel %vm452, %v1396, 0.0
        %v1807 = vrot.slane %v1806, 4
        %v1808 = vadd.f32 %v1806, %v1807
        %v1809 = vrot.slane %v1808, 2
        %v1810 = vadd.f32 %v1808, %v1809
        %v1811 = vrot.slane %v1810, 1
        %v1812 = vadd.f32 %v1810, %v1811
        %v1813 = vsel %vm452, %v1397, 0.0
        %v1814 = vrot.slane %v1813, 4
        %v1815 = vadd.f32 %v1813, %v1814
        %v1816 = vrot.slane %v1815, 2
        %v1817 = vadd.f32 %v1815, %v1816
        %v1818 = vrot.slane %v1817, 1
        %v1819 = vadd.f32 %v1817, %v1818
        %v1820 = vsel %vm452, %v1398, 0.0
        %v1821 = vrot.slane %v1820, 4
        %v1822 = vadd.f32 %v1820, %v1821
        %v1823 = vrot.slane %v1822, 2
        %v1824 = vadd.f32 %v1822, %v1823
        %v1825 = vrot.slane %v1824, 1
        %v1826 = vadd.f32 %v1824, %v1825
        %v1827 = vsel %vm452, %v1399, 0.0
        %v1828 = vrot.slane %v1827, 4
        %v1829 = vadd.f32 %v1827, %v1828
        %v1830 = vrot.slane %v1829, 2
        %v1831 = vadd.f32 %v1829, %v1830
        %v1832 = vrot.slane %v1831, 1
        %v1833 = vadd.f32 %v1831, %v1832
        %v1834 = vsel %vm452, %v1400, 0.0
        %v1835 = vrot.slane %v1834, 4
        %v1836 = vadd.f32 %v1834, %v1835
        %v1837 = vrot.slane %v1836, 2
        %v1838 = vadd.f32 %v1836, %v1837
        %v1839 = vrot.slane %v1838, 1
        %v1840 = vadd.f32 %v1838, %v1839
        %v1841 = vsel %vm452, %v1401, 0.0
        %v1842 = vrot.slane %v1841, 4
        %v1843 = vadd.f32 %v1841, %v1842
        %v1844 = vrot.slane %v1843, 2
        %v1845 = vadd.f32 %v1843, %v1844
        %v1846 = vrot.slane %v1845, 1
        %v1847 = vadd.f32 %v1845, %v1846
        %v1848 = vsel %vm452, %v1402, 0.0
        %v1849 = vrot.slane %v1848, 4
        %v1850 = vadd.f32 %v1848, %v1849
        %v1851 = vrot.slane %v1850, 2
        %v1852 = vadd.f32 %v1850, %v1851
        %v1853 = vrot.slane %v1852, 1
        %v1854 = vadd.f32 %v1852, %v1853
        %v1855 = vsel %vm452, %v1403, 0.0
        %v1856 = vrot.slane %v1855, 4
        %v1857 = vadd.f32 %v1855, %v1856
        %v1858 = vrot.slane %v1857, 2
        %v1859 = vadd.f32 %v1857, %v1858
        %v1860 = vrot.slane %v1859, 1
        %v1861 = vadd.f32 %v1859, %v1860
        %v1862 = vsel %vm452, %v1404, 0.0
        %v1863 = vrot.slane %v1862, 4
        %v1864 = vadd.f32 %v1862, %v1863
        %v1865 = vrot.slane %v1864, 2
        %v1866 = vadd.f32 %v1864, %v1865
        %v1867 = vrot.slane %v1866, 1
        %v1868 = vadd.f32 %v1866, %v1867
        %v1869 = vsel %vm452, %v1405, 0.0
        %v1870 = vrot.slane %v1869, 4
        %v1871 = vadd.f32 %v1869, %v1870
        %v1872 = vrot.slane %v1871, 2
        %v1873 = vadd.f32 %v1871, %v1872
        %v1874 = vrot.slane %v1873, 1
        %v1875 = vadd.f32 %v1873, %v1874
        %v1876 = vsel %vm452, %v1406, 0.0
        %v1877 = vrot.slane %v1876, 4
        %v1878 = vadd.f32 %v1876, %v1877
        %v1879 = vrot.slane %v1878, 2
        %v1880 = vadd.f32 %v1878, %v1879
        %v1881 = vrot.slane %v1880, 1
        %v1882 = vadd.f32 %v1880, %v1881
        %v1883 = vsel %vm452, %v1407, 0.0
        %v1884 = vrot.slane %v1883, 4
        %v1885 = vadd.f32 %v1883, %v1884
        %v1886 = vrot.slane %v1885, 2
        %v1887 = vadd.f32 %v1885, %v1886
        %v1888 = vrot.slane %v1887, 1
        %v1889 = vadd.f32 %v1887, %v1888
        %v1890 = vsel %vm452, %v1408, 0.0
        %v1891 = vrot.slane %v1890, 4
        %v1892 = vadd.f32 %v1890, %v1891
        %v1893 = vrot.slane %v1892, 2
        %v1894 = vadd.f32 %v1892, %v1893
        %v1895 = vrot.slane %v1894, 1
        %v1896 = vadd.f32 %v1894, %v1895
        %v1897 = vsel %vm452, %v1409, 0.0
        %v1898 = vrot.slane %v1897, 4
        %v1899 = vadd.f32 %v1897, %v1898
        %v1900 = vrot.slane %v1899, 2
        %v1901 = vadd.f32 %v1899, %v1900
        %v1902 = vrot.slane %v1901, 1
        %v1903 = vadd.f32 %v1901, %v1902
        %v1904 = vsel %vm452, %v1410, 0.0
        %v1905 = vrot.slane %v1904, 4
        %v1906 = vadd.f32 %v1904, %v1905
        %v1907 = vrot.slane %v1906, 2
        %v1908 = vadd.f32 %v1906, %v1907
        %v1909 = vrot.slane %v1908, 1
        %v1910 = vadd.f32 %v1908, %v1909
        %v1911 = vsel %vm452, %v1411, 0.0
        %v1912 = vrot.slane %v1911, 4
        %v1913 = vadd.f32 %v1911, %v1912
        %v1914 = vrot.slane %v1913, 2
        %v1915 = vadd.f32 %v1913, %v1914
        %v1916 = vrot.slane %v1915, 1
        %v1917 = vadd.f32 %v1915, %v1916
        %v1918 = vsel %vm452, %v1412, 0.0
        %v1919 = vrot.slane %v1918, 4
        %v1920 = vadd.f32 %v1918, %v1919
        %v1921 = vrot.slane %v1920, 2
        %v1922 = vadd.f32 %v1920, %v1921
        %v1923 = vrot.slane %v1922, 1
        %v1924 = vadd.f32 %v1922, %v1923
        %v1925 = vsel %vm452, %v1413, 0.0
        %v1926 = vrot.slane %v1925, 4
        %v1927 = vadd.f32 %v1925, %v1926
        %v1928 = vrot.slane %v1927, 2
        %v1929 = vadd.f32 %v1927, %v1928
        %v1930 = vrot.slane %v1929, 1
        %v1931 = vadd.f32 %v1929, %v1930
        %v1932 = vsel %vm452, %v1414, 0.0
        %v1933 = vrot.slane %v1932, 4
        %v1934 = vadd.f32 %v1932, %v1933
        %v1935 = vrot.slane %v1934, 2
        %v1936 = vadd.f32 %v1934, %v1935
        %v1937 = vrot.slane %v1936, 1
        %v1938 = vadd.f32 %v1936, %v1937
        %v1939 = vsel %vm452, %v1415, 0.0
        %v1940 = vrot.slane %v1939, 4
        %v1941 = vadd.f32 %v1939, %v1940
        %v1942 = vrot.slane %v1941, 2
        %v1943 = vadd.f32 %v1941, %v1942
        %v1944 = vrot.slane %v1943, 1
        %v1945 = vadd.f32 %v1943, %v1944
        %v1946 = vsel %vm452, %v1416, 0.0
        %v1947 = vrot.slane %v1946, 4
        %v1948 = vadd.f32 %v1946, %v1947
        %v1949 = vrot.slane %v1948, 2
        %v1950 = vadd.f32 %v1948, %v1949
        %v1951 = vrot.slane %v1950, 1
        %v1952 = vadd.f32 %v1950, %v1951
        %v1953 = vsel %vm452, %v1417, 0.0
        %v1954 = vrot.slane %v1953, 4
        %v1955 = vadd.f32 %v1953, %v1954
        %v1956 = vrot.slane %v1955, 2
        %v1957 = vadd.f32 %v1955, %v1956
        %v1958 = vrot.slane %v1957, 1
        %v1959 = vadd.f32 %v1957, %v1958
        %v1960 = vsel %vm452, %v1418, 0.0
        %v1961 = vrot.slane %v1960, 4
        %v1962 = vadd.f32 %v1960, %v1961
        %v1963 = vrot.slane %v1962, 2
        %v1964 = vadd.f32 %v1962, %v1963
        %v1965 = vrot.slane %v1964, 1
        %v1966 = vadd.f32 %v1964, %v1965
        %v1967 = vsel %vm452, %v1419, 0.0
        %v1968 = vrot.slane %v1967, 4
        %v1969 = vadd.f32 %v1967, %v1968
        %v1970 = vrot.slane %v1969, 2
        %v1971 = vadd.f32 %v1969, %v1970
        %v1972 = vrot.slane %v1971, 1
        %v1973 = vadd.f32 %v1971, %v1972
        %v1974 = vsel %vm452, %v1420, 0.0
        %v1975 = vrot.slane %v1974, 4
        %v1976 = vadd.f32 %v1974, %v1975
        %v1977 = vrot.slane %v1976, 2
        %v1978 = vadd.f32 %v1976, %v1977
        %v1979 = vrot.slane %v1978, 1
        %v1980 = vadd.f32 %v1978, %v1979
        %v1981 = vsel %vm452, %v1421, 0.0
        %v1982 = vrot.slane %v1981, 4
        %v1983 = vadd.f32 %v1981, %v1982
        %v1984 = vrot.slane %v1983, 2
        %v1985 = vadd.f32 %v1983, %v1984
        %v1986 = vrot.slane %v1985, 1
        %v1987 = vadd.f32 %v1985, %v1986
        %v1988 = vsel %vm452, %v1422, 0.0
        %v1989 = vrot.slane %v1988, 4
        %v1990 = vadd.f32 %v1988, %v1989
        %v1991 = vrot.slane %v1990, 2
        %v1992 = vadd.f32 %v1990, %v1991
        %v1993 = vrot.slane %v1992, 1
        %v1994 = vadd.f32 %v1992, %v1993
        %v1995 = vsel %vm452, %v1423, 0.0
        %v1996 = vrot.slane %v1995, 4
        %v1997 = vadd.f32 %v1995, %v1996
        %v1998 = vrot.slane %v1997, 2
        %v1999 = vadd.f32 %v1997, %v1998
        %v2000 = vrot.slane %v1999, 1
        %v2001 = vadd.f32 %v1999, %v2000
        %v2002 = vsel %vm452, %v1424, 0.0
        %v2003 = vrot.slane %v2002, 4
        %v2004 = vadd.f32 %v2002, %v2003
        %v2005 = vrot.slane %v2004, 2
        %v2006 = vadd.f32 %v2004, %v2005
        %v2007 = vrot.slane %v2006, 1
        %v2008 = vadd.f32 %v2006, %v2007
        %v2009 = vsel %vm452, %v1425, 0.0
        %v2010 = vrot.slane %v2009, 4
        %v2011 = vadd.f32 %v2009, %v2010
        %v2012 = vrot.slane %v2011, 2
        %v2013 = vadd.f32 %v2011, %v2012
        %v2014 = vrot.slane %v2013, 1
        %v2015 = vadd.f32 %v2013, %v2014
        %v2016 = vsel %vm452, %v1426, 0.0
        %v2017 = vrot.slane %v2016, 4
        %v2018 = vadd.f32 %v2016, %v2017
        %v2019 = vrot.slane %v2018, 2
        %v2020 = vadd.f32 %v2018, %v2019
        %v2021 = vrot.slane %v2020, 1
        %v2022 = vadd.f32 %v2020, %v2021
        %v2023 = vsel %vm452, %v1427, 0.0
        %v2024 = vrot.slane %v2023, 4
        %v2025 = vadd.f32 %v2023, %v2024
        %v2026 = vrot.slane %v2025, 2
        %v2027 = vadd.f32 %v2025, %v2026
        %v2028 = vrot.slane %v2027, 1
        %v2029 = vadd.f32 %v2027, %v2028
        %v2030 = vsel %vm452, %v1428, 0.0
        %v2031 = vrot.slane %v2030, 4
        %v2032 = vadd.f32 %v2030, %v2031
        %v2033 = vrot.slane %v2032, 2
        %v2034 = vadd.f32 %v2032, %v2033
        %v2035 = vrot.slane %v2034, 1
        %v2036 = vadd.f32 %v2034, %v2035
        %v2037 = vsel %vm452, %v1429, 0.0
        %v2038 = vrot.slane %v2037, 4
        %v2039 = vadd.f32 %v2037, %v2038
        %v2040 = vrot.slane %v2039, 2
        %v2041 = vadd.f32 %v2039, %v2040
        %v2042 = vrot.slane %v2041, 1
        %v2043 = vadd.f32 %v2041, %v2042
        %v2044 = vsel %vm452, %v1430, 0.0
        %v2045 = vrot.slane %v2044, 4
        %v2046 = vadd.f32 %v2044, %v2045
        %v2047 = vrot.slane %v2046, 2
        %v2048 = vadd.f32 %v2046, %v2047
        %v2049 = vrot.slane %v2048, 1
        %v2050 = vadd.f32 %v2048, %v2049
        %v2051 = vsel %vm452, %v1431, 0.0
        %v2052 = vrot.slane %v2051, 4
        %v2053 = vadd.f32 %v2051, %v2052
        %v2054 = vrot.slane %v2053, 2
        %v2055 = vadd.f32 %v2053, %v2054
        %v2056 = vrot.slane %v2055, 1
        %v2057 = vadd.f32 %v2055, %v2056
        %v2058 = vsel %vm452, %v1432, 0.0
        %v2059 = vrot.slane %v2058, 4
        %v2060 = vadd.f32 %v2058, %v2059
        %v2061 = vrot.slane %v2060, 2
        %v2062 = vadd.f32 %v2060, %v2061
        %v2063 = vrot.slane %v2062, 1
        %v2064 = vadd.f32 %v2062, %v2063
        %v2065 = vsel %vm452, %v1433, 0.0
        %v2066 = vrot.slane %v2065, 4
        %v2067 = vadd.f32 %v2065, %v2066
        %v2068 = vrot.slane %v2067, 2
        %v2069 = vadd.f32 %v2067, %v2068
        %v2070 = vrot.slane %v2069, 1
        %v2071 = vadd.f32 %v2069, %v2070
        %v2072 = vsel %vm452, %v1434, 0.0
        %v2073 = vrot.slane %v2072, 4
        %v2074 = vadd.f32 %v2072, %v2073
        %v2075 = vrot.slane %v2074, 2
        %v2076 = vadd.f32 %v2074, %v2075
        %v2077 = vrot.slane %v2076, 1
        %v2078 = vadd.f32 %v2076, %v2077
        %v2079 = vsel %vm452, %v1435, 0.0
        %v2080 = vrot.slane %v2079, 4
        %v2081 = vadd.f32 %v2079, %v2080
        %v2082 = vrot.slane %v2081, 2
        %v2083 = vadd.f32 %v2081, %v2082
        %v2084 = vrot.slane %v2083, 1
        %v2085 = vadd.f32 %v2083, %v2084
        %v2086 = vsel %vm452, %v1436, 0.0
        %v2087 = vrot.slane %v2086, 4
        %v2088 = vadd.f32 %v2086, %v2087
        %v2089 = vrot.slane %v2088, 2
        %v2090 = vadd.f32 %v2088, %v2089
        %v2091 = vrot.slane %v2090, 1
        %v2092 = vadd.f32 %v2090, %v2091
        %v2093 = vsel %vm452, %v1437, 0.0
        %v2094 = vrot.slane %v2093, 4
        %v2095 = vadd.f32 %v2093, %v2094
        %v2096 = vrot.slane %v2095, 2
        %v2097 = vadd.f32 %v2095, %v2096
        %v2098 = vrot.slane %v2097, 1
        %v2099 = vadd.f32 %v2097, %v2098
        %v2100 = vsel %vm452, %v1438, 0.0
        %v2101 = vrot.slane %v2100, 4
        %v2102 = vadd.f32 %v2100, %v2101
        %v2103 = vrot.slane %v2102, 2
        %v2104 = vadd.f32 %v2102, %v2103
        %v2105 = vrot.slane %v2104, 1
        %v2106 = vadd.f32 %v2104, %v2105
        %v2107 = vsel %vm452, %v1439, 0.0
        %v2108 = vrot.slane %v2107, 4
        %v2109 = vadd.f32 %v2107, %v2108
        %v2110 = vrot.slane %v2109, 2
        %v2111 = vadd.f32 %v2109, %v2110
        %v2112 = vrot.slane %v2111, 1
        %v2113 = vadd.f32 %v2111, %v2112
        %v2114 = vsel %vm452, %v1440, 0.0
        %v2115 = vrot.slane %v2114, 4
        %v2116 = vadd.f32 %v2114, %v2115
        %v2117 = vrot.slane %v2116, 2
        %v2118 = vadd.f32 %v2116, %v2117
        %v2119 = vrot.slane %v2118, 1
        %v2120 = vadd.f32 %v2118, %v2119
        %v2121 = vsel %vm452, %v1441, 0.0
        %v2122 = vrot.slane %v2121, 4
        %v2123 = vadd.f32 %v2121, %v2122
        %v2124 = vrot.slane %v2123, 2
        %v2125 = vadd.f32 %v2123, %v2124
        %v2126 = vrot.slane %v2125, 1
        %v2127 = vadd.f32 %v2125, %v2126
        %v2128 = vsel %vm452, %v1442, 0.0
        %v2129 = vrot.slane %v2128, 4
        %v2130 = vadd.f32 %v2128, %v2129
        %v2131 = vrot.slane %v2130, 2
        %v2132 = vadd.f32 %v2130, %v2131
        %v2133 = vrot.slane %v2132, 1
        %v2134 = vadd.f32 %v2132, %v2133
        %v2135 = vsel %vm452, %v1443, 0.0
        %v2136 = vrot.slane %v2135, 4
        %v2137 = vadd.f32 %v2135, %v2136
        %v2138 = vrot.slane %v2137, 2
        %v2139 = vadd.f32 %v2137, %v2138
        %v2140 = vrot.slane %v2139, 1
        %v2141 = vadd.f32 %v2139, %v2140
        %v2142 = vsel %vm452, %v1444, 0.0
        %v2143 = vrot.slane %v2142, 4
        %v2144 = vadd.f32 %v2142, %v2143
        %v2145 = vrot.slane %v2144, 2
        %v2146 = vadd.f32 %v2144, %v2145
        %v2147 = vrot.slane %v2146, 1
        %v2148 = vadd.f32 %v2146, %v2147
        %v2149 = vsel %vm452, %v1445, 0.0
        %v2150 = vrot.slane %v2149, 4
        %v2151 = vadd.f32 %v2149, %v2150
        %v2152 = vrot.slane %v2151, 2
        %v2153 = vadd.f32 %v2151, %v2152
        %v2154 = vrot.slane %v2153, 1
        %v2155 = vadd.f32 %v2153, %v2154
        %v2156 = vsel %vm452, %v1446, 0.0
        %v2157 = vrot.slane %v2156, 4
        %v2158 = vadd.f32 %v2156, %v2157
        %v2159 = vrot.slane %v2158, 2
        %v2160 = vadd.f32 %v2158, %v2159
        %v2161 = vrot.slane %v2160, 1
        %v2162 = vadd.f32 %v2160, %v2161
        %v2163 = vsel %vm452, %v1447, 0.0
        %v2164 = vrot.slane %v2163, 4
        %v2165 = vadd.f32 %v2163, %v2164
        %v2166 = vrot.slane %v2165, 2
        %v2167 = vadd.f32 %v2165, %v2166
        %v2168 = vrot.slane %v2167, 1
        %v2169 = vadd.f32 %v2167, %v2168
        %v2170 = vsel %vm452, %v1448, 0.0
        %v2171 = vrot.slane %v2170, 4
        %v2172 = vadd.f32 %v2170, %v2171
        %v2173 = vrot.slane %v2172, 2
        %v2174 = vadd.f32 %v2172, %v2173
        %v2175 = vrot.slane %v2174, 1
        %v2176 = vadd.f32 %v2174, %v2175
        %v2177 = vsel %vm452, %v1449, 0.0
        %v2178 = vrot.slane %v2177, 4
        %v2179 = vadd.f32 %v2177, %v2178
        %v2180 = vrot.slane %v2179, 2
        %v2181 = vadd.f32 %v2179, %v2180
        %v2182 = vrot.slane %v2181, 1
        %v2183 = vadd.f32 %v2181, %v2182
        %v2184 = vsel %vm452, %v1450, 0.0
        %v2185 = vrot.slane %v2184, 4
        %v2186 = vadd.f32 %v2184, %v2185
        %v2187 = vrot.slane %v2186, 2
        %v2188 = vadd.f32 %v2186, %v2187
        %v2189 = vrot.slane %v2188, 1
        %v2190 = vadd.f32 %v2188, %v2189
        %v2191 = vsel %vm452, %v1451, 0.0
        %v2192 = vrot.slane %v2191, 4
        %v2193 = vadd.f32 %v2191, %v2192
        %v2194 = vrot.slane %v2193, 2
        %v2195 = vadd.f32 %v2193, %v2194
        %v2196 = vrot.slane %v2195, 1
        %v2197 = vadd.f32 %v2195, %v2196
        %v2198 = vsel %vm452, %v1452, 0.0
        %v2199 = vrot.slane %v2198, 4
        %v2200 = vadd.f32 %v2198, %v2199
        %v2201 = vrot.slane %v2200, 2
        %v2202 = vadd.f32 %v2200, %v2201
        %v2203 = vrot.slane %v2202, 1
        %v2204 = vadd.f32 %v2202, %v2203
        %v2205 = vsel %vm452, %v1453, 0.0
        %v2206 = vrot.slane %v2205, 4
        %v2207 = vadd.f32 %v2205, %v2206
        %v2208 = vrot.slane %v2207, 2
        %v2209 = vadd.f32 %v2207, %v2208
        %v2210 = vrot.slane %v2209, 1
        %v2211 = vadd.f32 %v2209, %v2210
        %v2212 = vsel %vm452, %v1454, 0.0
        %v2213 = vrot.slane %v2212, 4
        %v2214 = vadd.f32 %v2212, %v2213
        %v2215 = vrot.slane %v2214, 2
        %v2216 = vadd.f32 %v2214, %v2215
        %v2217 = vrot.slane %v2216, 1
        %v2218 = vadd.f32 %v2216, %v2217
        %v2219 = vsel %vm452, %v1455, 0.0
        %v2220 = vrot.slane %v2219, 4
        %v2221 = vadd.f32 %v2219, %v2220
        %v2222 = vrot.slane %v2221, 2
        %v2223 = vadd.f32 %v2221, %v2222
        %v2224 = vrot.slane %v2223, 1
        %v2225 = vadd.f32 %v2223, %v2224
        %v2226 = vsel %vm452, %v1456, 0.0
        %v2227 = vrot.slane %v2226, 4
        %v2228 = vadd.f32 %v2226, %v2227
        %v2229 = vrot.slane %v2228, 2
        %v2230 = vadd.f32 %v2228, %v2229
        %v2231 = vrot.slane %v2230, 1
        %v2232 = vadd.f32 %v2230, %v2231
        %v2233 = vsel %vm452, %v1457, 0.0
        %v2234 = vrot.slane %v2233, 4
        %v2235 = vadd.f32 %v2233, %v2234
        %v2236 = vrot.slane %v2235, 2
        %v2237 = vadd.f32 %v2235, %v2236
        %v2238 = vrot.slane %v2237, 1
        %v2239 = vadd.f32 %v2237, %v2238
        %v2240 = vsel %vm452, %v1458, 0.0
        %v2241 = vrot.slane %v2240, 4
        %v2242 = vadd.f32 %v2240, %v2241
        %v2243 = vrot.slane %v2242, 2
        %v2244 = vadd.f32 %v2242, %v2243
        %v2245 = vrot.slane %v2244, 1
        %v2246 = vadd.f32 %v2244, %v2245
        %v2247 = vsel %vm452, %v1459, 0.0
        %v2248 = vrot.slane %v2247, 4
        %v2249 = vadd.f32 %v2247, %v2248
        %v2250 = vrot.slane %v2249, 2
        %v2251 = vadd.f32 %v2249, %v2250
        %v2252 = vrot.slane %v2251, 1
        %v2253 = vadd.f32 %v2251, %v2252
        %v2254 = vsel %vm452, %v1460, 0.0
        %v2255 = vrot.slane %v2254, 4
        %v2256 = vadd.f32 %v2254, %v2255
        %v2257 = vrot.slane %v2256, 2
        %v2258 = vadd.f32 %v2256, %v2257
        %v2259 = vrot.slane %v2258, 1
        %v2260 = vadd.f32 %v2258, %v2259
        %v2261 = vsel %vm452, %v1461, 0.0
        %v2262 = vrot.slane %v2261, 4
        %v2263 = vadd.f32 %v2261, %v2262
        %v2264 = vrot.slane %v2263, 2
        %v2265 = vadd.f32 %v2263, %v2264
        %v2266 = vrot.slane %v2265, 1
        %v2267 = vadd.f32 %v2265, %v2266
        %v2268 = vsel %vm452, %v1462, 0.0
        %v2269 = vrot.slane %v2268, 4
        %v2270 = vadd.f32 %v2268, %v2269
        %v2271 = vrot.slane %v2270, 2
        %v2272 = vadd.f32 %v2270, %v2271
        %v2273 = vrot.slane %v2272, 1
        %v2274 = vadd.f32 %v2272, %v2273
        %v2275 = vsel %vm452, %v1463, 0.0
        %v2276 = vrot.slane %v2275, 4
        %v2277 = vadd.f32 %v2275, %v2276
        %v2278 = vrot.slane %v2277, 2
        %v2279 = vadd.f32 %v2277, %v2278
        %v2280 = vrot.slane %v2279, 1
        %v2281 = vadd.f32 %v2279, %v2280
        %v2282 = vsel %vm452, %v1464, 0.0
        %v2283 = vrot.slane %v2282, 4
        %v2284 = vadd.f32 %v2282, %v2283
        %v2285 = vrot.slane %v2284, 2
        %v2286 = vadd.f32 %v2284, %v2285
        %v2287 = vrot.slane %v2286, 1
        %v2288 = vadd.f32 %v2286, %v2287
        %v2289 = vsel %vm452, %v1465, 0.0
        %v2290 = vrot.slane %v2289, 4
        %v2291 = vadd.f32 %v2289, %v2290
        %v2292 = vrot.slane %v2291, 2
        %v2293 = vadd.f32 %v2291, %v2292
        %v2294 = vrot.slane %v2293, 1
        %v2295 = vadd.f32 %v2293, %v2294
        %v2296 = vsel %vm452, %v1466, 0.0
        %v2297 = vrot.slane %v2296, 4
        %v2298 = vadd.f32 %v2296, %v2297
        %v2299 = vrot.slane %v2298, 2
        %v2300 = vadd.f32 %v2298, %v2299
        %v2301 = vrot.slane %v2300, 1
        %v2302 = vadd.f32 %v2300, %v2301
        %v2303 = vsel %vm452, %v1467, 0.0
        %v2304 = vrot.slane %v2303, 4
        %v2305 = vadd.f32 %v2303, %v2304
        %v2306 = vrot.slane %v2305, 2
        %v2307 = vadd.f32 %v2305, %v2306
        %v2308 = vrot.slane %v2307, 1
        %v2309 = vadd.f32 %v2307, %v2308
        %v2310 = vsel %vm452, %v1468, 0.0
        %v2311 = vrot.slane %v2310, 4
        %v2312 = vadd.f32 %v2310, %v2311
        %v2313 = vrot.slane %v2312, 2
        %v2314 = vadd.f32 %v2312, %v2313
        %v2315 = vrot.slane %v2314, 1
        %v2316 = vadd.f32 %v2314, %v2315
        %v2317 = vsel %vm452, %v1469, 0.0
        %v2318 = vrot.slane %v2317, 4
        %v2319 = vadd.f32 %v2317, %v2318
        %v2320 = vrot.slane %v2319, 2
        %v2321 = vadd.f32 %v2319, %v2320
        %v2322 = vrot.slane %v2321, 1
        %v2323 = vadd.f32 %v2321, %v2322
        %v2324 = vsel %vm452, %v1470, 0.0
        %v2325 = vrot.slane %v2324, 4
        %v2326 = vadd.f32 %v2324, %v2325
        %v2327 = vrot.slane %v2326, 2
        %v2328 = vadd.f32 %v2326, %v2327
        %v2329 = vrot.slane %v2328, 1
        %v2330 = vadd.f32 %v2328, %v2329
        %v2331 = vsel %vm452, %v1471, 0.0
        %v2332 = vrot.slane %v2331, 4
        %v2333 = vadd.f32 %v2331, %v2332
        %v2334 = vrot.slane %v2333, 2
        %v2335 = vadd.f32 %v2333, %v2334
        %v2336 = vrot.slane %v2335, 1
        %v2337 = vadd.f32 %v2335, %v2336
        %v2338 = vsel %vm452, %v1472, 0.0
        %v2339 = vrot.slane %v2338, 4
        %v2340 = vadd.f32 %v2338, %v2339
        %v2341 = vrot.slane %v2340, 2
        %v2342 = vadd.f32 %v2340, %v2341
        %v2343 = vrot.slane %v2342, 1
        %v2344 = vadd.f32 %v2342, %v2343
        %v2345 = vsel %vm452, %v1473, 0.0
        %v2346 = vrot.slane %v2345, 4
        %v2347 = vadd.f32 %v2345, %v2346
        %v2348 = vrot.slane %v2347, 2
        %v2349 = vadd.f32 %v2347, %v2348
        %v2350 = vrot.slane %v2349, 1
        %v2351 = vadd.f32 %v2349, %v2350
        %v2352 = vsel %vm452, %v1474, 0.0
        %v2353 = vrot.slane %v2352, 4
        %v2354 = vadd.f32 %v2352, %v2353
        %v2355 = vrot.slane %v2354, 2
        %v2356 = vadd.f32 %v2354, %v2355
        %v2357 = vrot.slane %v2356, 1
        %v2358 = vadd.f32 %v2356, %v2357
        %v2359 = vsel %vm452, %v1475, 0.0
        %v2360 = vrot.slane %v2359, 4
        %v2361 = vadd.f32 %v2359, %v2360
        %v2362 = vrot.slane %v2361, 2
        %v2363 = vadd.f32 %v2361, %v2362
        %v2364 = vrot.slane %v2363, 1
        %v2365 = vadd.f32 %v2363, %v2364
        %v2366 = vsel %vm452, %v1476, 0.0
        %v2367 = vrot.slane %v2366, 4
        %v2368 = vadd.f32 %v2366, %v2367
        %v2369 = vrot.slane %v2368, 2
        %v2370 = vadd.f32 %v2368, %v2369
        %v2371 = vrot.slane %v2370, 1
        %v2372 = vadd.f32 %v2370, %v2371
        %v2373 = vld [vmem:[%s321] sm:$0xff]
        %v2374 = vld [vmem:[%s321 + $0x8] sm:$0xff]
        %v2375 = vld [vmem:[%s321 + $0x10] sm:$0xff]
        %v2376 = vld [vmem:[%s321 + $0x18] sm:$0xff]
        %v2377 = vld [vmem:[%s321 + $0x20] sm:$0xff]
        %v2378 = vld [vmem:[%s321 + $0x28] sm:$0xff]
        %v2379 = vld [vmem:[%s321 + $0x30] sm:$0xff]
        %v2380 = vld [vmem:[%s321 + $0x38] sm:$0xff]
        %v2381 = vld [vmem:[%s321 + $0x40] sm:$0xff]
        %v2382 = vld [vmem:[%s321 + $0x48] sm:$0xff]
        %v2383 = vld [vmem:[%s321 + $0x50] sm:$0xff]
        %v2384 = vld [vmem:[%s321 + $0x58] sm:$0xff]
        %v2385 = vld [vmem:[%s321 + $0x60] sm:$0xff]
        %v2386 = vld [vmem:[%s321 + $0x68] sm:$0xff]
        %v2387 = vld [vmem:[%s321 + $0x70] sm:$0xff]
        %v2388 = vld [vmem:[%s321 + $0x78] sm:$0xff]
        %v2389 = vld [vmem:[%s321 + $0x80] sm:$0xff]
        %v2390 = vld [vmem:[%s321 + $0x88] sm:$0xff]
        %v2391 = vld [vmem:[%s321 + $0x90] sm:$0xff]
        %v2392 = vld [vmem:[%s321 + $0x98] sm:$0xff]
        %v2393 = vld [vmem:[%s321 + $0xa0] sm:$0xff]
        %v2394 = vld [vmem:[%s321 + $0xa8] sm:$0xff]
        %v2395 = vld [vmem:[%s321 + $0xb0] sm:$0xff]
        %v2396 = vld [vmem:[%s321 + $0xb8] sm:$0xff]
        %v2397 = vld [vmem:[%s321 + $0xc0] sm:$0xff]
        %v2398 = vld [vmem:[%s321 + $0xc8] sm:$0xff]
        %v2399 = vld [vmem:[%s321 + $0xd0] sm:$0xff]
        %v2400 = vld [vmem:[%s321 + $0xd8] sm:$0xff]
        %v2401 = vld [vmem:[%s321 + $0xe0] sm:$0xff]
        %v2402 = vld [vmem:[%s321 + $0xe8] sm:$0xff]
        %v2403 = vld [vmem:[%s321 + $0xf0] sm:$0xff]
        %v2404 = vld [vmem:[%s321 + $0xf8] sm:$0xff]
        %v2405 = vld [vmem:[%s321 + $0x100] sm:$0xff]
        %v2406 = vld [vmem:[%s321 + $0x108] sm:$0xff]
        %v2407 = vld [vmem:[%s321 + $0x110] sm:$0xff]
        %v2408 = vld [vmem:[%s321 + $0x118] sm:$0xff]
        %v2409 = vld [vmem:[%s321 + $0x120] sm:$0xff]
        %v2410 = vld [vmem:[%s321 + $0x128] sm:$0xff]
        %v2411 = vld [vmem:[%s321 + $0x130] sm:$0xff]
        %v2412 = vld [vmem:[%s321 + $0x138] sm:$0xff]
        %v2413 = vld [vmem:[%s321 + $0x140] sm:$0xff]
        %v2414 = vld [vmem:[%s321 + $0x148] sm:$0xff]
        %v2415 = vld [vmem:[%s321 + $0x150] sm:$0xff]
        %v2416 = vld [vmem:[%s321 + $0x158] sm:$0xff]
        %v2417 = vld [vmem:[%s321 + $0x160] sm:$0xff]
        %v2418 = vld [vmem:[%s321 + $0x168] sm:$0xff]
        %v2419 = vld [vmem:[%s321 + $0x170] sm:$0xff]
        %v2420 = vld [vmem:[%s321 + $0x178] sm:$0xff]
        %v2421 = vld [vmem:[%s321 + $0x180] sm:$0xff]
        %v2422 = vld [vmem:[%s321 + $0x188] sm:$0xff]
        %v2423 = vld [vmem:[%s321 + $0x190] sm:$0xff]
        %v2424 = vld [vmem:[%s321 + $0x198] sm:$0xff]
        %v2425 = vld [vmem:[%s321 + $0x1a0] sm:$0xff]
        %v2426 = vld [vmem:[%s321 + $0x1a8] sm:$0xff]
        %v2427 = vld [vmem:[%s321 + $0x1b0] sm:$0xff]
        %v2428 = vld [vmem:[%s321 + $0x1b8] sm:$0xff]
        %v2429 = vld [vmem:[%s321 + $0x1c0] sm:$0xff]
        %v2430 = vld [vmem:[%s321 + $0x1c8] sm:$0xff]
        %v2431 = vld [vmem:[%s321 + $0x1d0] sm:$0xff]
        %v2432 = vld [vmem:[%s321 + $0x1d8] sm:$0xff]
        %v2433 = vld [vmem:[%s321 + $0x1e0] sm:$0xff]
        %v2434 = vld [vmem:[%s321 + $0x1e8] sm:$0xff]
        %v2435 = vld [vmem:[%s321 + $0x1f0] sm:$0xff]
        %v2436 = vld [vmem:[%s321 + $0x1f8] sm:$0xff]
        %v2437 = vld [vmem:[%s321 + $0x200] sm:$0xff]
        %v2438 = vld [vmem:[%s321 + $0x208] sm:$0xff]
        %v2439 = vld [vmem:[%s321 + $0x210] sm:$0xff]
        %v2440 = vld [vmem:[%s321 + $0x218] sm:$0xff]
        %v2441 = vld [vmem:[%s321 + $0x220] sm:$0xff]
        %v2442 = vld [vmem:[%s321 + $0x228] sm:$0xff]
        %v2443 = vld [vmem:[%s321 + $0x230] sm:$0xff]
        %v2444 = vld [vmem:[%s321 + $0x238] sm:$0xff]
        %v2445 = vld [vmem:[%s321 + $0x240] sm:$0xff]
        %v2446 = vld [vmem:[%s321 + $0x248] sm:$0xff]
        %v2447 = vld [vmem:[%s321 + $0x250] sm:$0xff]
        %v2448 = vld [vmem:[%s321 + $0x258] sm:$0xff]
        %v2449 = vld [vmem:[%s321 + $0x260] sm:$0xff]
        %v2450 = vld [vmem:[%s321 + $0x268] sm:$0xff]
        %v2451 = vld [vmem:[%s321 + $0x270] sm:$0xff]
        %v2452 = vld [vmem:[%s321 + $0x278] sm:$0xff]
        %v2453 = vld [vmem:[%s321 + $0x280] sm:$0xff]
        %v2454 = vld [vmem:[%s321 + $0x288] sm:$0xff]
        %v2455 = vld [vmem:[%s321 + $0x290] sm:$0xff]
        %v2456 = vld [vmem:[%s321 + $0x298] sm:$0xff]
        %v2457 = vld [vmem:[%s321 + $0x2a0] sm:$0xff]
        %v2458 = vld [vmem:[%s321 + $0x2a8] sm:$0xff]
        %v2459 = vld [vmem:[%s321 + $0x2b0] sm:$0xff]
        %v2460 = vld [vmem:[%s321 + $0x2b8] sm:$0xff]
        %v2461 = vld [vmem:[%s321 + $0x2c0] sm:$0xff]
        %v2462 = vld [vmem:[%s321 + $0x2c8] sm:$0xff]
        %v2463 = vld [vmem:[%s321 + $0x2d0] sm:$0xff]
        %v2464 = vld [vmem:[%s321 + $0x2d8] sm:$0xff]
        %v2465 = vld [vmem:[%s321 + $0x2e0] sm:$0xff]
        %v2466 = vld [vmem:[%s321 + $0x2e8] sm:$0xff]
        %v2467 = vld [vmem:[%s321 + $0x2f0] sm:$0xff]
        %v2468 = vld [vmem:[%s321 + $0x2f8] sm:$0xff]
        %v2469 = vld [vmem:[%s321 + $0x300] sm:$0xff]
        %v2470 = vld [vmem:[%s321 + $0x308] sm:$0xff]
        %v2471 = vld [vmem:[%s321 + $0x310] sm:$0xff]
        %v2472 = vld [vmem:[%s321 + $0x318] sm:$0xff]
        %v2473 = vld [vmem:[%s321 + $0x320] sm:$0xff]
        %v2474 = vld [vmem:[%s321 + $0x328] sm:$0xff]
        %v2475 = vld [vmem:[%s321 + $0x330] sm:$0xff]
        %v2476 = vld [vmem:[%s321 + $0x338] sm:$0xff]
        %v2477 = vld [vmem:[%s321 + $0x340] sm:$0xff]
        %v2478 = vld [vmem:[%s321 + $0x348] sm:$0xff]
        %v2479 = vld [vmem:[%s321 + $0x350] sm:$0xff]
        %v2480 = vld [vmem:[%s321 + $0x358] sm:$0xff]
        %v2481 = vld [vmem:[%s321 + $0x360] sm:$0xff]
        %v2482 = vld [vmem:[%s321 + $0x368] sm:$0xff]
        %v2483 = vld [vmem:[%s321 + $0x370] sm:$0xff]
        %v2484 = vld [vmem:[%s321 + $0x378] sm:$0xff]
        %v2485 = vld [vmem:[%s321 + $0x380] sm:$0xff]
        %v2486 = vld [vmem:[%s321 + $0x388] sm:$0xff]
        %v2487 = vld [vmem:[%s321 + $0x390] sm:$0xff]
        %v2488 = vld [vmem:[%s321 + $0x398] sm:$0xff]
        %v2489 = vld [vmem:[%s321 + $0x3a0] sm:$0xff]
        %v2490 = vld [vmem:[%s321 + $0x3a8] sm:$0xff]
        %v2491 = vld [vmem:[%s321 + $0x3b0] sm:$0xff]
        %v2492 = vld [vmem:[%s321 + $0x3b8] sm:$0xff]
        %v2493 = vld [vmem:[%s321 + $0x3c0] sm:$0xff]
        %v2494 = vld [vmem:[%s321 + $0x3c8] sm:$0xff]
        %v2495 = vld [vmem:[%s321 + $0x3d0] sm:$0xff]
        %v2496 = vld [vmem:[%s321 + $0x3d8] sm:$0xff]
        %v2497 = vld [vmem:[%s321 + $0x3e0] sm:$0xff]
        %v2498 = vld [vmem:[%s321 + $0x3e8] sm:$0xff]
        %v2499 = vld [vmem:[%s321 + $0x3f0] sm:$0xff]
        %v2500 = vld [vmem:[%s321 + $0x3f8] sm:$0xff]
        %v2501 = vsel %vm452, %v2373, 0.0
        %v2502 = vrot.slane %v2501, 4
        %v2503 = vadd.f32 %v2501, %v2502
        %v2504 = vrot.slane %v2503, 2
        %v2505 = vadd.f32 %v2503, %v2504
        %v2506 = vrot.slane %v2505, 1
        %v2507 = vadd.f32 %v2505, %v2506
        %v2508 = vsel %vm452, %v2374, 0.0
        %v2509 = vrot.slane %v2508, 4
        %v2510 = vadd.f32 %v2508, %v2509
        %v2511 = vrot.slane %v2510, 2
        %v2512 = vadd.f32 %v2510, %v2511
        %v2513 = vrot.slane %v2512, 1
        %v2514 = vadd.f32 %v2512, %v2513
        %v2515 = vsel %vm452, %v2375, 0.0
        %v2516 = vrot.slane %v2515, 4
        %v2517 = vadd.f32 %v2515, %v2516
        %v2518 = vrot.slane %v2517, 2
        %v2519 = vadd.f32 %v2517, %v2518
        %v2520 = vrot.slane %v2519, 1
        %v2521 = vadd.f32 %v2519, %v2520
        %v2522 = vsel %vm452, %v2376, 0.0
        %v2523 = vrot.slane %v2522, 4
        %v2524 = vadd.f32 %v2522, %v2523
        %v2525 = vrot.slane %v2524, 2
        %v2526 = vadd.f32 %v2524, %v2525
        %v2527 = vrot.slane %v2526, 1
        %v2528 = vadd.f32 %v2526, %v2527
        %v2529 = vsel %vm452, %v2377, 0.0
        %v2530 = vrot.slane %v2529, 4
        %v2531 = vadd.f32 %v2529, %v2530
        %v2532 = vrot.slane %v2531, 2
        %v2533 = vadd.f32 %v2531, %v2532
        %v2534 = vrot.slane %v2533, 1
        %v2535 = vadd.f32 %v2533, %v2534
        %v2536 = vsel %vm452, %v2378, 0.0
        %v2537 = vrot.slane %v2536, 4
        %v2538 = vadd.f32 %v2536, %v2537
        %v2539 = vrot.slane %v2538, 2
        %v2540 = vadd.f32 %v2538, %v2539
        %v2541 = vrot.slane %v2540, 1
        %v2542 = vadd.f32 %v2540, %v2541
        %v2543 = vsel %vm452, %v2379, 0.0
        %v2544 = vrot.slane %v2543, 4
        %v2545 = vadd.f32 %v2543, %v2544
        %v2546 = vrot.slane %v2545, 2
        %v2547 = vadd.f32 %v2545, %v2546
        %v2548 = vrot.slane %v2547, 1
        %v2549 = vadd.f32 %v2547, %v2548
        %v2550 = vsel %vm452, %v2380, 0.0
        %v2551 = vrot.slane %v2550, 4
        %v2552 = vadd.f32 %v2550, %v2551
        %v2553 = vrot.slane %v2552, 2
        %v2554 = vadd.f32 %v2552, %v2553
        %v2555 = vrot.slane %v2554, 1
        %v2556 = vadd.f32 %v2554, %v2555
        %v2557 = vsel %vm452, %v2381, 0.0
        %v2558 = vrot.slane %v2557, 4
        %v2559 = vadd.f32 %v2557, %v2558
        %v2560 = vrot.slane %v2559, 2
        %v2561 = vadd.f32 %v2559, %v2560
        %v2562 = vrot.slane %v2561, 1
        %v2563 = vadd.f32 %v2561, %v2562
        %v2564 = vsel %vm452, %v2382, 0.0
        %v2565 = vrot.slane %v2564, 4
        %v2566 = vadd.f32 %v2564, %v2565
        %v2567 = vrot.slane %v2566, 2
        %v2568 = vadd.f32 %v2566, %v2567
        %v2569 = vrot.slane %v2568, 1
        %v2570 = vadd.f32 %v2568, %v2569
        %v2571 = vsel %vm452, %v2383, 0.0
        %v2572 = vrot.slane %v2571, 4
        %v2573 = vadd.f32 %v2571, %v2572
        %v2574 = vrot.slane %v2573, 2
        %v2575 = vadd.f32 %v2573, %v2574
        %v2576 = vrot.slane %v2575, 1
        %v2577 = vadd.f32 %v2575, %v2576
        %v2578 = vsel %vm452, %v2384, 0.0
        %v2579 = vrot.slane %v2578, 4
        %v2580 = vadd.f32 %v2578, %v2579
        %v2581 = vrot.slane %v2580, 2
        %v2582 = vadd.f32 %v2580, %v2581
        %v2583 = vrot.slane %v2582, 1
        %v2584 = vadd.f32 %v2582, %v2583
        %v2585 = vsel %vm452, %v2385, 0.0
        %v2586 = vrot.slane %v2585, 4
        %v2587 = vadd.f32 %v2585, %v2586
        %v2588 = vrot.slane %v2587, 2
        %v2589 = vadd.f32 %v2587, %v2588
        %v2590 = vrot.slane %v2589, 1
        %v2591 = vadd.f32 %v2589, %v2590
        %v2592 = vsel %vm452, %v2386, 0.0
        %v2593 = vrot.slane %v2592, 4
        %v2594 = vadd.f32 %v2592, %v2593
        %v2595 = vrot.slane %v2594, 2
        %v2596 = vadd.f32 %v2594, %v2595
        %v2597 = vrot.slane %v2596, 1
        %v2598 = vadd.f32 %v2596, %v2597
        %v2599 = vsel %vm452, %v2387, 0.0
        %v2600 = vrot.slane %v2599, 4
        %v2601 = vadd.f32 %v2599, %v2600
        %v2602 = vrot.slane %v2601, 2
        %v2603 = vadd.f32 %v2601, %v2602
        %v2604 = vrot.slane %v2603, 1
        %v2605 = vadd.f32 %v2603, %v2604
        %v2606 = vsel %vm452, %v2388, 0.0
        %v2607 = vrot.slane %v2606, 4
        %v2608 = vadd.f32 %v2606, %v2607
        %v2609 = vrot.slane %v2608, 2
        %v2610 = vadd.f32 %v2608, %v2609
        %v2611 = vrot.slane %v2610, 1
        %v2612 = vadd.f32 %v2610, %v2611
        %v2613 = vsel %vm452, %v2389, 0.0
        %v2614 = vrot.slane %v2613, 4
        %v2615 = vadd.f32 %v2613, %v2614
        %v2616 = vrot.slane %v2615, 2
        %v2617 = vadd.f32 %v2615, %v2616
        %v2618 = vrot.slane %v2617, 1
        %v2619 = vadd.f32 %v2617, %v2618
        %v2620 = vsel %vm452, %v2390, 0.0
        %v2621 = vrot.slane %v2620, 4
        %v2622 = vadd.f32 %v2620, %v2621
        %v2623 = vrot.slane %v2622, 2
        %v2624 = vadd.f32 %v2622, %v2623
        %v2625 = vrot.slane %v2624, 1
        %v2626 = vadd.f32 %v2624, %v2625
        %v2627 = vsel %vm452, %v2391, 0.0
        %v2628 = vrot.slane %v2627, 4
        %v2629 = vadd.f32 %v2627, %v2628
        %v2630 = vrot.slane %v2629, 2
        %v2631 = vadd.f32 %v2629, %v2630
        %v2632 = vrot.slane %v2631, 1
        %v2633 = vadd.f32 %v2631, %v2632
        %v2634 = vsel %vm452, %v2392, 0.0
        %v2635 = vrot.slane %v2634, 4
        %v2636 = vadd.f32 %v2634, %v2635
        %v2637 = vrot.slane %v2636, 2
        %v2638 = vadd.f32 %v2636, %v2637
        %v2639 = vrot.slane %v2638, 1
        %v2640 = vadd.f32 %v2638, %v2639
        %v2641 = vsel %vm452, %v2393, 0.0
        %v2642 = vrot.slane %v2641, 4
        %v2643 = vadd.f32 %v2641, %v2642
        %v2644 = vrot.slane %v2643, 2
        %v2645 = vadd.f32 %v2643, %v2644
        %v2646 = vrot.slane %v2645, 1
        %v2647 = vadd.f32 %v2645, %v2646
        %v2648 = vsel %vm452, %v2394, 0.0
        %v2649 = vrot.slane %v2648, 4
        %v2650 = vadd.f32 %v2648, %v2649
        %v2651 = vrot.slane %v2650, 2
        %v2652 = vadd.f32 %v2650, %v2651
        %v2653 = vrot.slane %v2652, 1
        %v2654 = vadd.f32 %v2652, %v2653
        %v2655 = vsel %vm452, %v2395, 0.0
        %v2656 = vrot.slane %v2655, 4
        %v2657 = vadd.f32 %v2655, %v2656
        %v2658 = vrot.slane %v2657, 2
        %v2659 = vadd.f32 %v2657, %v2658
        %v2660 = vrot.slane %v2659, 1
        %v2661 = vadd.f32 %v2659, %v2660
        %v2662 = vsel %vm452, %v2396, 0.0
        %v2663 = vrot.slane %v2662, 4
        %v2664 = vadd.f32 %v2662, %v2663
        %v2665 = vrot.slane %v2664, 2
        %v2666 = vadd.f32 %v2664, %v2665
        %v2667 = vrot.slane %v2666, 1
        %v2668 = vadd.f32 %v2666, %v2667
        %v2669 = vsel %vm452, %v2397, 0.0
        %v2670 = vrot.slane %v2669, 4
        %v2671 = vadd.f32 %v2669, %v2670
        %v2672 = vrot.slane %v2671, 2
        %v2673 = vadd.f32 %v2671, %v2672
        %v2674 = vrot.slane %v2673, 1
        %v2675 = vadd.f32 %v2673, %v2674
        %v2676 = vsel %vm452, %v2398, 0.0
        %v2677 = vrot.slane %v2676, 4
        %v2678 = vadd.f32 %v2676, %v2677
        %v2679 = vrot.slane %v2678, 2
        %v2680 = vadd.f32 %v2678, %v2679
        %v2681 = vrot.slane %v2680, 1
        %v2682 = vadd.f32 %v2680, %v2681
        %v2683 = vsel %vm452, %v2399, 0.0
        %v2684 = vrot.slane %v2683, 4
        %v2685 = vadd.f32 %v2683, %v2684
        %v2686 = vrot.slane %v2685, 2
        %v2687 = vadd.f32 %v2685, %v2686
        %v2688 = vrot.slane %v2687, 1
        %v2689 = vadd.f32 %v2687, %v2688
        %v2690 = vsel %vm452, %v2400, 0.0
        %v2691 = vrot.slane %v2690, 4
        %v2692 = vadd.f32 %v2690, %v2691
        %v2693 = vrot.slane %v2692, 2
        %v2694 = vadd.f32 %v2692, %v2693
        %v2695 = vrot.slane %v2694, 1
        %v2696 = vadd.f32 %v2694, %v2695
        %v2697 = vsel %vm452, %v2401, 0.0
        %v2698 = vrot.slane %v2697, 4
        %v2699 = vadd.f32 %v2697, %v2698
        %v2700 = vrot.slane %v2699, 2
        %v2701 = vadd.f32 %v2699, %v2700
        %v2702 = vrot.slane %v2701, 1
        %v2703 = vadd.f32 %v2701, %v2702
        %v2704 = vsel %vm452, %v2402, 0.0
        %v2705 = vrot.slane %v2704, 4
        %v2706 = vadd.f32 %v2704, %v2705
        %v2707 = vrot.slane %v2706, 2
        %v2708 = vadd.f32 %v2706, %v2707
        %v2709 = vrot.slane %v2708, 1
        %v2710 = vadd.f32 %v2708, %v2709
        %v2711 = vsel %vm452, %v2403, 0.0
        %v2712 = vrot.slane %v2711, 4
        %v2713 = vadd.f32 %v2711, %v2712
        %v2714 = vrot.slane %v2713, 2
        %v2715 = vadd.f32 %v2713, %v2714
        %v2716 = vrot.slane %v2715, 1
        %v2717 = vadd.f32 %v2715, %v2716
        %v2718 = vsel %vm452, %v2404, 0.0
        %v2719 = vrot.slane %v2718, 4
        %v2720 = vadd.f32 %v2718, %v2719
        %v2721 = vrot.slane %v2720, 2
        %v2722 = vadd.f32 %v2720, %v2721
        %v2723 = vrot.slane %v2722, 1
        %v2724 = vadd.f32 %v2722, %v2723
        %v2725 = vsel %vm452, %v2405, 0.0
        %v2726 = vrot.slane %v2725, 4
        %v2727 = vadd.f32 %v2725, %v2726
        %v2728 = vrot.slane %v2727, 2
        %v2729 = vadd.f32 %v2727, %v2728
        %v2730 = vrot.slane %v2729, 1
        %v2731 = vadd.f32 %v2729, %v2730
        %v2732 = vsel %vm452, %v2406, 0.0
        %v2733 = vrot.slane %v2732, 4
        %v2734 = vadd.f32 %v2732, %v2733
        %v2735 = vrot.slane %v2734, 2
        %v2736 = vadd.f32 %v2734, %v2735
        %v2737 = vrot.slane %v2736, 1
        %v2738 = vadd.f32 %v2736, %v2737
        %v2739 = vsel %vm452, %v2407, 0.0
        %v2740 = vrot.slane %v2739, 4
        %v2741 = vadd.f32 %v2739, %v2740
        %v2742 = vrot.slane %v2741, 2
        %v2743 = vadd.f32 %v2741, %v2742
        %v2744 = vrot.slane %v2743, 1
        %v2745 = vadd.f32 %v2743, %v2744
        %v2746 = vsel %vm452, %v2408, 0.0
        %v2747 = vrot.slane %v2746, 4
        %v2748 = vadd.f32 %v2746, %v2747
        %v2749 = vrot.slane %v2748, 2
        %v2750 = vadd.f32 %v2748, %v2749
        %v2751 = vrot.slane %v2750, 1
        %v2752 = vadd.f32 %v2750, %v2751
        %v2753 = vsel %vm452, %v2409, 0.0
        %v2754 = vrot.slane %v2753, 4
        %v2755 = vadd.f32 %v2753, %v2754
        %v2756 = vrot.slane %v2755, 2
        %v2757 = vadd.f32 %v2755, %v2756
        %v2758 = vrot.slane %v2757, 1
        %v2759 = vadd.f32 %v2757, %v2758
        %v2760 = vsel %vm452, %v2410, 0.0
        %v2761 = vrot.slane %v2760, 4
        %v2762 = vadd.f32 %v2760, %v2761
        %v2763 = vrot.slane %v2762, 2
        %v2764 = vadd.f32 %v2762, %v2763
        %v2765 = vrot.slane %v2764, 1
        %v2766 = vadd.f32 %v2764, %v2765
        %v2767 = vsel %vm452, %v2411, 0.0
        %v2768 = vrot.slane %v2767, 4
        %v2769 = vadd.f32 %v2767, %v2768
        %v2770 = vrot.slane %v2769, 2
        %v2771 = vadd.f32 %v2769, %v2770
        %v2772 = vrot.slane %v2771, 1
        %v2773 = vadd.f32 %v2771, %v2772
        %v2774 = vsel %vm452, %v2412, 0.0
        %v2775 = vrot.slane %v2774, 4
        %v2776 = vadd.f32 %v2774, %v2775
        %v2777 = vrot.slane %v2776, 2
        %v2778 = vadd.f32 %v2776, %v2777
        %v2779 = vrot.slane %v2778, 1
        %v2780 = vadd.f32 %v2778, %v2779
        %v2781 = vsel %vm452, %v2413, 0.0
        %v2782 = vrot.slane %v2781, 4
        %v2783 = vadd.f32 %v2781, %v2782
        %v2784 = vrot.slane %v2783, 2
        %v2785 = vadd.f32 %v2783, %v2784
        %v2786 = vrot.slane %v2785, 1
        %v2787 = vadd.f32 %v2785, %v2786
        %v2788 = vsel %vm452, %v2414, 0.0
        %v2789 = vrot.slane %v2788, 4
        %v2790 = vadd.f32 %v2788, %v2789
        %v2791 = vrot.slane %v2790, 2
        %v2792 = vadd.f32 %v2790, %v2791
        %v2793 = vrot.slane %v2792, 1
        %v2794 = vadd.f32 %v2792, %v2793
        %v2795 = vsel %vm452, %v2415, 0.0
        %v2796 = vrot.slane %v2795, 4
        %v2797 = vadd.f32 %v2795, %v2796
        %v2798 = vrot.slane %v2797, 2
        %v2799 = vadd.f32 %v2797, %v2798
        %v2800 = vrot.slane %v2799, 1
        %v2801 = vadd.f32 %v2799, %v2800
        %v2802 = vsel %vm452, %v2416, 0.0
        %v2803 = vrot.slane %v2802, 4
        %v2804 = vadd.f32 %v2802, %v2803
        %v2805 = vrot.slane %v2804, 2
        %v2806 = vadd.f32 %v2804, %v2805
        %v2807 = vrot.slane %v2806, 1
        %v2808 = vadd.f32 %v2806, %v2807
        %v2809 = vsel %vm452, %v2417, 0.0
        %v2810 = vrot.slane %v2809, 4
        %v2811 = vadd.f32 %v2809, %v2810
        %v2812 = vrot.slane %v2811, 2
        %v2813 = vadd.f32 %v2811, %v2812
        %v2814 = vrot.slane %v2813, 1
        %v2815 = vadd.f32 %v2813, %v2814
        %v2816 = vsel %vm452, %v2418, 0.0
        %v2817 = vrot.slane %v2816, 4
        %v2818 = vadd.f32 %v2816, %v2817
        %v2819 = vrot.slane %v2818, 2
        %v2820 = vadd.f32 %v2818, %v2819
        %v2821 = vrot.slane %v2820, 1
        %v2822 = vadd.f32 %v2820, %v2821
        %v2823 = vsel %vm452, %v2419, 0.0
        %v2824 = vrot.slane %v2823, 4
        %v2825 = vadd.f32 %v2823, %v2824
        %v2826 = vrot.slane %v2825, 2
        %v2827 = vadd.f32 %v2825, %v2826
        %v2828 = vrot.slane %v2827, 1
        %v2829 = vadd.f32 %v2827, %v2828
        %v2830 = vsel %vm452, %v2420, 0.0
        %v2831 = vrot.slane %v2830, 4
        %v2832 = vadd.f32 %v2830, %v2831
        %v2833 = vrot.slane %v2832, 2
        %v2834 = vadd.f32 %v2832, %v2833
        %v2835 = vrot.slane %v2834, 1
        %v2836 = vadd.f32 %v2834, %v2835
        %v2837 = vsel %vm452, %v2421, 0.0
        %v2838 = vrot.slane %v2837, 4
        %v2839 = vadd.f32 %v2837, %v2838
        %v2840 = vrot.slane %v2839, 2
        %v2841 = vadd.f32 %v2839, %v2840
        %v2842 = vrot.slane %v2841, 1
        %v2843 = vadd.f32 %v2841, %v2842
        %v2844 = vsel %vm452, %v2422, 0.0
        %v2845 = vrot.slane %v2844, 4
        %v2846 = vadd.f32 %v2844, %v2845
        %v2847 = vrot.slane %v2846, 2
        %v2848 = vadd.f32 %v2846, %v2847
        %v2849 = vrot.slane %v2848, 1
        %v2850 = vadd.f32 %v2848, %v2849
        %v2851 = vsel %vm452, %v2423, 0.0
        %v2852 = vrot.slane %v2851, 4
        %v2853 = vadd.f32 %v2851, %v2852
        %v2854 = vrot.slane %v2853, 2
        %v2855 = vadd.f32 %v2853, %v2854
        %v2856 = vrot.slane %v2855, 1
        %v2857 = vadd.f32 %v2855, %v2856
        %v2858 = vsel %vm452, %v2424, 0.0
        %v2859 = vrot.slane %v2858, 4
        %v2860 = vadd.f32 %v2858, %v2859
        %v2861 = vrot.slane %v2860, 2
        %v2862 = vadd.f32 %v2860, %v2861
        %v2863 = vrot.slane %v2862, 1
        %v2864 = vadd.f32 %v2862, %v2863
        %v2865 = vsel %vm452, %v2425, 0.0
        %v2866 = vrot.slane %v2865, 4
        %v2867 = vadd.f32 %v2865, %v2866
        %v2868 = vrot.slane %v2867, 2
        %v2869 = vadd.f32 %v2867, %v2868
        %v2870 = vrot.slane %v2869, 1
        %v2871 = vadd.f32 %v2869, %v2870
        %v2872 = vsel %vm452, %v2426, 0.0
        %v2873 = vrot.slane %v2872, 4
        %v2874 = vadd.f32 %v2872, %v2873
        %v2875 = vrot.slane %v2874, 2
        %v2876 = vadd.f32 %v2874, %v2875
        %v2877 = vrot.slane %v2876, 1
        %v2878 = vadd.f32 %v2876, %v2877
        %v2879 = vsel %vm452, %v2427, 0.0
        %v2880 = vrot.slane %v2879, 4
        %v2881 = vadd.f32 %v2879, %v2880
        %v2882 = vrot.slane %v2881, 2
        %v2883 = vadd.f32 %v2881, %v2882
        %v2884 = vrot.slane %v2883, 1
        %v2885 = vadd.f32 %v2883, %v2884
        %v2886 = vsel %vm452, %v2428, 0.0
        %v2887 = vrot.slane %v2886, 4
        %v2888 = vadd.f32 %v2886, %v2887
        %v2889 = vrot.slane %v2888, 2
        %v2890 = vadd.f32 %v2888, %v2889
        %v2891 = vrot.slane %v2890, 1
        %v2892 = vadd.f32 %v2890, %v2891
        %v2893 = vsel %vm452, %v2429, 0.0
        %v2894 = vrot.slane %v2893, 4
        %v2895 = vadd.f32 %v2893, %v2894
        %v2896 = vrot.slane %v2895, 2
        %v2897 = vadd.f32 %v2895, %v2896
        %v2898 = vrot.slane %v2897, 1
        %v2899 = vadd.f32 %v2897, %v2898
        %v2900 = vsel %vm452, %v2430, 0.0
        %v2901 = vrot.slane %v2900, 4
        %v2902 = vadd.f32 %v2900, %v2901
        %v2903 = vrot.slane %v2902, 2
        %v2904 = vadd.f32 %v2902, %v2903
        %v2905 = vrot.slane %v2904, 1
        %v2906 = vadd.f32 %v2904, %v2905
        %v2907 = vsel %vm452, %v2431, 0.0
        %v2908 = vrot.slane %v2907, 4
        %v2909 = vadd.f32 %v2907, %v2908
        %v2910 = vrot.slane %v2909, 2
        %v2911 = vadd.f32 %v2909, %v2910
        %v2912 = vrot.slane %v2911, 1
        %v2913 = vadd.f32 %v2911, %v2912
        %v2914 = vsel %vm452, %v2432, 0.0
        %v2915 = vrot.slane %v2914, 4
        %v2916 = vadd.f32 %v2914, %v2915
        %v2917 = vrot.slane %v2916, 2
        %v2918 = vadd.f32 %v2916, %v2917
        %v2919 = vrot.slane %v2918, 1
        %v2920 = vadd.f32 %v2918, %v2919
        %v2921 = vsel %vm452, %v2433, 0.0
        %v2922 = vrot.slane %v2921, 4
        %v2923 = vadd.f32 %v2921, %v2922
        %v2924 = vrot.slane %v2923, 2
        %v2925 = vadd.f32 %v2923, %v2924
        %v2926 = vrot.slane %v2925, 1
        %v2927 = vadd.f32 %v2925, %v2926
        %v2928 = vsel %vm452, %v2434, 0.0
        %v2929 = vrot.slane %v2928, 4
        %v2930 = vadd.f32 %v2928, %v2929
        %v2931 = vrot.slane %v2930, 2
        %v2932 = vadd.f32 %v2930, %v2931
        %v2933 = vrot.slane %v2932, 1
        %v2934 = vadd.f32 %v2932, %v2933
        %v2935 = vsel %vm452, %v2435, 0.0
        %v2936 = vrot.slane %v2935, 4
        %v2937 = vadd.f32 %v2935, %v2936
        %v2938 = vrot.slane %v2937, 2
        %v2939 = vadd.f32 %v2937, %v2938
        %v2940 = vrot.slane %v2939, 1
        %v2941 = vadd.f32 %v2939, %v2940
        %v2942 = vsel %vm452, %v2436, 0.0
        %v2943 = vrot.slane %v2942, 4
        %v2944 = vadd.f32 %v2942, %v2943
        %v2945 = vrot.slane %v2944, 2
        %v2946 = vadd.f32 %v2944, %v2945
        %v2947 = vrot.slane %v2946, 1
        %v2948 = vadd.f32 %v2946, %v2947
        %v2949 = vsel %vm452, %v2437, 0.0
        %v2950 = vrot.slane %v2949, 4
        %v2951 = vadd.f32 %v2949, %v2950
        %v2952 = vrot.slane %v2951, 2
        %v2953 = vadd.f32 %v2951, %v2952
        %v2954 = vrot.slane %v2953, 1
        %v2955 = vadd.f32 %v2953, %v2954
        %v2956 = vsel %vm452, %v2438, 0.0
        %v2957 = vrot.slane %v2956, 4
        %v2958 = vadd.f32 %v2956, %v2957
        %v2959 = vrot.slane %v2958, 2
        %v2960 = vadd.f32 %v2958, %v2959
        %v2961 = vrot.slane %v2960, 1
        %v2962 = vadd.f32 %v2960, %v2961
        %v2963 = vsel %vm452, %v2439, 0.0
        %v2964 = vrot.slane %v2963, 4
        %v2965 = vadd.f32 %v2963, %v2964
        %v2966 = vrot.slane %v2965, 2
        %v2967 = vadd.f32 %v2965, %v2966
        %v2968 = vrot.slane %v2967, 1
        %v2969 = vadd.f32 %v2967, %v2968
        %v2970 = vsel %vm452, %v2440, 0.0
        %v2971 = vrot.slane %v2970, 4
        %v2972 = vadd.f32 %v2970, %v2971
        %v2973 = vrot.slane %v2972, 2
        %v2974 = vadd.f32 %v2972, %v2973
        %v2975 = vrot.slane %v2974, 1
        %v2976 = vadd.f32 %v2974, %v2975
        %v2977 = vsel %vm452, %v2441, 0.0
        %v2978 = vrot.slane %v2977, 4
        %v2979 = vadd.f32 %v2977, %v2978
        %v2980 = vrot.slane %v2979, 2
        %v2981 = vadd.f32 %v2979, %v2980
        %v2982 = vrot.slane %v2981, 1
        %v2983 = vadd.f32 %v2981, %v2982
        %v2984 = vsel %vm452, %v2442, 0.0
        %v2985 = vrot.slane %v2984, 4
        %v2986 = vadd.f32 %v2984, %v2985
        %v2987 = vrot.slane %v2986, 2
        %v2988 = vadd.f32 %v2986, %v2987
        %v2989 = vrot.slane %v2988, 1
        %v2990 = vadd.f32 %v2988, %v2989
        %v2991 = vsel %vm452, %v2443, 0.0
        %v2992 = vrot.slane %v2991, 4
        %v2993 = vadd.f32 %v2991, %v2992
        %v2994 = vrot.slane %v2993, 2
        %v2995 = vadd.f32 %v2993, %v2994
        %v2996 = vrot.slane %v2995, 1
        %v2997 = vadd.f32 %v2995, %v2996
        %v2998 = vsel %vm452, %v2444, 0.0
        %v2999 = vrot.slane %v2998, 4
        %v3000 = vadd.f32 %v2998, %v2999
        %v3001 = vrot.slane %v3000, 2
        %v3002 = vadd.f32 %v3000, %v3001
        %v3003 = vrot.slane %v3002, 1
        %v3004 = vadd.f32 %v3002, %v3003
        %v3005 = vsel %vm452, %v2445, 0.0
        %v3006 = vrot.slane %v3005, 4
        %v3007 = vadd.f32 %v3005, %v3006
        %v3008 = vrot.slane %v3007, 2
        %v3009 = vadd.f32 %v3007, %v3008
        %v3010 = vrot.slane %v3009, 1
        %v3011 = vadd.f32 %v3009, %v3010
        %v3012 = vsel %vm452, %v2446, 0.0
        %v3013 = vrot.slane %v3012, 4
        %v3014 = vadd.f32 %v3012, %v3013
        %v3015 = vrot.slane %v3014, 2
        %v3016 = vadd.f32 %v3014, %v3015
        %v3017 = vrot.slane %v3016, 1
        %v3018 = vadd.f32 %v3016, %v3017
        %v3019 = vsel %vm452, %v2447, 0.0
        %v3020 = vrot.slane %v3019, 4
        %v3021 = vadd.f32 %v3019, %v3020
        %v3022 = vrot.slane %v3021, 2
        %v3023 = vadd.f32 %v3021, %v3022
        %v3024 = vrot.slane %v3023, 1
        %v3025 = vadd.f32 %v3023, %v3024
        %v3026 = vsel %vm452, %v2448, 0.0
        %v3027 = vrot.slane %v3026, 4
        %v3028 = vadd.f32 %v3026, %v3027
        %v3029 = vrot.slane %v3028, 2
        %v3030 = vadd.f32 %v3028, %v3029
        %v3031 = vrot.slane %v3030, 1
        %v3032 = vadd.f32 %v3030, %v3031
        %v3033 = vsel %vm452, %v2449, 0.0
        %v3034 = vrot.slane %v3033, 4
        %v3035 = vadd.f32 %v3033, %v3034
        %v3036 = vrot.slane %v3035, 2
        %v3037 = vadd.f32 %v3035, %v3036
        %v3038 = vrot.slane %v3037, 1
        %v3039 = vadd.f32 %v3037, %v3038
        %v3040 = vsel %vm452, %v2450, 0.0
        %v3041 = vrot.slane %v3040, 4
        %v3042 = vadd.f32 %v3040, %v3041
        %v3043 = vrot.slane %v3042, 2
        %v3044 = vadd.f32 %v3042, %v3043
        %v3045 = vrot.slane %v3044, 1
        %v3046 = vadd.f32 %v3044, %v3045
        %v3047 = vsel %vm452, %v2451, 0.0
        %v3048 = vrot.slane %v3047, 4
        %v3049 = vadd.f32 %v3047, %v3048
        %v3050 = vrot.slane %v3049, 2
        %v3051 = vadd.f32 %v3049, %v3050
        %v3052 = vrot.slane %v3051, 1
        %v3053 = vadd.f32 %v3051, %v3052
        %v3054 = vsel %vm452, %v2452, 0.0
        %v3055 = vrot.slane %v3054, 4
        %v3056 = vadd.f32 %v3054, %v3055
        %v3057 = vrot.slane %v3056, 2
        %v3058 = vadd.f32 %v3056, %v3057
        %v3059 = vrot.slane %v3058, 1
        %v3060 = vadd.f32 %v3058, %v3059
        %v3061 = vsel %vm452, %v2453, 0.0
        %v3062 = vrot.slane %v3061, 4
        %v3063 = vadd.f32 %v3061, %v3062
        %v3064 = vrot.slane %v3063, 2
        %v3065 = vadd.f32 %v3063, %v3064
        %v3066 = vrot.slane %v3065, 1
        %v3067 = vadd.f32 %v3065, %v3066
        %v3068 = vsel %vm452, %v2454, 0.0
        %v3069 = vrot.slane %v3068, 4
        %v3070 = vadd.f32 %v3068, %v3069
        %v3071 = vrot.slane %v3070, 2
        %v3072 = vadd.f32 %v3070, %v3071
        %v3073 = vrot.slane %v3072, 1
        %v3074 = vadd.f32 %v3072, %v3073
        %v3075 = vsel %vm452, %v2455, 0.0
        %v3076 = vrot.slane %v3075, 4
        %v3077 = vadd.f32 %v3075, %v3076
        %v3078 = vrot.slane %v3077, 2
        %v3079 = vadd.f32 %v3077, %v3078
        %v3080 = vrot.slane %v3079, 1
        %v3081 = vadd.f32 %v3079, %v3080
        %v3082 = vsel %vm452, %v2456, 0.0
        %v3083 = vrot.slane %v3082, 4
        %v3084 = vadd.f32 %v3082, %v3083
        %v3085 = vrot.slane %v3084, 2
        %v3086 = vadd.f32 %v3084, %v3085
        %v3087 = vrot.slane %v3086, 1
        %v3088 = vadd.f32 %v3086, %v3087
        %v3089 = vsel %vm452, %v2457, 0.0
        %v3090 = vrot.slane %v3089, 4
        %v3091 = vadd.f32 %v3089, %v3090
        %v3092 = vrot.slane %v3091, 2
        %v3093 = vadd.f32 %v3091, %v3092
        %v3094 = vrot.slane %v3093, 1
        %v3095 = vadd.f32 %v3093, %v3094
        %v3096 = vsel %vm452, %v2458, 0.0
        %v3097 = vrot.slane %v3096, 4
        %v3098 = vadd.f32 %v3096, %v3097
        %v3099 = vrot.slane %v3098, 2
        %v3100 = vadd.f32 %v3098, %v3099
        %v3101 = vrot.slane %v3100, 1
        %v3102 = vadd.f32 %v3100, %v3101
        %v3103 = vsel %vm452, %v2459, 0.0
        %v3104 = vrot.slane %v3103, 4
        %v3105 = vadd.f32 %v3103, %v3104
        %v3106 = vrot.slane %v3105, 2
        %v3107 = vadd.f32 %v3105, %v3106
        %v3108 = vrot.slane %v3107, 1
        %v3109 = vadd.f32 %v3107, %v3108
        %v3110 = vsel %vm452, %v2460, 0.0
        %v3111 = vrot.slane %v3110, 4
        %v3112 = vadd.f32 %v3110, %v3111
        %v3113 = vrot.slane %v3112, 2
        %v3114 = vadd.f32 %v3112, %v3113
        %v3115 = vrot.slane %v3114, 1
        %v3116 = vadd.f32 %v3114, %v3115
        %v3117 = vsel %vm452, %v2461, 0.0
        %v3118 = vrot.slane %v3117, 4
        %v3119 = vadd.f32 %v3117, %v3118
        %v3120 = vrot.slane %v3119, 2
        %v3121 = vadd.f32 %v3119, %v3120
        %v3122 = vrot.slane %v3121, 1
        %v3123 = vadd.f32 %v3121, %v3122
        %v3124 = vsel %vm452, %v2462, 0.0
        %v3125 = vrot.slane %v3124, 4
        %v3126 = vadd.f32 %v3124, %v3125
        %v3127 = vrot.slane %v3126, 2
        %v3128 = vadd.f32 %v3126, %v3127
        %v3129 = vrot.slane %v3128, 1
        %v3130 = vadd.f32 %v3128, %v3129
        %v3131 = vsel %vm452, %v2463, 0.0
        %v3132 = vrot.slane %v3131, 4
        %v3133 = vadd.f32 %v3131, %v3132
        %v3134 = vrot.slane %v3133, 2
        %v3135 = vadd.f32 %v3133, %v3134
        %v3136 = vrot.slane %v3135, 1
        %v3137 = vadd.f32 %v3135, %v3136
        %v3138 = vsel %vm452, %v2464, 0.0
        %v3139 = vrot.slane %v3138, 4
        %v3140 = vadd.f32 %v3138, %v3139
        %v3141 = vrot.slane %v3140, 2
        %v3142 = vadd.f32 %v3140, %v3141
        %v3143 = vrot.slane %v3142, 1
        %v3144 = vadd.f32 %v3142, %v3143
        %v3145 = vsel %vm452, %v2465, 0.0
        %v3146 = vrot.slane %v3145, 4
        %v3147 = vadd.f32 %v3145, %v3146
        %v3148 = vrot.slane %v3147, 2
        %v3149 = vadd.f32 %v3147, %v3148
        %v3150 = vrot.slane %v3149, 1
        %v3151 = vadd.f32 %v3149, %v3150
        %v3152 = vsel %vm452, %v2466, 0.0
        %v3153 = vrot.slane %v3152, 4
        %v3154 = vadd.f32 %v3152, %v3153
        %v3155 = vrot.slane %v3154, 2
        %v3156 = vadd.f32 %v3154, %v3155
        %v3157 = vrot.slane %v3156, 1
        %v3158 = vadd.f32 %v3156, %v3157
        %v3159 = vsel %vm452, %v2467, 0.0
        %v3160 = vrot.slane %v3159, 4
        %v3161 = vadd.f32 %v3159, %v3160
        %v3162 = vrot.slane %v3161, 2
        %v3163 = vadd.f32 %v3161, %v3162
        %v3164 = vrot.slane %v3163, 1
        %v3165 = vadd.f32 %v3163, %v3164
        %v3166 = vsel %vm452, %v2468, 0.0
        %v3167 = vrot.slane %v3166, 4
        %v3168 = vadd.f32 %v3166, %v3167
        %v3169 = vrot.slane %v3168, 2
        %v3170 = vadd.f32 %v3168, %v3169
        %v3171 = vrot.slane %v3170, 1
        %v3172 = vadd.f32 %v3170, %v3171
        %v3173 = vsel %vm452, %v2469, 0.0
        %v3174 = vrot.slane %v3173, 4
        %v3175 = vadd.f32 %v3173, %v3174
        %v3176 = vrot.slane %v3175, 2
        %v3177 = vadd.f32 %v3175, %v3176
        %v3178 = vrot.slane %v3177, 1
        %v3179 = vadd.f32 %v3177, %v3178
        %v3180 = vsel %vm452, %v2470, 0.0
        %v3181 = vrot.slane %v3180, 4
        %v3182 = vadd.f32 %v3180, %v3181
        %v3183 = vrot.slane %v3182, 2
        %v3184 = vadd.f32 %v3182, %v3183
        %v3185 = vrot.slane %v3184, 1
        %v3186 = vadd.f32 %v3184, %v3185
        %v3187 = vsel %vm452, %v2471, 0.0
        %v3188 = vrot.slane %v3187, 4
        %v3189 = vadd.f32 %v3187, %v3188
        %v3190 = vrot.slane %v3189, 2
        %v3191 = vadd.f32 %v3189, %v3190
        %v3192 = vrot.slane %v3191, 1
        %v3193 = vadd.f32 %v3191, %v3192
        %v3194 = vsel %vm452, %v2472, 0.0
        %v3195 = vrot.slane %v3194, 4
        %v3196 = vadd.f32 %v3194, %v3195
        %v3197 = vrot.slane %v3196, 2
        %v3198 = vadd.f32 %v3196, %v3197
        %v3199 = vrot.slane %v3198, 1
        %v3200 = vadd.f32 %v3198, %v3199
        %v3201 = vsel %vm452, %v2473, 0.0
        %v3202 = vrot.slane %v3201, 4
        %v3203 = vadd.f32 %v3201, %v3202
        %v3204 = vrot.slane %v3203, 2
        %v3205 = vadd.f32 %v3203, %v3204
        %v3206 = vrot.slane %v3205, 1
        %v3207 = vadd.f32 %v3205, %v3206
        %v3208 = vsel %vm452, %v2474, 0.0
        %v3209 = vrot.slane %v3208, 4
        %v3210 = vadd.f32 %v3208, %v3209
        %v3211 = vrot.slane %v3210, 2
        %v3212 = vadd.f32 %v3210, %v3211
        %v3213 = vrot.slane %v3212, 1
        %v3214 = vadd.f32 %v3212, %v3213
        %v3215 = vsel %vm452, %v2475, 0.0
        %v3216 = vrot.slane %v3215, 4
        %v3217 = vadd.f32 %v3215, %v3216
        %v3218 = vrot.slane %v3217, 2
        %v3219 = vadd.f32 %v3217, %v3218
        %v3220 = vrot.slane %v3219, 1
        %v3221 = vadd.f32 %v3219, %v3220
        %v3222 = vsel %vm452, %v2476, 0.0
        %v3223 = vrot.slane %v3222, 4
        %v3224 = vadd.f32 %v3222, %v3223
        %v3225 = vrot.slane %v3224, 2
        %v3226 = vadd.f32 %v3224, %v3225
        %v3227 = vrot.slane %v3226, 1
        %v3228 = vadd.f32 %v3226, %v3227
        %v3229 = vsel %vm452, %v2477, 0.0
        %v3230 = vrot.slane %v3229, 4
        %v3231 = vadd.f32 %v3229, %v3230
        %v3232 = vrot.slane %v3231, 2
        %v3233 = vadd.f32 %v3231, %v3232
        %v3234 = vrot.slane %v3233, 1
        %v3235 = vadd.f32 %v3233, %v3234
        %v3236 = vsel %vm452, %v2478, 0.0
        %v3237 = vrot.slane %v3236, 4
        %v3238 = vadd.f32 %v3236, %v3237
        %v3239 = vrot.slane %v3238, 2
        %v3240 = vadd.f32 %v3238, %v3239
        %v3241 = vrot.slane %v3240, 1
        %v3242 = vadd.f32 %v3240, %v3241
        %v3243 = vsel %vm452, %v2479, 0.0
        %v3244 = vrot.slane %v3243, 4
        %v3245 = vadd.f32 %v3243, %v3244
        %v3246 = vrot.slane %v3245, 2
        %v3247 = vadd.f32 %v3245, %v3246
        %v3248 = vrot.slane %v3247, 1
        %v3249 = vadd.f32 %v3247, %v3248
        %v3250 = vsel %vm452, %v2480, 0.0
        %v3251 = vrot.slane %v3250, 4
        %v3252 = vadd.f32 %v3250, %v3251
        %v3253 = vrot.slane %v3252, 2
        %v3254 = vadd.f32 %v3252, %v3253
        %v3255 = vrot.slane %v3254, 1
        %v3256 = vadd.f32 %v3254, %v3255
        %v3257 = vsel %vm452, %v2481, 0.0
        %v3258 = vrot.slane %v3257, 4
        %v3259 = vadd.f32 %v3257, %v3258
        %v3260 = vrot.slane %v3259, 2
        %v3261 = vadd.f32 %v3259, %v3260
        %v3262 = vrot.slane %v3261, 1
        %v3263 = vadd.f32 %v3261, %v3262
        %v3264 = vsel %vm452, %v2482, 0.0
        %v3265 = vrot.slane %v3264, 4
        %v3266 = vadd.f32 %v3264, %v3265
        %v3267 = vrot.slane %v3266, 2
        %v3268 = vadd.f32 %v3266, %v3267
        %v3269 = vrot.slane %v3268, 1
        %v3270 = vadd.f32 %v3268, %v3269
        %v3271 = vsel %vm452, %v2483, 0.0
        %v3272 = vrot.slane %v3271, 4
        %v3273 = vadd.f32 %v3271, %v3272
        %v3274 = vrot.slane %v3273, 2
        %v3275 = vadd.f32 %v3273, %v3274
        %v3276 = vrot.slane %v3275, 1
        %v3277 = vadd.f32 %v3275, %v3276
        %v3278 = vsel %vm452, %v2484, 0.0
        %v3279 = vrot.slane %v3278, 4
        %v3280 = vadd.f32 %v3278, %v3279
        %v3281 = vrot.slane %v3280, 2
        %v3282 = vadd.f32 %v3280, %v3281
        %v3283 = vrot.slane %v3282, 1
        %v3284 = vadd.f32 %v3282, %v3283
        %v3285 = vsel %vm452, %v2485, 0.0
        %v3286 = vrot.slane %v3285, 4
        %v3287 = vadd.f32 %v3285, %v3286
        %v3288 = vrot.slane %v3287, 2
        %v3289 = vadd.f32 %v3287, %v3288
        %v3290 = vrot.slane %v3289, 1
        %v3291 = vadd.f32 %v3289, %v3290
        %v3292 = vsel %vm452, %v2486, 0.0
        %v3293 = vrot.slane %v3292, 4
        %v3294 = vadd.f32 %v3292, %v3293
        %v3295 = vrot.slane %v3294, 2
        %v3296 = vadd.f32 %v3294, %v3295
        %v3297 = vrot.slane %v3296, 1
        %v3298 = vadd.f32 %v3296, %v3297
        %v3299 = vsel %vm452, %v2487, 0.0
        %v3300 = vrot.slane %v3299, 4
        %v3301 = vadd.f32 %v3299, %v3300
        %v3302 = vrot.slane %v3301, 2
        %v3303 = vadd.f32 %v3301, %v3302
        %v3304 = vrot.slane %v3303, 1
        %v3305 = vadd.f32 %v3303, %v3304
        %v3306 = vsel %vm452, %v2488, 0.0
        %v3307 = vrot.slane %v3306, 4
        %v3308 = vadd.f32 %v3306, %v3307
        %v3309 = vrot.slane %v3308, 2
        %v3310 = vadd.f32 %v3308, %v3309
        %v3311 = vrot.slane %v3310, 1
        %v3312 = vadd.f32 %v3310, %v3311
        %v3313 = vsel %vm452, %v2489, 0.0
        %v3314 = vrot.slane %v3313, 4
        %v3315 = vadd.f32 %v3313, %v3314
        %v3316 = vrot.slane %v3315, 2
        %v3317 = vadd.f32 %v3315, %v3316
        %v3318 = vrot.slane %v3317, 1
        %v3319 = vadd.f32 %v3317, %v3318
        %v3320 = vsel %vm452, %v2490, 0.0
        %v3321 = vrot.slane %v3320, 4
        %v3322 = vadd.f32 %v3320, %v3321
        %v3323 = vrot.slane %v3322, 2
        %v3324 = vadd.f32 %v3322, %v3323
        %v3325 = vrot.slane %v3324, 1
        %v3326 = vadd.f32 %v3324, %v3325
        %v3327 = vsel %vm452, %v2491, 0.0
        %v3328 = vrot.slane %v3327, 4
        %v3329 = vadd.f32 %v3327, %v3328
        %v3330 = vrot.slane %v3329, 2
        %v3331 = vadd.f32 %v3329, %v3330
        %v3332 = vrot.slane %v3331, 1
        %v3333 = vadd.f32 %v3331, %v3332
        %v3334 = vsel %vm452, %v2492, 0.0
        %v3335 = vrot.slane %v3334, 4
        %v3336 = vadd.f32 %v3334, %v3335
        %v3337 = vrot.slane %v3336, 2
        %v3338 = vadd.f32 %v3336, %v3337
        %v3339 = vrot.slane %v3338, 1
        %v3340 = vadd.f32 %v3338, %v3339
        %v3341 = vsel %vm452, %v2493, 0.0
        %v3342 = vrot.slane %v3341, 4
        %v3343 = vadd.f32 %v3341, %v3342
        %v3344 = vrot.slane %v3343, 2
        %v3345 = vadd.f32 %v3343, %v3344
        %v3346 = vrot.slane %v3345, 1
        %v3347 = vadd.f32 %v3345, %v3346
        %v3348 = vsel %vm452, %v2494, 0.0
        %v3349 = vrot.slane %v3348, 4
        %v3350 = vadd.f32 %v3348, %v3349
        %v3351 = vrot.slane %v3350, 2
        %v3352 = vadd.f32 %v3350, %v3351
        %v3353 = vrot.slane %v3352, 1
        %v3354 = vadd.f32 %v3352, %v3353
        %v3355 = vsel %vm452, %v2495, 0.0
        %v3356 = vrot.slane %v3355, 4
        %v3357 = vadd.f32 %v3355, %v3356
        %v3358 = vrot.slane %v3357, 2
        %v3359 = vadd.f32 %v3357, %v3358
        %v3360 = vrot.slane %v3359, 1
        %v3361 = vadd.f32 %v3359, %v3360
        %v3362 = vsel %vm452, %v2496, 0.0
        %v3363 = vrot.slane %v3362, 4
        %v3364 = vadd.f32 %v3362, %v3363
        %v3365 = vrot.slane %v3364, 2
        %v3366 = vadd.f32 %v3364, %v3365
        %v3367 = vrot.slane %v3366, 1
        %v3368 = vadd.f32 %v3366, %v3367
        %v3369 = vsel %vm452, %v2497, 0.0
        %v3370 = vrot.slane %v3369, 4
        %v3371 = vadd.f32 %v3369, %v3370
        %v3372 = vrot.slane %v3371, 2
        %v3373 = vadd.f32 %v3371, %v3372
        %v3374 = vrot.slane %v3373, 1
        %v3375 = vadd.f32 %v3373, %v3374
        %v3376 = vsel %vm452, %v2498, 0.0
        %v3377 = vrot.slane %v3376, 4
        %v3378 = vadd.f32 %v3376, %v3377
        %v3379 = vrot.slane %v3378, 2
        %v3380 = vadd.f32 %v3378, %v3379
        %v3381 = vrot.slane %v3380, 1
        %v3382 = vadd.f32 %v3380, %v3381
        %v3383 = vsel %vm452, %v2499, 0.0
        %v3384 = vrot.slane %v3383, 4
        %v3385 = vadd.f32 %v3383, %v3384
        %v3386 = vrot.slane %v3385, 2
        %v3387 = vadd.f32 %v3385, %v3386
        %v3388 = vrot.slane %v3387, 1
        %v3389 = vadd.f32 %v3387, %v3388
        %v3390 = vsel %vm452, %v2500, 0.0
        %v3391 = vrot.slane %v3390, 4
        %v3392 = vadd.f32 %v3390, %v3391
        %v3393 = vrot.slane %v3392, 2
        %v3394 = vadd.f32 %v3392, %v3393
        %v3395 = vrot.slane %v3394, 1
        %v3396 = vadd.f32 %v3394, %v3395
        %v3397 = vld [vmem:[%s3] sm:$0xff]
        %v3398 = vld [vmem:[%s3 + $0x8] sm:$0xff]
        %v3399 = vld [vmem:[%s3 + $0x10] sm:$0xff]
        %v3400 = vld [vmem:[%s3 + $0x18] sm:$0xff]
        %v3401 = vld [vmem:[%s3 + $0x20] sm:$0xff]
        %v3402 = vld [vmem:[%s3 + $0x28] sm:$0xff]
        %v3403 = vld [vmem:[%s3 + $0x30] sm:$0xff]
        %v3404 = vld [vmem:[%s3 + $0x38] sm:$0xff]
        %vm3533 = vcmask 1041409
        %v3534 = vsel %vm3533, %v1490, %v1483
        %vm3535 = vcmask 1042434
        %v3536 = vsel %vm3535, %v1497, %v3534
        %vm3537 = vcmask 1043459
        %v3538 = vsel %vm3537, %v1504, %v3536
        %vm3539 = vcmask 1044484
        %v3540 = vsel %vm3539, %v1511, %v3538
        %vm3541 = vcmask 1045509
        %v3542 = vsel %vm3541, %v1518, %v3540
        %vm3543 = vcmask 1046534
        %v3544 = vsel %vm3543, %v1525, %v3542
        %vm3545 = vcmask 1047559
        %v3546 = vsel %vm3545, %v1532, %v3544
        %v3547 = vsel %vm3533, %v1546, %v1539
        %v3548 = vsel %vm3535, %v1553, %v3547
        %v3549 = vsel %vm3537, %v1560, %v3548
        %v3550 = vsel %vm3539, %v1567, %v3549
        %v3551 = vsel %vm3541, %v1574, %v3550
        %v3552 = vsel %vm3543, %v1581, %v3551
        %v3553 = vsel %vm3545, %v1588, %v3552
        %v3554 = vsel %vm3533, %v1602, %v1595
        %v3555 = vsel %vm3535, %v1609, %v3554
        %v3556 = vsel %vm3537, %v1616, %v3555
        %v3557 = vsel %vm3539, %v1623, %v3556
        %v3558 = vsel %vm3541, %v1630, %v3557
        %v3559 = vsel %vm3543, %v1637, %v3558
        %v3560 = vsel %vm3545, %v1644, %v3559
        %v3561 = vsel %vm3533, %v1658, %v1651
        %v3562 = vsel %vm3535, %v1665, %v3561
        %v3563 = vsel %vm3537, %v1672, %v3562
        %v3564 = vsel %vm3539, %v1679, %v3563
        %v3565 = vsel %vm3541, %v1686, %v3564
        %v3566 = vsel %vm3543, %v1693, %v3565
        %v3567 = vsel %vm3545, %v1700, %v3566
        %v3568 = vsel %vm3533, %v1714, %v1707
        %v3569 = vsel %vm3535, %v1721, %v3568
        %v3570 = vsel %vm3537, %v1728, %v3569
        %v3571 = vsel %vm3539, %v1735, %v3570
        %v3572 = vsel %vm3541, %v1742, %v3571
        %v3573 = vsel %vm3543, %v1749, %v3572
        %v3574 = vsel %vm3545, %v1756, %v3573
        %v3575 = vsel %vm3533, %v1770, %v1763
        %v3576 = vsel %vm3535, %v1777, %v3575
        %v3577 = vsel %vm3537, %v1784, %v3576
        %v3578 = vsel %vm3539, %v1791, %v3577
        %v3579 = vsel %vm3541, %v1798, %v3578
        %v3580 = vsel %vm3543, %v1805, %v3579
        %v3581 = vsel %vm3545, %v1812, %v3580
        %v3582 = vsel %vm3533, %v1826, %v1819
        %v3583 = vsel %vm3535, %v1833, %v3582
        %v3584 = vsel %vm3537, %v1840, %v3583
        %v3585 = vsel %vm3539, %v1847, %v3584
        %v3586 = vsel %vm3541, %v1854, %v3585
        %v3587 = vsel %vm3543, %v1861, %v3586
        %v3588 = vsel %vm3545, %v1868, %v3587
        %v3589 = vsel %vm3533, %v1882, %v1875
        %v3590 = vsel %vm3535, %v1889, %v3589
        %v3591 = vsel %vm3537, %v1896, %v3590
        %v3592 = vsel %vm3539, %v1903, %v3591
        %v3593 = vsel %vm3541, %v1910, %v3592
        %v3594 = vsel %vm3543, %v1917, %v3593
        %v3595 = vsel %vm3545, %v1924, %v3594
        %v3596 = vsel %vm3533, %v1938, %v1931
        %v3597 = vsel %vm3535, %v1945, %v3596
        %v3598 = vsel %vm3537, %v1952, %v3597
        %v3599 = vsel %vm3539, %v1959, %v3598
        %v3600 = vsel %vm3541, %v1966, %v3599
        %v3601 = vsel %vm3543, %v1973, %v3600
        %v3602 = vsel %vm3545, %v1980, %v3601
        %v3603 = vsel %vm3533, %v1994, %v1987
        %v3604 = vsel %vm3535, %v2001, %v3603
        %v3605 = vsel %vm3537, %v2008, %v3604
        %v3606 = vsel %vm3539, %v2015, %v3605
        %v3607 = vsel %vm3541, %v2022, %v3606
        %v3608 = vsel %vm3543, %v2029, %v3607
        %v3609 = vsel %vm3545, %v2036, %v3608
        %v3610 = vsel %vm3533, %v2050, %v2043
        %v3611 = vsel %vm3535, %v2057, %v3610
        %v3612 = vsel %vm3537, %v2064, %v3611
        %v3613 = vsel %vm3539, %v2071, %v3612
        %v3614 = vsel %vm3541, %v2078, %v3613
        %v3615 = vsel %vm3543, %v2085, %v3614
        %v3616 = vsel %vm3545, %v2092, %v3615
        %v3617 = vsel %vm3533, %v2106, %v2099
        %v3618 = vsel %vm3535, %v2113, %v3617
        %v3619 = vsel %vm3537, %v2120, %v3618
        %v3620 = vsel %vm3539, %v2127, %v3619
        %v3621 = vsel %vm3541, %v2134, %v3620
        %v3622 = vsel %vm3543, %v2141, %v3621
        %v3623 = vsel %vm3545, %v2148, %v3622
        %v3624 = vsel %vm3533, %v2162, %v2155
        %v3625 = vsel %vm3535, %v2169, %v3624
        %v3626 = vsel %vm3537, %v2176, %v3625
        %v3627 = vsel %vm3539, %v2183, %v3626
        %v3628 = vsel %vm3541, %v2190, %v3627
        %v3629 = vsel %vm3543, %v2197, %v3628
        %v3630 = vsel %vm3545, %v2204, %v3629
        %v3631 = vsel %vm3533, %v2218, %v2211
        %v3632 = vsel %vm3535, %v2225, %v3631
        %v3633 = vsel %vm3537, %v2232, %v3632
        %v3634 = vsel %vm3539, %v2239, %v3633
        %v3635 = vsel %vm3541, %v2246, %v3634
        %v3636 = vsel %vm3543, %v2253, %v3635
        %v3637 = vsel %vm3545, %v2260, %v3636
        %v3638 = vsel %vm3533, %v2274, %v2267
        %v3639 = vsel %vm3535, %v2281, %v3638
        %v3640 = vsel %vm3537, %v2288, %v3639
        %v3641 = vsel %vm3539, %v2295, %v3640
        %v3642 = vsel %vm3541, %v2302, %v3641
        %v3643 = vsel %vm3543, %v2309, %v3642
        %v3644 = vsel %vm3545, %v2316, %v3643
        %v3645 = vsel %vm3533, %v2330, %v2323
        %v3646 = vsel %vm3535, %v2337, %v3645
        %v3647 = vsel %vm3537, %v2344, %v3646
        %v3648 = vsel %vm3539, %v2351, %v3647
        %v3649 = vsel %vm3541, %v2358, %v3648
        %v3650 = vsel %vm3543, %v2365, %v3649
        %v3651 = vsel %vm3545, %v2372, %v3650
        %v3652 = vsel %vm452, %v3546, 0
        %v3654 = vsel %vm452, %v3553, 0
        %v3656 = vsel %vm452, %v3560, 0
        %v3658 = vsel %vm452, %v3567, 0
        %v3660 = vsel %vm452, %v3574, 0
        %v3662 = vsel %vm452, %v3581, 0
        %v3664 = vsel %vm452, %v3588, 0
        %v3666 = vsel %vm452, %v3595, 0
        %v3668 = vsel %vm452, %v3602, 0
        %v3670 = vsel %vm452, %v3609, 0
        %v3672 = vsel %vm452, %v3616, 0
        %v3674 = vsel %vm452, %v3623, 0
        %v3676 = vsel %vm452, %v3630, 0
        %v3678 = vsel %vm452, %v3637, 0
        %v3680 = vsel %vm452, %v3644, 0
        %v3682 = vsel %vm452, %v3651, 0
        %3684 = vmatprep.subr.mxu0 0.0
        %3685 = vmatpush1.msra.mxu0 %v3401
        %3686 = vmatprep.subr.mxu0 0.0
        %3687 = vmatpush1.msra.mxu0 %v3402
        %3688 = vmatprep.subr.mxu0 0.0
        %3689 = vmatpush1.msra.mxu0 %v3403
        %3690 = vmatprep.subr.mxu0 0.0
        %3691 = vmatpush1.msra.mxu0 %v3404
        %3692 = vmatprep.subr.mxu0 0.0
        %3693 = vmatpush1.msra.mxu0 0.0
        %3694 = vmatprep.subr.mxu0 0.0
        %3695 = vmatpush1.msra.mxu0 0.0
        %3696 = vmatprep.subr.mxu0 0.0
        %3697 = vmatpush1.msra.mxu0 0.0
        %3698 = vmatprep.subr.mxu0 0.0
        %3699 = vmatpush1.msra.mxu0 0.0
        %3700 = vmatprep.subr.mxu0 0.0
        %3701 = vmatpush1.msra.mxu0 0.0
        %3702 = vmatprep.subr.mxu0 0.0
        %3703 = vmatpush1.msra.mxu0 0.0
        %3704 = vmatprep.subr.mxu0 0.0
        %3705 = vmatpush1.msra.mxu0 0.0
        %3706 = vmatprep.subr.mxu0 0.0
        %3707 = vmatpush1.msra.mxu0 0.0
        %3708 = vmatprep.subr.mxu0 0.0
        %3709 = vmatpush1.msra.mxu0 0.0
        %3710 = vmatprep.subr.mxu0 0.0
        %3711 = vmatpush1.msra.mxu0 0.0
        %3712 = vmatprep.subr.mxu0 0.0
        %3713 = vmatpush1.msra.mxu0 0.0
        %3714 = vmatprep.subr.mxu0 0.0
        %3715 = vmatpush1.msra.mxu0 0.0
        %3716 = vmatprep.subr.mxu0 0.0
        %3717 = vmatpush1.msra.mxu0 0.0
        %3718 = vmatprep.subr.mxu0 0.0
        %3719 = vmatpush1.msra.mxu0 0.0
        %3720 = vmatprep.subr.mxu0 0.0
        %3721 = vmatpush1.msra.mxu0 0.0
        %3722 = vmatprep.subr.mxu0 0.0
        %3723 = vmatpush1.msra.mxu0 0.0
        %3724 = vmatprep.subr.mxu0 0.0
        %3725 = vmatpush1.msra.mxu0 0.0
        %3726 = vmatprep.subr.mxu0 0.0
        %3727 = vmatpush1.msra.mxu0 0.0
        %3728 = vmatprep.subr.mxu0 0.0
        %3729 = vmatpush1.msra.mxu0 0.0
        %3730 = vmatprep.subr.mxu0 0.0
        %3731 = vmatpush1.msra.mxu0 0.0
        %3732 = vmatprep.subr.mxu0 0.0
        %3733 = vmatpush1.msra.mxu0 0.0
        %3734 = vmatprep.subr.mxu0 0.0
        %3735 = vmatpush1.msra.mxu0 0.0
        %3736 = vmatprep.subr.mxu0 0.0
        %3737 = vmatpush1.msra.mxu0 0.0
        %3738 = vmatprep.subr.mxu0 0.0
        %3739 = vmatpush1.msra.mxu0 0.0
        %3740 = vmatprep.subr.mxu0 0.0
        %3741 = vmatpush1.msra.mxu0 0.0
        %3742 = vmatprep.subr.mxu0 0.0
        %3743 = vmatpush1.msra.mxu0 0.0
        %3744 = vmatprep.subr.mxu0 0.0
        %3745 = vmatpush1.msra.mxu0 0.0
        %3746 = vmatprep.subr.mxu0 0.0
        %3747 = vmatpush1.msra.mxu0 0.0
        %3748 = vmatprep.mubr.f32.mxu0 0.0
        %3749 = vmatmul.mubr.f32.gmra.mrb[0].mxu0 %v3652
        %v3750 = vpop.f32.mrb[0].mxu0
        %v3751 = vadd.f32 0.0, %v3750
        %v3752 = vpop.f32.mrb[0].mxu0
        %3753 = vmatprep.mubr.f32.mxu0 0.0
        %3754 = vmatmul.mubr.f32.gmra.mrb[0].mxu0 %v3654
        %v3755 = vpop.f32.mrb[0].mxu0
        %v3756 = vadd.f32 0.0, %v3755
        %v3757 = vpop.f32.mrb[0].mxu0
        %3758 = vmatprep.mubr.f32.mxu0 0.0
        %3759 = vmatmul.mubr.f32.gmra.mrb[0].mxu0 %v3656
        %v3760 = vpop.f32.mrb[0].mxu0
        %v3761 = vadd.f32 0.0, %v3760
        %v3762 = vpop.f32.mrb[0].mxu0
        %3763 = vmatprep.mubr.f32.mxu0 0.0
        %3764 = vmatmul.mubr.f32.gmra.mrb[0].mxu0 %v3658
        %v3765 = vpop.f32.mrb[0].mxu0
        %v3766 = vadd.f32 0.0, %v3765
        %v3767 = vpop.f32.mrb[0].mxu0
        %3768 = vmatprep.mubr.f32.mxu0 0.0
        %3769 = vmatmul.mubr.f32.gmra.mrb[0].mxu0 %v3660
        %v3770 = vpop.f32.mrb[0].mxu0
        %v3771 = vadd.f32 0.0, %v3770
        %v3772 = vpop.f32.mrb[0].mxu0
        %3773 = vmatprep.mubr.f32.mxu0 0.0
        %3774 = vmatmul.mubr.f32.gmra.mrb[0].mxu0 %v3662
        %v3775 = vpop.f32.mrb[0].mxu0
        %v3776 = vadd.f32 0.0, %v3775
        %v3777 = vpop.f32.mrb[0].mxu0
        %3778 = vmatprep.mubr.f32.mxu0 0.0
        %3779 = vmatmul.mubr.f32.gmra.mrb[0].mxu0 %v3664
        %v3780 = vpop.f32.mrb[0].mxu0
        %v3781 = vadd.f32 0.0, %v3780
        %v3782 = vpop.f32.mrb[0].mxu0
        %3783 = vmatprep.mubr.f32.mxu0 0.0
        %3784 = vmatmul.mubr.f32.gmra.mrb[0].mxu0 %v3666
        %v3785 = vpop.f32.mrb[0].mxu0
        %v3786 = vadd.f32 0.0, %v3785
        %v3787 = vpop.f32.mrb[0].mxu0
        %3788 = vmatprep.mubr.f32.mxu0 0.0
        %3789 = vmatmul.mubr.f32.gmra.mrb[0].mxu0 %v3668
        %v3790 = vpop.f32.mrb[0].mxu0
        %v3791 = vadd.f32 0.0, %v3790
        %v3792 = vpop.f32.mrb[0].mxu0
        %3793 = vmatprep.mubr.f32.mxu0 0.0
        %3794 = vmatmul.mubr.f32.gmra.mrb[0].mxu0 %v3670
        %v3795 = vpop.f32.mrb[0].mxu0
        %v3796 = vadd.f32 0.0, %v3795
        %v3797 = vpop.f32.mrb[0].mxu0
        %3798 = vmatprep.mubr.f32.mxu0 0.0
        %3799 = vmatmul.mubr.f32.gmra.mrb[0].mxu0 %v3672
        %v3800 = vpop.f32.mrb[0].mxu0
        %v3801 = vadd.f32 0.0, %v3800
        %v3802 = vpop.f32.mrb[0].mxu0
        %3803 = vmatprep.mubr.f32.mxu0 0.0
        %3804 = vmatmul.mubr.f32.gmra.mrb[0].mxu0 %v3674
        %v3805 = vpop.f32.mrb[0].mxu0
        %v3806 = vadd.f32 0.0, %v3805
        %v3807 = vpop.f32.mrb[0].mxu0
        %3808 = vmatprep.mubr.f32.mxu0 0.0
        %3809 = vmatmul.mubr.f32.gmra.mrb[0].mxu0 %v3676
        %v3810 = vpop.f32.mrb[0].mxu0
        %v3811 = vadd.f32 0.0, %v3810
        %v3812 = vpop.f32.mrb[0].mxu0
        %3813 = vmatprep.mubr.f32.mxu0 0.0
        %3814 = vmatmul.mubr.f32.gmra.mrb[0].mxu0 %v3678
        %v3815 = vpop.f32.mrb[0].mxu0
        %v3816 = vadd.f32 0.0, %v3815
        %v3817 = vpop.f32.mrb[0].mxu0
        %3818 = vmatprep.mubr.f32.mxu0 0.0
        %3819 = vmatmul.mubr.f32.gmra.mrb[0].mxu0 %v3680
        %v3820 = vpop.f32.mrb[0].mxu0
        %v3821 = vadd.f32 0.0, %v3820
        %v3822 = vpop.f32.mrb[0].mxu0
        %3823 = vmatprep.mubr.f32.mxu0 0.0
        %3824 = vmatmul.mubr.f32.gmra.mrb[0].mxu0 %v3682
        %v3825 = vpop.f32.mrb[0].mxu0
        %v3826 = vadd.f32 0.0, %v3825
        %v3827 = vpop.f32.mrb[0].mxu0
        %3828 = vdwg.mxu0
        %v3957 = vsel %vm3533, %v466, %v459
        %v3958 = vsel %vm3535, %v473, %v3957
        %v3959 = vsel %vm3537, %v480, %v3958
        %v3960 = vsel %vm3539, %v487, %v3959
        %v3961 = vsel %vm3541, %v494, %v3960
        %v3962 = vsel %vm3543, %v501, %v3961
        %v3963 = vsel %vm3545, %v508, %v3962
        %v3964 = vsel %vm3533, %v522, %v515
        %v3965 = vsel %vm3535, %v529, %v3964
        %v3966 = vsel %vm3537, %v536, %v3965
        %v3967 = vsel %vm3539, %v543, %v3966
        %v3968 = vsel %vm3541, %v550, %v3967
        %v3969 = vsel %vm3543, %v557, %v3968
        %v3970 = vsel %vm3545, %v564, %v3969
        %v3971 = vsel %vm3533, %v578, %v571
        %v3972 = vsel %vm3535, %v585, %v3971
        %v3973 = vsel %vm3537, %v592, %v3972
        %v3974 = vsel %vm3539, %v599, %v3973
        %v3975 = vsel %vm3541, %v606, %v3974
        %v3976 = vsel %vm3543, %v613, %v3975
        %v3977 = vsel %vm3545, %v620, %v3976
        %v3978 = vsel %vm3533, %v634, %v627
        %v3979 = vsel %vm3535, %v641, %v3978
        %v3980 = vsel %vm3537, %v648, %v3979
        %v3981 = vsel %vm3539, %v655, %v3980
        %v3982 = vsel %vm3541, %v662, %v3981
        %v3983 = vsel %vm3543, %v669, %v3982
        %v3984 = vsel %vm3545, %v676, %v3983
        %v3985 = vsel %vm3533, %v690, %v683
        %v3986 = vsel %vm3535, %v697, %v3985
        %v3987 = vsel %vm3537, %v704, %v3986
        %v3988 = vsel %vm3539, %v711, %v3987
        %v3989 = vsel %vm3541, %v718, %v3988
        %v3990 = vsel %vm3543, %v725, %v3989
        %v3991 = vsel %vm3545, %v732, %v3990
        %v3992 = vsel %vm3533, %v746, %v739
        %v3993 = vsel %vm3535, %v753, %v3992
        %v3994 = vsel %vm3537, %v760, %v3993
        %v3995 = vsel %vm3539, %v767, %v3994
        %v3996 = vsel %vm3541, %v774, %v3995
        %v3997 = vsel %vm3543, %v781, %v3996
        %v3998 = vsel %vm3545, %v788, %v3997
        %v3999 = vsel %vm3533, %v802, %v795
        %v4000 = vsel %vm3535, %v809, %v3999
        %v4001 = vsel %vm3537, %v816, %v4000
        %v4002 = vsel %vm3539, %v823, %v4001
        %v4003 = vsel %vm3541, %v830, %v4002
        %v4004 = vsel %vm3543, %v837, %v4003
        %v4005 = vsel %vm3545, %v844, %v4004
        %v4006 = vsel %vm3533, %v858, %v851
        %v4007 = vsel %vm3535, %v865, %v4006
        %v4008 = vsel %vm3537, %v872, %v4007
        %v4009 = vsel %vm3539, %v879, %v4008
        %v4010 = vsel %vm3541, %v886, %v4009
        %v4011 = vsel %vm3543, %v893, %v4010
        %v4012 = vsel %vm3545, %v900, %v4011
        %v4013 = vsel %vm3533, %v914, %v907
        %v4014 = vsel %vm3535, %v921, %v4013
        %v4015 = vsel %vm3537, %v928, %v4014
        %v4016 = vsel %vm3539, %v935, %v4015
        %v4017 = vsel %vm3541, %v942, %v4016
        %v4018 = vsel %vm3543, %v949, %v4017
        %v4019 = vsel %vm3545, %v956, %v4018
        %v4020 = vsel %vm3533, %v970, %v963
        %v4021 = vsel %vm3535, %v977, %v4020
        %v4022 = vsel %vm3537, %v984, %v4021
        %v4023 = vsel %vm3539, %v991, %v4022
        %v4024 = vsel %vm3541, %v998, %v4023
        %v4025 = vsel %vm3543, %v1005, %v4024
        %v4026 = vsel %vm3545, %v1012, %v4025
        %v4027 = vsel %vm3533, %v1026, %v1019
        %v4028 = vsel %vm3535, %v1033, %v4027
        %v4029 = vsel %vm3537, %v1040, %v4028
        %v4030 = vsel %vm3539, %v1047, %v4029
        %v4031 = vsel %vm3541, %v1054, %v4030
        %v4032 = vsel %vm3543, %v1061, %v4031
        %v4033 = vsel %vm3545, %v1068, %v4032
        %v4034 = vsel %vm3533, %v1082, %v1075
        %v4035 = vsel %vm3535, %v1089, %v4034
        %v4036 = vsel %vm3537, %v1096, %v4035
        %v4037 = vsel %vm3539, %v1103, %v4036
        %v4038 = vsel %vm3541, %v1110, %v4037
        %v4039 = vsel %vm3543, %v1117, %v4038
        %v4040 = vsel %vm3545, %v1124, %v4039
        %v4041 = vsel %vm3533, %v1138, %v1131
        %v4042 = vsel %vm3535, %v1145, %v4041
        %v4043 = vsel %vm3537, %v1152, %v4042
        %v4044 = vsel %vm3539, %v1159, %v4043
        %v4045 = vsel %vm3541, %v1166, %v4044
        %v4046 = vsel %vm3543, %v1173, %v4045
        %v4047 = vsel %vm3545, %v1180, %v4046
        %v4048 = vsel %vm3533, %v1194, %v1187
        %v4049 = vsel %vm3535, %v1201, %v4048
        %v4050 = vsel %vm3537, %v1208, %v4049
        %v4051 = vsel %vm3539, %v1215, %v4050
        %v4052 = vsel %vm3541, %v1222, %v4051
        %v4053 = vsel %vm3543, %v1229, %v4052
        %v4054 = vsel %vm3545, %v1236, %v4053
        %v4055 = vsel %vm3533, %v1250, %v1243
        %v4056 = vsel %vm3535, %v1257, %v4055
        %v4057 = vsel %vm3537, %v1264, %v4056
        %v4058 = vsel %vm3539, %v1271, %v4057
        %v4059 = vsel %vm3541, %v1278, %v4058
        %v4060 = vsel %vm3543, %v1285, %v4059
        %v4061 = vsel %vm3545, %v1292, %v4060
        %v4062 = vsel %vm3533, %v1306, %v1299
        %v4063 = vsel %vm3535, %v1313, %v4062
        %v4064 = vsel %vm3537, %v1320, %v4063
        %v4065 = vsel %vm3539, %v1327, %v4064
        %v4066 = vsel %vm3541, %v1334, %v4065
        %v4067 = vsel %vm3543, %v1341, %v4066
        %v4068 = vsel %vm3545, %v1348, %v4067
        %v4069 = vsel %vm452, %v3963, 0
        %v4071 = vsel %vm452, %v3970, 0
        %v4073 = vsel %vm452, %v3977, 0
        %v4075 = vsel %vm452, %v3984, 0
        %v4077 = vsel %vm452, %v3991, 0
        %v4079 = vsel %vm452, %v3998, 0
        %v4081 = vsel %vm452, %v4005, 0
        %v4083 = vsel %vm452, %v4012, 0
        %v4085 = vsel %vm452, %v4019, 0
        %v4087 = vsel %vm452, %v4026, 0
        %v4089 = vsel %vm452, %v4033, 0
        %v4091 = vsel %vm452, %v4040, 0
        %v4093 = vsel %vm452, %v4047, 0
        %v4095 = vsel %vm452, %v4054, 0
        %v4097 = vsel %vm452, %v4061, 0
        %v4099 = vsel %vm452, %v4068, 0
        %4101 = vmatprep.subr.mxu0 0.0
        %4102 = vmatpush1.msra.mxu0 %v3397
        %4103 = vmatprep.subr.mxu0 0.0
        %4104 = vmatpush1.msra.mxu0 %v3398
        %4105 = vmatprep.subr.mxu0 0.0
        %4106 = vmatpush1.msra.mxu0 %v3399
        %4107 = vmatprep.subr.mxu0 0.0
        %4108 = vmatpush1.msra.mxu0 %v3400
        %4109 = vmatprep.subr.mxu0 0.0
        %4110 = vmatpush1.msra.mxu0 0.0
        %4111 = vmatprep.subr.mxu0 0.0
        %4112 = vmatpush1.msra.mxu0 0.0
        %4113 = vmatprep.subr.mxu0 0.0
        %4114 = vmatpush1.msra.mxu0 0.0
        %4115 = vmatprep.subr.mxu0 0.0
        %4116 = vmatpush1.msra.mxu0 0.0
        %4117 = vmatprep.subr.mxu0 0.0
        %4118 = vmatpush1.msra.mxu0 0.0
        %4119 = vmatprep.subr.mxu0 0.0
        %4120 = vmatpush1.msra.mxu0 0.0
        %4121 = vmatprep.subr.mxu0 0.0
        %4122 = vmatpush1.msra.mxu0 0.0
        %4123 = vmatprep.subr.mxu0 0.0
        %4124 = vmatpush1.msra.mxu0 0.0
        %4125 = vmatprep.subr.mxu0 0.0
        %4126 = vmatpush1.msra.mxu0 0.0
        %4127 = vmatprep.subr.mxu0 0.0
        %4128 = vmatpush1.msra.mxu0 0.0
        %4129 = vmatprep.subr.mxu0 0.0
        %4130 = vmatpush1.msra.mxu0 0.0
        %4131 = vmatprep.subr.mxu0 0.0
        %4132 = vmatpush1.msra.mxu0 0.0
        %4133 = vmatprep.subr.mxu0 0.0
        %4134 = vmatpush1.msra.mxu0 0.0
        %4135 = vmatprep.subr.mxu0 0.0
        %4136 = vmatpush1.msra.mxu0 0.0
        %4137 = vmatprep.subr.mxu0 0.0
        %4138 = vmatpush1.msra.mxu0 0.0
        %4139 = vmatprep.subr.mxu0 0.0
        %4140 = vmatpush1.msra.mxu0 0.0
        %4141 = vmatprep.subr.mxu0 0.0
        %4142 = vmatpush1.msra.mxu0 0.0
        %4143 = vmatprep.subr.mxu0 0.0
        %4144 = vmatpush1.msra.mxu0 0.0
        %4145 = vmatprep.subr.mxu0 0.0
        %4146 = vmatpush1.msra.mxu0 0.0
        %4147 = vmatprep.subr.mxu0 0.0
        %4148 = vmatpush1.msra.mxu0 0.0
        %4149 = vmatprep.subr.mxu0 0.0
        %4150 = vmatpush1.msra.mxu0 0.0
        %4151 = vmatprep.subr.mxu0 0.0
        %4152 = vmatpush1.msra.mxu0 0.0
        %4153 = vmatprep.subr.mxu0 0.0
        %4154 = vmatpush1.msra.mxu0 0.0
        %4155 = vmatprep.subr.mxu0 0.0
        %4156 = vmatpush1.msra.mxu0 0.0
        %4157 = vmatprep.subr.mxu0 0.0
        %4158 = vmatpush1.msra.mxu0 0.0
        %4159 = vmatprep.subr.mxu0 0.0
        %4160 = vmatpush1.msra.mxu0 0.0
        %4161 = vmatprep.subr.mxu0 0.0
        %4162 = vmatpush1.msra.mxu0 0.0
        %4163 = vmatprep.subr.mxu0 0.0
        %4164 = vmatpush1.msra.mxu0 0.0
        %4165 = vmatprep.mubr.f32.mxu0 0.0
        %4166 = vmatmul.mubr.f32.gmra.mrb[0].mxu0 %v4069
        %v4167 = vpop.f32.mrb[0].mxu0
        %v4168 = vadd.f32 %v3751, %v4167
        %v4169 = vpop.f32.mrb[0].mxu0
        %4170 = vmatprep.mubr.f32.mxu0 0.0
        %4171 = vmatmul.mubr.f32.gmra.mrb[0].mxu0 %v4071
        %v4172 = vpop.f32.mrb[0].mxu0
        %v4173 = vadd.f32 %v3756, %v4172
        %v4174 = vpop.f32.mrb[0].mxu0
        %4175 = vmatprep.mubr.f32.mxu0 0.0
        %4176 = vmatmul.mubr.f32.gmra.mrb[0].mxu0 %v4073
        %v4177 = vpop.f32.mrb[0].mxu0
        %v4178 = vadd.f32 %v3761, %v4177
        %v4179 = vpop.f32.mrb[0].mxu0
        %4180 = vmatprep.mubr.f32.mxu0 0.0
        %4181 = vmatmul.mubr.f32.gmra.mrb[0].mxu0 %v4075
        %v4182 = vpop.f32.mrb[0].mxu0
        %v4183 = vadd.f32 %v3766, %v4182
        %v4184 = vpop.f32.mrb[0].mxu0
        %4185 = vmatprep.mubr.f32.mxu0 0.0
        %4186 = vmatmul.mubr.f32.gmra.mrb[0].mxu0 %v4077
        %v4187 = vpop.f32.mrb[0].mxu0
        %v4188 = vadd.f32 %v3771, %v4187
        %v4189 = vpop.f32.mrb[0].mxu0
        %4190 = vmatprep.mubr.f32.mxu0 0.0
        %4191 = vmatmul.mubr.f32.gmra.mrb[0].mxu0 %v4079
        %v4192 = vpop.f32.mrb[0].mxu0
        %v4193 = vadd.f32 %v3776, %v4192
        %v4194 = vpop.f32.mrb[0].mxu0
        %4195 = vmatprep.mubr.f32.mxu0 0.0
        %4196 = vmatmul.mubr.f32.gmra.mrb[0].mxu0 %v4081
        %v4197 = vpop.f32.mrb[0].mxu0
        %v4198 = vadd.f32 %v3781, %v4197
        %v4199 = vpop.f32.mrb[0].mxu0
        %4200 = vmatprep.mubr.f32.mxu0 0.0
        %4201 = vmatmul.mubr.f32.gmra.mrb[0].mxu0 %v4083
        %v4202 = vpop.f32.mrb[0].mxu0
        %v4203 = vadd.f32 %v3786, %v4202
        %v4204 = vpop.f32.mrb[0].mxu0
        %4205 = vmatprep.mubr.f32.mxu0 0.0
        %4206 = vmatmul.mubr.f32.gmra.mrb[0].mxu0 %v4085
        %v4207 = vpop.f32.mrb[0].mxu0
        %v4208 = vadd.f32 %v3791, %v4207
        %v4209 = vpop.f32.mrb[0].mxu0
        %4210 = vmatprep.mubr.f32.mxu0 0.0
        %4211 = vmatmul.mubr.f32.gmra.mrb[0].mxu0 %v4087
        %v4212 = vpop.f32.mrb[0].mxu0
        %v4213 = vadd.f32 %v3796, %v4212
        %v4214 = vpop.f32.mrb[0].mxu0
        %4215 = vmatprep.mubr.f32.mxu0 0.0
        %4216 = vmatmul.mubr.f32.gmra.mrb[0].mxu0 %v4089
        %v4217 = vpop.f32.mrb[0].mxu0
        %v4218 = vadd.f32 %v3801, %v4217
        %v4219 = vpop.f32.mrb[0].mxu0
        %4220 = vmatprep.mubr.f32.mxu0 0.0
        %4221 = vmatmul.mubr.f32.gmra.mrb[0].mxu0 %v4091
        %v4222 = vpop.f32.mrb[0].mxu0
        %v4223 = vadd.f32 %v3806, %v4222
        %v4224 = vpop.f32.mrb[0].mxu0
        %4225 = vmatprep.mubr.f32.mxu0 0.0
        %4226 = vmatmul.mubr.f32.gmra.mrb[0].mxu0 %v4093
        %v4227 = vpop.f32.mrb[0].mxu0
        %v4228 = vadd.f32 %v3811, %v4227
        %v4229 = vpop.f32.mrb[0].mxu0
        %4230 = vmatprep.mubr.f32.mxu0 0.0
        %4231 = vmatmul.mubr.f32.gmra.mrb[0].mxu0 %v4095
        %v4232 = vpop.f32.mrb[0].mxu0
        %v4233 = vadd.f32 %v3816, %v4232
        %v4234 = vpop.f32.mrb[0].mxu0
        %4235 = vmatprep.mubr.f32.mxu0 0.0
        %4236 = vmatmul.mubr.f32.gmra.mrb[0].mxu0 %v4097
        %v4237 = vpop.f32.mrb[0].mxu0
        %v4238 = vadd.f32 %v3821, %v4237
        %v4239 = vpop.f32.mrb[0].mxu0
        %4240 = vmatprep.mubr.f32.mxu0 0.0
        %4241 = vmatmul.mubr.f32.gmra.mrb[0].mxu0 %v4099
        %v4242 = vpop.f32.mrb[0].mxu0
        %v4243 = vadd.f32 %v3826, %v4242
        %v4244 = vpop.f32.mrb[0].mxu0
        %4245 = vdwg.mxu0
        %v4246 = vld [vmem:[%s3 + $0x40] sm:$0xff]
        %v4247 = vld [vmem:[%s3 + $0x48] sm:$0xff]
        %v4248 = vld [vmem:[%s3 + $0x50] sm:$0xff]
        %v4249 = vld [vmem:[%s3 + $0x58] sm:$0xff]
        %v4378 = vsel %vm3533, %v2514, %v2507
        %v4379 = vsel %vm3535, %v2521, %v4378
        %v4380 = vsel %vm3537, %v2528, %v4379
        %v4381 = vsel %vm3539, %v2535, %v4380
        %v4382 = vsel %vm3541, %v2542, %v4381
        %v4383 = vsel %vm3543, %v2549, %v4382
        %v4384 = vsel %vm3545, %v2556, %v4383
        %v4385 = vsel %vm3533, %v2570, %v2563
        %v4386 = vsel %vm3535, %v2577, %v4385
        %v4387 = vsel %vm3537, %v2584, %v4386
        %v4388 = vsel %vm3539, %v2591, %v4387
        %v4389 = vsel %vm3541, %v2598, %v4388
        %v4390 = vsel %vm3543, %v2605, %v4389
        %v4391 = vsel %vm3545, %v2612, %v4390
        %v4392 = vsel %vm3533, %v2626, %v2619
        %v4393 = vsel %vm3535, %v2633, %v4392
        %v4394 = vsel %vm3537, %v2640, %v4393
        %v4395 = vsel %vm3539, %v2647, %v4394
        %v4396 = vsel %vm3541, %v2654, %v4395
        %v4397 = vsel %vm3543, %v2661, %v4396
        %v4398 = vsel %vm3545, %v2668, %v4397
        %v4399 = vsel %vm3533, %v2682, %v2675
        %v4400 = vsel %vm3535, %v2689, %v4399
        %v4401 = vsel %vm3537, %v2696, %v4400
        %v4402 = vsel %vm3539, %v2703, %v4401
        %v4403 = vsel %vm3541, %v2710, %v4402
        %v4404 = vsel %vm3543, %v2717, %v4403
        %v4405 = vsel %vm3545, %v2724, %v4404
        %v4406 = vsel %vm3533, %v2738, %v2731
        %v4407 = vsel %vm3535, %v2745, %v4406
        %v4408 = vsel %vm3537, %v2752, %v4407
        %v4409 = vsel %vm3539, %v2759, %v4408
        %v4410 = vsel %vm3541, %v2766, %v4409
        %v4411 = vsel %vm3543, %v2773, %v4410
        %v4412 = vsel %vm3545, %v2780, %v4411
        %v4413 = vsel %vm3533, %v2794, %v2787
        %v4414 = vsel %vm3535, %v2801, %v4413
        %v4415 = vsel %vm3537, %v2808, %v4414
        %v4416 = vsel %vm3539, %v2815, %v4415
        %v4417 = vsel %vm3541, %v2822, %v4416
        %v4418 = vsel %vm3543, %v2829, %v4417
        %v4419 = vsel %vm3545, %v2836, %v4418
        %v4420 = vsel %vm3533, %v2850, %v2843
        %v4421 = vsel %vm3535, %v2857, %v4420
        %v4422 = vsel %vm3537, %v2864, %v4421
        %v4423 = vsel %vm3539, %v2871, %v4422
        %v4424 = vsel %vm3541, %v2878, %v4423
        %v4425 = vsel %vm3543, %v2885, %v4424
        %v4426 = vsel %vm3545, %v2892, %v4425
        %v4427 = vsel %vm3533, %v2906, %v2899
        %v4428 = vsel %vm3535, %v2913, %v4427
        %v4429 = vsel %vm3537, %v2920, %v4428
        %v4430 = vsel %vm3539, %v2927, %v4429
        %v4431 = vsel %vm3541, %v2934, %v4430
        %v4432 = vsel %vm3543, %v2941, %v4431
        %v4433 = vsel %vm3545, %v2948, %v4432
        %v4434 = vsel %vm3533, %v2962, %v2955
        %v4435 = vsel %vm3535, %v2969, %v4434
        %v4436 = vsel %vm3537, %v2976, %v4435
        %v4437 = vsel %vm3539, %v2983, %v4436
        %v4438 = vsel %vm3541, %v2990, %v4437
        %v4439 = vsel %vm3543, %v2997, %v4438
        %v4440 = vsel %vm3545, %v3004, %v4439
        %v4441 = vsel %vm3533, %v3018, %v3011
        %v4442 = vsel %vm3535, %v3025, %v4441
        %v4443 = vsel %vm3537, %v3032, %v4442
        %v4444 = vsel %vm3539, %v3039, %v4443
        %v4445 = vsel %vm3541, %v3046, %v4444
        %v4446 = vsel %vm3543, %v3053, %v4445
        %v4447 = vsel %vm3545, %v3060, %v4446
        %v4448 = vsel %vm3533, %v3074, %v3067
        %v4449 = vsel %vm3535, %v3081, %v4448
        %v4450 = vsel %vm3537, %v3088, %v4449
        %v4451 = vsel %vm3539, %v3095, %v4450
        %v4452 = vsel %vm3541, %v3102, %v4451
        %v4453 = vsel %vm3543, %v3109, %v4452
        %v4454 = vsel %vm3545, %v3116, %v4453
        %v4455 = vsel %vm3533, %v3130, %v3123
        %v4456 = vsel %vm3535, %v3137, %v4455
        %v4457 = vsel %vm3537, %v3144, %v4456
        %v4458 = vsel %vm3539, %v3151, %v4457
        %v4459 = vsel %vm3541, %v3158, %v4458
        %v4460 = vsel %vm3543, %v3165, %v4459
        %v4461 = vsel %vm3545, %v3172, %v4460
        %v4462 = vsel %vm3533, %v3186, %v3179
        %v4463 = vsel %vm3535, %v3193, %v4462
        %v4464 = vsel %vm3537, %v3200, %v4463
        %v4465 = vsel %vm3539, %v3207, %v4464
        %v4466 = vsel %vm3541, %v3214, %v4465
        %v4467 = vsel %vm3543, %v3221, %v4466
        %v4468 = vsel %vm3545, %v3228, %v4467
        %v4469 = vsel %vm3533, %v3242, %v3235
        %v4470 = vsel %vm3535, %v3249, %v4469
        %v4471 = vsel %vm3537, %v3256, %v4470
        %v4472 = vsel %vm3539, %v3263, %v4471
        %v4473 = vsel %vm3541, %v3270, %v4472
        %v4474 = vsel %vm3543, %v3277, %v4473
        %v4475 = vsel %vm3545, %v3284, %v4474
        %v4476 = vsel %vm3533, %v3298, %v3291
        %v4477 = vsel %vm3535, %v3305, %v4476
        %v4478 = vsel %vm3537, %v3312, %v4477
        %v4479 = vsel %vm3539, %v3319, %v4478
        %v4480 = vsel %vm3541, %v3326, %v4479
        %v4481 = vsel %vm3543, %v3333, %v4480
        %v4482 = vsel %vm3545, %v3340, %v4481
        %v4483 = vsel %vm3533, %v3354, %v3347
        %v4484 = vsel %vm3535, %v3361, %v4483
        %v4485 = vsel %vm3537, %v3368, %v4484
        %v4486 = vsel %vm3539, %v3375, %v4485
        %v4487 = vsel %vm3541, %v3382, %v4486
        %v4488 = vsel %vm3543, %v3389, %v4487
        %v4489 = vsel %vm3545, %v3396, %v4488
        %v4490 = vsel %vm452, %v4384, 0
        %v4492 = vsel %vm452, %v4391, 0
        %v4494 = vsel %vm452, %v4398, 0
        %v4496 = vsel %vm452, %v4405, 0
        %v4498 = vsel %vm452, %v4412, 0
        %v4500 = vsel %vm452, %v4419, 0
        %v4502 = vsel %vm452, %v4426, 0
        %v4504 = vsel %vm452, %v4433, 0
        %v4506 = vsel %vm452, %v4440, 0
        %v4508 = vsel %vm452, %v4447, 0
        %v4510 = vsel %vm452, %v4454, 0
        %v4512 = vsel %vm452, %v4461, 0
        %v4514 = vsel %vm452, %v4468, 0
        %v4516 = vsel %vm452, %v4475, 0
        %v4518 = vsel %vm452, %v4482, 0
        %v4520 = vsel %vm452, %v4489, 0
        %4522 = vmatprep.subr.mxu0 0.0
        %4523 = vmatpush1.msra.mxu0 %v4246
        %4524 = vmatprep.subr.mxu0 0.0
        %4525 = vmatpush1.msra.mxu0 %v4247
        %4526 = vmatprep.subr.mxu0 0.0
        %4527 = vmatpush1.msra.mxu0 %v4248
        %4528 = vmatprep.subr.mxu0 0.0
        %4529 = vmatpush1.msra.mxu0 %v4249
        %4530 = vmatprep.subr.mxu0 0.0
        %4531 = vmatpush1.msra.mxu0 0.0
        %4532 = vmatprep.subr.mxu0 0.0
        %4533 = vmatpush1.msra.mxu0 0.0
        %4534 = vmatprep.subr.mxu0 0.0
        %4535 = vmatpush1.msra.mxu0 0.0
        %4536 = vmatprep.subr.mxu0 0.0
        %4537 = vmatpush1.msra.mxu0 0.0
        %4538 = vmatprep.subr.mxu0 0.0
        %4539 = vmatpush1.msra.mxu0 0.0
        %4540 = vmatprep.subr.mxu0 0.0
        %4541 = vmatpush1.msra.mxu0 0.0
        %4542 = vmatprep.subr.mxu0 0.0
        %4543 = vmatpush1.msra.mxu0 0.0
        %4544 = vmatprep.subr.mxu0 0.0
        %4545 = vmatpush1.msra.mxu0 0.0
        %4546 = vmatprep.subr.mxu0 0.0
        %4547 = vmatpush1.msra.mxu0 0.0
        %4548 = vmatprep.subr.mxu0 0.0
        %4549 = vmatpush1.msra.mxu0 0.0
        %4550 = vmatprep.subr.mxu0 0.0
        %4551 = vmatpush1.msra.mxu0 0.0
        %4552 = vmatprep.subr.mxu0 0.0
        %4553 = vmatpush1.msra.mxu0 0.0
        %4554 = vmatprep.subr.mxu0 0.0
        %4555 = vmatpush1.msra.mxu0 0.0
        %4556 = vmatprep.subr.mxu0 0.0
        %4557 = vmatpush1.msra.mxu0 0.0
        %4558 = vmatprep.subr.mxu0 0.0
        %4559 = vmatpush1.msra.mxu0 0.0
        %4560 = vmatprep.subr.mxu0 0.0
        %4561 = vmatpush1.msra.mxu0 0.0
        %4562 = vmatprep.subr.mxu0 0.0
        %4563 = vmatpush1.msra.mxu0 0.0
        %4564 = vmatprep.subr.mxu0 0.0
        %4565 = vmatpush1.msra.mxu0 0.0
        %4566 = vmatprep.subr.mxu0 0.0
        %4567 = vmatpush1.msra.mxu0 0.0
        %4568 = vmatprep.subr.mxu0 0.0
        %4569 = vmatpush1.msra.mxu0 0.0
        %4570 = vmatprep.subr.mxu0 0.0
        %4571 = vmatpush1.msra.mxu0 0.0
        %4572 = vmatprep.subr.mxu0 0.0
        %4573 = vmatpush1.msra.mxu0 0.0
        %4574 = vmatprep.subr.mxu0 0.0
        %4575 = vmatpush1.msra.mxu0 0.0
        %4576 = vmatprep.subr.mxu0 0.0
        %4577 = vmatpush1.msra.mxu0 0.0
        %4578 = vmatprep.subr.mxu0 0.0
        %4579 = vmatpush1.msra.mxu0 0.0
        %4580 = vmatprep.subr.mxu0 0.0
        %4581 = vmatpush1.msra.mxu0 0.0
        %4582 = vmatprep.subr.mxu0 0.0
        %4583 = vmatpush1.msra.mxu0 0.0
        %4584 = vmatprep.subr.mxu0 0.0
        %4585 = vmatpush1.msra.mxu0 0.0
        %4586 = vmatprep.mubr.f32.mxu0 0.0
        %4587 = vmatmul.mubr.f32.gmra.mrb[0].mxu0 %v4490
        %v4588 = vpop.f32.mrb[0].mxu0
        %v4589 = vadd.f32 0.0, %v4588
        %v4590 = vpop.f32.mrb[0].mxu0
        %4591 = vmatprep.mubr.f32.mxu0 0.0
        %4592 = vmatmul.mubr.f32.gmra.mrb[0].mxu0 %v4492
        %v4593 = vpop.f32.mrb[0].mxu0
        %v4594 = vadd.f32 0.0, %v4593
        %v4595 = vpop.f32.mrb[0].mxu0
        %4596 = vmatprep.mubr.f32.mxu0 0.0
        %4597 = vmatmul.mubr.f32.gmra.mrb[0].mxu0 %v4494
        %v4598 = vpop.f32.mrb[0].mxu0
        %v4599 = vadd.f32 0.0, %v4598
        %v4600 = vpop.f32.mrb[0].mxu0
        %4601 = vmatprep.mubr.f32.mxu0 0.0
        %4602 = vmatmul.mubr.f32.gmra.mrb[0].mxu0 %v4496
        %v4603 = vpop.f32.mrb[0].mxu0
        %v4604 = vadd.f32 0.0, %v4603
        %v4605 = vpop.f32.mrb[0].mxu0
        %4606 = vmatprep.mubr.f32.mxu0 0.0
        %4607 = vmatmul.mubr.f32.gmra.mrb[0].mxu0 %v4498
        %v4608 = vpop.f32.mrb[0].mxu0
        %v4609 = vadd.f32 0.0, %v4608
        %v4610 = vpop.f32.mrb[0].mxu0
        %4611 = vmatprep.mubr.f32.mxu0 0.0
        %4612 = vmatmul.mubr.f32.gmra.mrb[0].mxu0 %v4500
        %v4613 = vpop.f32.mrb[0].mxu0
        %v4614 = vadd.f32 0.0, %v4613
        %v4615 = vpop.f32.mrb[0].mxu0
        %4616 = vmatprep.mubr.f32.mxu0 0.0
        %4617 = vmatmul.mubr.f32.gmra.mrb[0].mxu0 %v4502
        %v4618 = vpop.f32.mrb[0].mxu0
        %v4619 = vadd.f32 0.0, %v4618
        %v4620 = vpop.f32.mrb[0].mxu0
        %4621 = vmatprep.mubr.f32.mxu0 0.0
        %4622 = vmatmul.mubr.f32.gmra.mrb[0].mxu0 %v4504
        %v4623 = vpop.f32.mrb[0].mxu0
        %v4624 = vadd.f32 0.0, %v4623
        %v4625 = vpop.f32.mrb[0].mxu0
        %4626 = vmatprep.mubr.f32.mxu0 0.0
        %4627 = vmatmul.mubr.f32.gmra.mrb[0].mxu0 %v4506
        %v4628 = vpop.f32.mrb[0].mxu0
        %v4629 = vadd.f32 0.0, %v4628
        %v4630 = vpop.f32.mrb[0].mxu0
        %4631 = vmatprep.mubr.f32.mxu0 0.0
        %4632 = vmatmul.mubr.f32.gmra.mrb[0].mxu0 %v4508
        %v4633 = vpop.f32.mrb[0].mxu0
        %v4634 = vadd.f32 0.0, %v4633
        %v4635 = vpop.f32.mrb[0].mxu0
        %4636 = vmatprep.mubr.f32.mxu0 0.0
        %4637 = vmatmul.mubr.f32.gmra.mrb[0].mxu0 %v4510
        %v4638 = vpop.f32.mrb[0].mxu0
        %v4639 = vadd.f32 0.0, %v4638
        %v4640 = vpop.f32.mrb[0].mxu0
        %4641 = vmatprep.mubr.f32.mxu0 0.0
        %4642 = vmatmul.mubr.f32.gmra.mrb[0].mxu0 %v4512
        %v4643 = vpop.f32.mrb[0].mxu0
        %v4644 = vadd.f32 0.0, %v4643
        %v4645 = vpop.f32.mrb[0].mxu0
        %4646 = vmatprep.mubr.f32.mxu0 0.0
        %4647 = vmatmul.mubr.f32.gmra.mrb[0].mxu0 %v4514
        %v4648 = vpop.f32.mrb[0].mxu0
        %v4649 = vadd.f32 0.0, %v4648
        %v4650 = vpop.f32.mrb[0].mxu0
        %4651 = vmatprep.mubr.f32.mxu0 0.0
        %4652 = vmatmul.mubr.f32.gmra.mrb[0].mxu0 %v4516
        %v4653 = vpop.f32.mrb[0].mxu0
        %v4654 = vadd.f32 0.0, %v4653
        %v4655 = vpop.f32.mrb[0].mxu0
        %4656 = vmatprep.mubr.f32.mxu0 0.0
        %4657 = vmatmul.mubr.f32.gmra.mrb[0].mxu0 %v4518
        %v4658 = vpop.f32.mrb[0].mxu0
        %v4659 = vadd.f32 0.0, %v4658
        %v4660 = vpop.f32.mrb[0].mxu0
        %4661 = vmatprep.mubr.f32.mxu0 0.0
        %4662 = vmatmul.mubr.f32.gmra.mrb[0].mxu0 %v4520
        %v4663 = vpop.f32.mrb[0].mxu0
        %v4664 = vadd.f32 0.0, %v4663
        %v4665 = vpop.f32.mrb[0].mxu0
        %4666 = vdwg.mxu0
        %v4667 = vadd.f32 %v4168, %v4589
        %v4668 = vadd.f32 %v4173, %v4594
        %v4669 = vadd.f32 %v4178, %v4599
        %v4670 = vadd.f32 %v4183, %v4604
        %v4671 = vadd.f32 %v4188, %v4609
        %v4672 = vadd.f32 %v4193, %v4614
        %v4673 = vadd.f32 %v4198, %v4619
        %v4674 = vadd.f32 %v4203, %v4624
        %v4675 = vadd.f32 %v4208, %v4629
        %v4676 = vadd.f32 %v4213, %v4634
        %v4677 = vadd.f32 %v4218, %v4639
        %v4678 = vadd.f32 %v4223, %v4644
        %v4679 = vadd.f32 %v4228, %v4649
        %v4680 = vadd.f32 %v4233, %v4654
        %v4681 = vadd.f32 %v4238, %v4659
        %v4682 = vadd.f32 %v4243, %v4664
        %v4683 = vmul.f32 %v4667, 0.125
        %v4684 = vmul.f32 %v4668, 0.125
        %v4685 = vmul.f32 %v4669, 0.125
        %v4686 = vmul.f32 %v4670, 0.125
        %v4687 = vmul.f32 %v4671, 0.125
        %v4688 = vmul.f32 %v4672, 0.125
        %v4689 = vmul.f32 %v4673, 0.125
        %v4690 = vmul.f32 %v4674, 0.125
        %v4691 = vmul.f32 %v4675, 0.125
        %v4692 = vmul.f32 %v4676, 0.125
        %v4693 = vmul.f32 %v4677, 0.125
        %v4694 = vmul.f32 %v4678, 0.125
        %v4695 = vmul.f32 %v4679, 0.125
        %v4696 = vmul.f32 %v4680, 0.125
        %v4697 = vmul.f32 %v4681, 0.125
        %v4698 = vmul.f32 %v4682, 0.125
        %v4699 = vld [vmem:[%s4] sm:$0x1]
        %v4701 = vlaneseq
        %v4702 = vshrl.u32 %v4701, 7
        %v4703 = vsub.s32 0, %v4702
        %v4704 = vrot.slane %v4699, %v4703
        %v4706 = vadd.f32 %v4683, %v4704
        %v4707 = vadd.f32 %v4684, %v4704
        %v4708 = vadd.f32 %v4685, %v4704
        %v4709 = vadd.f32 %v4686, %v4704
        %v4710 = vadd.f32 %v4687, %v4704
        %v4711 = vadd.f32 %v4688, %v4704
        %v4712 = vadd.f32 %v4689, %v4704
        %v4713 = vadd.f32 %v4690, %v4704
        %v4714 = vadd.f32 %v4691, %v4704
        %v4715 = vadd.f32 %v4692, %v4704
        %v4716 = vadd.f32 %v4693, %v4704
        %v4717 = vadd.f32 %v4694, %v4704
        %v4718 = vadd.f32 %v4695, %v4704
        %v4719 = vadd.f32 %v4696, %v4704
        %v4720 = vadd.f32 %v4697, %v4704
        %v4721 = vadd.f32 %v4698, %v4704
        %v4722 = vmax.f32 %v4706, 0.0
        %v4723 = vmax.f32 %v4707, 0.0
        %v4724 = vmax.f32 %v4708, 0.0
        %v4725 = vmax.f32 %v4709, 0.0
        %v4726 = vmax.f32 %v4710, 0.0
        %v4727 = vmax.f32 %v4711, 0.0
        %v4728 = vmax.f32 %v4712, 0.0
        %v4729 = vmax.f32 %v4713, 0.0
        %v4730 = vmax.f32 %v4714, 0.0
        %v4731 = vmax.f32 %v4715, 0.0
        %v4732 = vmax.f32 %v4716, 0.0
        %v4733 = vmax.f32 %v4717, 0.0
        %v4734 = vmax.f32 %v4718, 0.0
        %v4735 = vmax.f32 %v4719, 0.0
        %v4736 = vmax.f32 %v4720, 0.0
        %v4737 = vmax.f32 %v4721, 0.0
        %v4738 = vld [vmem:[%s5] sm:$0xff]
        %v4739 = vld [vmem:[%s5 + $0x8] sm:$0xff]
        %v4740 = vld [vmem:[%s5 + $0x10] sm:$0xff]
        %v4741 = vld [vmem:[%s5 + $0x18] sm:$0xff]
        %v4742 = vld [vmem:[%s5 + $0x20] sm:$0xff]
        %v4743 = vld [vmem:[%s5 + $0x28] sm:$0xff]
        %v4744 = vld [vmem:[%s5 + $0x30] sm:$0xff]
        %v4745 = vld [vmem:[%s5 + $0x38] sm:$0xff]
        %v4746 = vld [vmem:[%s6] sm:$0x1]
        %v4748 = vlaneseq
        %v4749 = vshrl.u32 %v4748, 7
        %v4750 = vsub.s32 0, %v4749
        %v4751 = vrot.slane %v4746, %v4750
        %vm4753 = vcmask 523264
        %v4755 = vsel %vm4753, %v4722, 0
        %v4758 = vsel %vm4753, %v4723, 0
        %v4761 = vsel %vm4753, %v4724, 0
        %v4764 = vsel %vm4753, %v4725, 0
        %v4767 = vsel %vm4753, %v4726, 0
        %v4770 = vsel %vm4753, %v4727, 0
        %v4773 = vsel %vm4753, %v4728, 0
        %v4776 = vsel %vm4753, %v4729, 0
        %v4779 = vsel %vm4753, %v4730, 0
        %v4782 = vsel %vm4753, %v4731, 0
        %v4785 = vsel %vm4753, %v4732, 0
        %v4788 = vsel %vm4753, %v4733, 0
        %v4791 = vsel %vm4753, %v4734, 0
        %v4794 = vsel %vm4753, %v4735, 0
        %v4797 = vsel %vm4753, %v4736, 0
        %v4800 = vsel %vm4753, %v4737, 0
        %4802 = vmatprep.subr.mxu0 0.0
        %4803 = vmatpush1.msra.mxu0 %v4738
        %4804 = vmatprep.subr.mxu0 0.0
        %4805 = vmatpush1.msra.mxu0 %v4739
        %4806 = vmatprep.subr.mxu0 0.0
        %4807 = vmatpush1.msra.mxu0 %v4740
        %4808 = vmatprep.subr.mxu0 0.0
        %4809 = vmatpush1.msra.mxu0 %v4741
        %4810 = vmatprep.subr.mxu0 0.0
        %4811 = vmatpush1.msra.mxu0 %v4742
        %4812 = vmatprep.subr.mxu0 0.0
        %4813 = vmatpush1.msra.mxu0 %v4743
        %4814 = vmatprep.subr.mxu0 0.0
        %4815 = vmatpush1.msra.mxu0 %v4744
        %4816 = vmatprep.subr.mxu0 0.0
        %4817 = vmatpush1.msra.mxu0 %v4745
        %4818 = vmatprep.subr.mxu0 0.0
        %4819 = vmatpush1.msra.mxu0 0.0
        %4820 = vmatprep.subr.mxu0 0.0
        %4821 = vmatpush1.msra.mxu0 0.0
        %4822 = vmatprep.subr.mxu0 0.0
        %4823 = vmatpush1.msra.mxu0 0.0
        %4824 = vmatprep.subr.mxu0 0.0
        %4825 = vmatpush1.msra.mxu0 0.0
        %4826 = vmatprep.subr.mxu0 0.0
        %4827 = vmatpush1.msra.mxu0 0.0
        %4828 = vmatprep.subr.mxu0 0.0
        %4829 = vmatpush1.msra.mxu0 0.0
        %4830 = vmatprep.subr.mxu0 0.0
        %4831 = vmatpush1.msra.mxu0 0.0
        %4832 = vmatprep.subr.mxu0 0.0
        %4833 = vmatpush1.msra.mxu0 0.0
        %4834 = vmatprep.subr.mxu0 0.0
        %4835 = vmatpush1.msra.mxu0 0.0
        %4836 = vmatprep.subr.mxu0 0.0
        %4837 = vmatpush1.msra.mxu0 0.0
        %4838 = vmatprep.subr.mxu0 0.0
        %4839 = vmatpush1.msra.mxu0 0.0
        %4840 = vmatprep.subr.mxu0 0.0
        %4841 = vmatpush1.msra.mxu0 0.0
        %4842 = vmatprep.subr.mxu0 0.0
        %4843 = vmatpush1.msra.mxu0 0.0
        %4844 = vmatprep.subr.mxu0 0.0
        %4845 = vmatpush1.msra.mxu0 0.0
        %4846 = vmatprep.subr.mxu0 0.0
        %4847 = vmatpush1.msra.mxu0 0.0
        %4848 = vmatprep.subr.mxu0 0.0
        %4849 = vmatpush1.msra.mxu0 0.0
        %4850 = vmatprep.subr.mxu0 0.0
        %4851 = vmatpush1.msra.mxu0 0.0
        %4852 = vmatprep.subr.mxu0 0.0
        %4853 = vmatpush1.msra.mxu0 0.0
        %4854 = vmatprep.subr.mxu0 0.0
        %4855 = vmatpush1.msra.mxu0 0.0
        %4856 = vmatprep.subr.mxu0 0.0
        %4857 = vmatpush1.msra.mxu0 0.0
        %4858 = vmatprep.subr.mxu0 0.0
        %4859 = vmatpush1.msra.mxu0 0.0
        %4860 = vmatprep.subr.mxu0 0.0
        %4861 = vmatpush1.msra.mxu0 0.0
        %4862 = vmatprep.subr.mxu0 0.0
        %4863 = vmatpush1.msra.mxu0 0.0
        %4864 = vmatprep.subr.mxu0 0.0
        %4865 = vmatpush1.msra.mxu0 0.0
        %4866 = vmatprep.mubr.f32.mxu0 0.0
        %4867 = vmatmul.mubr.f32.gmra.mrb[0].mxu0 %v4755
        %v4868 = vpop.f32.mrb[0].mxu0
        %v4869 = vadd.f32 %v4751, %v4868
        %v4870 = vpop.f32.mrb[0].mxu0
        %4871 = vmatprep.mubr.f32.mxu0 0.0
        %4872 = vmatmul.mubr.f32.gmra.mrb[0].mxu0 %v4758
        %v4873 = vpop.f32.mrb[0].mxu0
        %v4874 = vadd.f32 %v4751, %v4873
        %v4875 = vpop.f32.mrb[0].mxu0
        %4876 = vmatprep.mubr.f32.mxu0 0.0
        %4877 = vmatmul.mubr.f32.gmra.mrb[0].mxu0 %v4761
        %v4878 = vpop.f32.mrb[0].mxu0
        %v4879 = vadd.f32 %v4751, %v4878
        %v4880 = vpop.f32.mrb[0].mxu0
        %4881 = vmatprep.mubr.f32.mxu0 0.0
        %4882 = vmatmul.mubr.f32.gmra.mrb[0].mxu0 %v4764
        %v4883 = vpop.f32.mrb[0].mxu0
        %v4884 = vadd.f32 %v4751, %v4883
        %v4885 = vpop.f32.mrb[0].mxu0
        %4886 = vmatprep.mubr.f32.mxu0 0.0
        %4887 = vmatmul.mubr.f32.gmra.mrb[0].mxu0 %v4767
        %v4888 = vpop.f32.mrb[0].mxu0
        %v4889 = vadd.f32 %v4751, %v4888
        %v4890 = vpop.f32.mrb[0].mxu0
        %4891 = vmatprep.mubr.f32.mxu0 0.0
        %4892 = vmatmul.mubr.f32.gmra.mrb[0].mxu0 %v4770
        %v4893 = vpop.f32.mrb[0].mxu0
        %v4894 = vadd.f32 %v4751, %v4893
        %v4895 = vpop.f32.mrb[0].mxu0
        %4896 = vmatprep.mubr.f32.mxu0 0.0
        %4897 = vmatmul.mubr.f32.gmra.mrb[0].mxu0 %v4773
        %v4898 = vpop.f32.mrb[0].mxu0
        %v4899 = vadd.f32 %v4751, %v4898
        %v4900 = vpop.f32.mrb[0].mxu0
        %4901 = vmatprep.mubr.f32.mxu0 0.0
        %4902 = vmatmul.mubr.f32.gmra.mrb[0].mxu0 %v4776
        %v4903 = vpop.f32.mrb[0].mxu0
        %v4904 = vadd.f32 %v4751, %v4903
        %v4905 = vpop.f32.mrb[0].mxu0
        %4906 = vmatprep.mubr.f32.mxu0 0.0
        %4907 = vmatmul.mubr.f32.gmra.mrb[0].mxu0 %v4779
        %v4908 = vpop.f32.mrb[0].mxu0
        %v4909 = vadd.f32 %v4751, %v4908
        %v4910 = vpop.f32.mrb[0].mxu0
        %4911 = vmatprep.mubr.f32.mxu0 0.0
        %4912 = vmatmul.mubr.f32.gmra.mrb[0].mxu0 %v4782
        %v4913 = vpop.f32.mrb[0].mxu0
        %v4914 = vadd.f32 %v4751, %v4913
        %v4915 = vpop.f32.mrb[0].mxu0
        %4916 = vmatprep.mubr.f32.mxu0 0.0
        %4917 = vmatmul.mubr.f32.gmra.mrb[0].mxu0 %v4785
        %v4918 = vpop.f32.mrb[0].mxu0
        %v4919 = vadd.f32 %v4751, %v4918
        %v4920 = vpop.f32.mrb[0].mxu0
        %4921 = vmatprep.mubr.f32.mxu0 0.0
        %4922 = vmatmul.mubr.f32.gmra.mrb[0].mxu0 %v4788
        %v4923 = vpop.f32.mrb[0].mxu0
        %v4924 = vadd.f32 %v4751, %v4923
        %v4925 = vpop.f32.mrb[0].mxu0
        %4926 = vmatprep.mubr.f32.mxu0 0.0
        %4927 = vmatmul.mubr.f32.gmra.mrb[0].mxu0 %v4791
        %v4928 = vpop.f32.mrb[0].mxu0
        %v4929 = vadd.f32 %v4751, %v4928
        %v4930 = vpop.f32.mrb[0].mxu0
        %4931 = vmatprep.mubr.f32.mxu0 0.0
        %4932 = vmatmul.mubr.f32.gmra.mrb[0].mxu0 %v4794
        %v4933 = vpop.f32.mrb[0].mxu0
        %v4934 = vadd.f32 %v4751, %v4933
        %v4935 = vpop.f32.mrb[0].mxu0
        %4936 = vmatprep.mubr.f32.mxu0 0.0
        %4937 = vmatmul.mubr.f32.gmra.mrb[0].mxu0 %v4797
        %v4938 = vpop.f32.mrb[0].mxu0
        %v4939 = vadd.f32 %v4751, %v4938
        %v4940 = vpop.f32.mrb[0].mxu0
        %4941 = vmatprep.mubr.f32.mxu0 0.0
        %4942 = vmatmul.mubr.f32.gmra.mrb[0].mxu0 %v4800
        %v4943 = vpop.f32.mrb[0].mxu0
        %v4944 = vadd.f32 %v4751, %v4943
        %v4945 = vpop.f32.mrb[0].mxu0
        %4946 = vdwg.mxu0
        %4947 = vst [vmem:[%s304] sm:$0xff] %v4869
        %4948 = vst [vmem:[%s304 + $0x8] sm:$0xff] %v4874
        %4949 = vst [vmem:[%s304 + $0x10] sm:$0xff] %v4879
        %4950 = vst [vmem:[%s304 + $0x18] sm:$0xff] %v4884
        %4951 = vst [vmem:[%s304 + $0x20] sm:$0xff] %v4889
        %4952 = vst [vmem:[%s304 + $0x28] sm:$0xff] %v4894
        %4953 = vst [vmem:[%s304 + $0x30] sm:$0xff] %v4899
        %4954 = vst [vmem:[%s304 + $0x38] sm:$0xff] %v4904
        %4955 = vst [vmem:[%s304 + $0x40] sm:$0xff] %v4909
        %4956 = vst [vmem:[%s304 + $0x48] sm:$0xff] %v4914
        %4957 = vst [vmem:[%s304 + $0x50] sm:$0xff] %v4919
        %4958 = vst [vmem:[%s304 + $0x58] sm:$0xff] %v4924
        %4959 = vst [vmem:[%s304 + $0x60] sm:$0xff] %v4929
        %4960 = vst [vmem:[%s304 + $0x68] sm:$0xff] %v4934
        %4961 = vst [vmem:[%s304 + $0x70] sm:$0xff] %v4939
        %4962 = vst [vmem:[%s304 + $0x78] sm:$0xff] %v4944
        %s4963 = sand.u32 %s191, 1
        %s4964 = scalar_lea.sflag [#allocation3], %s4963
        %s4965 = sand.u32 %s191, 1
        %s4966 = smul.addr %s4965, 128
        %s4967 = scalar_lea.vmem [#allocation2], %s4966
        // Predicated region
        $region49: #{tpu_custom_call.1} parent=47 // pred_check
          %p4968 = pneg %p201
        $region50: #{tpu_custom_call.1} parent=47 // pred_check_branch
          %4970 = sbr.rel (%p4968) target = $region52
        $region51: #{tpu_custom_call.1} parent=47 // pred_region
          %s4971 = smul.u32 16, %s21
          %s4973 = ssub.s32 2048, 2048
          %4974 = vsyncadd %s4964, %s4973
          %s4975 = smul.addr %s4971, 128
          %s4976 = scalar_lea.hbm %s7, %s4975
          %s4977 = sshll.u32 %s4967, 4
          %s4978 = int_to_ptr.vmem [resolvable:$true] %s4977
          %4983 = dma.vmem_to_hbm [thread:$0]  %s4978, 2048, %s4976, %s4964, 128, 128, 8
        $region52: #{tpu_custom_call.1} parent=47 // pred_fallthru
          _
      $region48: #{tpu_custom_call.1} parent=5 // pred_fallthru
        _
      %p4984 = scmp.le.s32.totalorder 2, %s16
      // Predicated region
      $region53: #{tpu_custom_call.1} parent=5 // pred_check
        %p4985 = pneg %p4984
      $region54: #{tpu_custom_call.1} parent=5 // pred_check_branch
        %4987 = sbr.rel (%p4985) target = $region56
      $region55: #{tpu_custom_call.1} parent=5 // pred_region
        %s4988 = ssub.s32 %s16, 2
        // Predicated region
        $region57: #{tpu_custom_call.1} parent=55 // pred_check
          %p4989 = pneg %p207
        $region58: #{tpu_custom_call.1} parent=55 // pred_check_branch
          %4991 = sbr.rel (%p4989) target = $region60
        $region59: #{tpu_custom_call.1} parent=55 // pred_region
          %s4992 = sand.u32 %s192, 1
          %s4993 = scalar_lea.sflag [#allocation3], %s4992
          %s4994 = sand.u32 %s192, 1
          %s4995 = smul.addr %s4994, 128
          %s4996 = scalar_lea.vmem [#allocation2], %s4995
          %4997 = dma.done %s4993, 2048
        $region60: #{tpu_custom_call.1} parent=55 // pred_fallthru
          _
      $region56: #{tpu_custom_call.1} parent=5 // pred_fallthru
        _
    $region6: #{tpu_custom_call.1} parent=1 // loop_footer
      %s20 = sadd.s32 1, %s16
    $region7: #{tpu_custom_call.1} parent=1 // loop_footer_branch
      %15 = sbr.rel target = $region3
    $region8: #{tpu_custom_call.1} parent=1 // loop_exit
      _
    %4998 = vsyncpa [#allocation3], 1
    %s4999 = scalar_lea.sflag [#allocation3], 1
    %5000 = vsyncpa %s4999, 1

</llo_original>
